<compile_context>
chip_gen: v5e
topology: v5e:2x2
jax: 0.10.0
libtpu: 0.0.40
codegen_flags: <defaults>
</compile_context>

<pallas_src>
import jax
import jax.numpy as jnp
from jax.experimental import pallas as pl
from jax.experimental.pallas import tpu as pltpu

Z_DIM = 2
N_CLASSES = 10
IN_DIM = Z_DIM + N_CLASSES   # 12
HIDDEN = 1000                # N
X_DIM = 784


def p_net_kernel(x_ref, w1_ref, b1_ref, w2_ref, b2_ref, w3_ref, b3_ref, o_ref):
    # Per-grid-step: one batch tile of x/out; weights/biases are VMEM-resident
    # (constant block index across the grid, so they are DMA'd only once).
    x = x_ref[...].astype(jnp.bfloat16)

    # lin1 + (dropout == identity in eval) + relu   (bias add / relu in f32)
    h = jnp.dot(x, w1_ref[...], preferred_element_type=jnp.float32) + b1_ref[...]
    h = jnp.maximum(h, 0.0)

    # lin2 + (dropout == identity in eval)  -- no relu here, matching the module
    h = jnp.dot(h.astype(jnp.bfloat16), w2_ref[...],
                preferred_element_type=jnp.float32) + b2_ref[...]

    # lin3 + sigmoid (f32 elementwise)
    h = jnp.dot(h.astype(jnp.bfloat16), w3_ref[...],
                preferred_element_type=jnp.float32) + b3_ref[...]
    o_ref[...] = jax.nn.sigmoid(h).astype(o_ref.dtype)


def init_params(key):
    """Deterministic PyTorch-style Linear init: U(-1/sqrt(fan_in), 1/sqrt(fan_in)).
    Weights are (in_features, out_features) f32; biases are (1, out_features) f32."""
    def linear(k, fan_in, fan_out):
        kw, kb = jax.random.split(k)
        bound = 1.0 / jnp.sqrt(jnp.float32(fan_in))
        w = jax.random.uniform(kw, (fan_in, fan_out), jnp.float32, -bound, bound)
        b = jax.random.uniform(kb, (1, fan_out), jnp.float32, -bound, bound)
        return w, b

    k1, k2, k3 = jax.random.split(key, 3)
    w1, b1 = linear(k1, IN_DIM, HIDDEN)
    w2, b2 = linear(k2, HIDDEN, HIDDEN)
    w3, b3 = linear(k3, HIDDEN, X_DIM)
    return w1, b1, w2, b2, w3, b3


def p_net_forward(x, params, *, block_b=256):
    w1, b1, w2, b2, w3, b3 = params
    # bf16 weights: halves HBM weight traffic and is the MXU's native input type.
    w1 = w1.astype(jnp.bfloat16)
    w2 = w2.astype(jnp.bfloat16)
    w3 = w3.astype(jnp.bfloat16)

    batch = x.shape[0]
    # Pick a batch tile: 256 for large batches, otherwise the batch rounded up to
    # a multiple of 8 (sublane granularity for f32 blocks).
    if batch >= block_b:
        tb = block_b
    else:
        tb = max(8, ((batch + 7) // 8) * 8)
    b_pad = pl.cdiv(batch, tb) * tb
    if b_pad != batch:
        x = jnp.pad(x, ((0, b_pad - batch), (0, 0)))

    grid = (b_pad // tb,)
    out = pl.pallas_call(
        p_net_kernel,
        out_shape=jax.ShapeDtypeStruct((b_pad, X_DIM), jnp.float32),
        grid=grid,
        in_specs=[
            pl.BlockSpec((tb, IN_DIM), lambda i: (i, 0)),        # x tile (pipelined)
            pl.BlockSpec((IN_DIM, HIDDEN), lambda i: (0, 0)),    # w1 (resident)
            pl.BlockSpec((1, HIDDEN), lambda i: (0, 0)),         # b1 (resident)
            pl.BlockSpec((HIDDEN, HIDDEN), lambda i: (0, 0)),    # w2 (resident)
            pl.BlockSpec((1, HIDDEN), lambda i: (0, 0)),         # b2 (resident)
            pl.BlockSpec((HIDDEN, X_DIM), lambda i: (0, 0)),     # w3 (resident)
            pl.BlockSpec((1, X_DIM), lambda i: (0, 0)),          # b3 (resident)
        ],
        out_specs=pl.BlockSpec((tb, X_DIM), lambda i: (i, 0)),   # out tile (pipelined)
        compiler_params=pltpu.CompilerParams(
            dimension_semantics=("parallel",),
            vmem_limit_bytes=32 << 20,
        ),
    )(x, w1, b1, w2, b2, w3, b3)
    return out[:batch]


def p_net_reference(x, params):
    """Pure-JAX f32 reference for correctness check."""
    w1, b1, w2, b2, w3, b3 = params
    h = jnp.maximum(x @ w1 + b1, 0.0)
    h = h @ w2 + b2
    return jax.nn.sigmoid(h @ w3 + b3)


if __name__ == "__main__":
    key = jax.random.PRNGKey(0)
    k_param, k_x = jax.random.split(key)

    params = init_params(k_param)
    batch = 8
    # input is a concat of z (2) and one-hot class label (10) in the AAE setup
    x = jax.random.normal(k_x, (batch, IN_DIM), dtype=jnp.float32)

    out = p_net_forward(x, params)
    out = jax.block_until_ready(out)

    ref = p_net_reference(x, params)
    assert out.shape == (batch, X_DIM)
    # bf16 weight/activation path vs f32 reference -> loosened tolerance (sigmoid
    # output range makes this benign).
    assert jnp.allclose(out, ref, atol=1e-2, rtol=1e-2)

    print("KERNEL_OK")
</pallas_src>

<mosaic_0001>
module attributes {stable_mosaic.version = 11 : i64} {
  func.func @p_net_kernel(%arg0: i32, %arg1: memref<8x12xf32, #tpu.memory_space<vmem>>, %arg2: memref<12x1000xbf16, #tpu.memory_space<vmem>>, %arg3: memref<1x1000xf32, #tpu.memory_space<vmem>>, %arg4: memref<1000x1000xbf16, #tpu.memory_space<vmem>>, %arg5: memref<1x1000xf32, #tpu.memory_space<vmem>>, %arg6: memref<1000x784xbf16, #tpu.memory_space<vmem>>, %arg7: memref<1x784xf32, #tpu.memory_space<vmem>>, %arg8: memref<8x784xf32, #tpu.memory_space<vmem>>) attributes {dimension_semantics = [#tpu.dimension_semantics<parallel>], iteration_bounds = array<i64: 1>, scalar_prefetch = 0 : i64, scratch_operands = 0 : i64, tpu.core_type = #tpu.core_type<tc>, window_params = [{transform_indices = @transform_0, window_bounds = array<i64: 8, 12>}, {pipeline_mode = #tpu.pipeline_mode<synchronous>, transform_indices = @transform_1, window_bounds = array<i64: 12, 1000>}, {pipeline_mode = #tpu.pipeline_mode<synchronous>, transform_indices = @transform_2, window_bounds = array<i64: 1, 1000>}, {pipeline_mode = #tpu.pipeline_mode<synchronous>, transform_indices = @transform_3, window_bounds = array<i64: 1000, 1000>}, {pipeline_mode = #tpu.pipeline_mode<synchronous>, transform_indices = @transform_4, window_bounds = array<i64: 1, 1000>}, {pipeline_mode = #tpu.pipeline_mode<synchronous>, transform_indices = @transform_5, window_bounds = array<i64: 1000, 784>}, {pipeline_mode = #tpu.pipeline_mode<synchronous>, transform_indices = @transform_6, window_bounds = array<i64: 1, 784>}, {transform_indices = @transform_7, window_bounds = array<i64: 8, 784>}]} {
    %c0 = arith.constant 0 : index
    %c0_0 = arith.constant 0 : index
    %0 = vector.load %arg1[%c0, %c0_0] : memref<8x12xf32, #tpu.memory_space<vmem>>, vector<8x12xf32>
    %1 = arith.truncf %0 : vector<8x12xf32> to vector<8x12xbf16>
    %c0_1 = arith.constant 0 : index
    %c0_2 = arith.constant 0 : index
    %2 = vector.load %arg2[%c0_1, %c0_2] : memref<12x1000xbf16, #tpu.memory_space<vmem>>, vector<12x1000xbf16>
    %cst = arith.constant dense<0.000000e+00> : vector<8x1000xf32>
    %3 = tpu.matmul %1, %2, %cst {dimension_numbers = #tpu.dot_dimension_numbers<[1], [0], [0], [1], [0, 0, 1, 1], [], []>} : vector<8x12xbf16>, vector<12x1000xbf16>, vector<8x1000xf32> -> vector<8x1000xf32>
    %c0_3 = arith.constant 0 : index
    %c0_4 = arith.constant 0 : index
    %4 = vector.load %arg3[%c0_3, %c0_4] : memref<1x1000xf32, #tpu.memory_space<vmem>>, vector<1x1000xf32>
    %5 = vector.broadcast %4 : vector<1x1000xf32> to vector<8x1000xf32>
    %6 = arith.addf %3, %5 : vector<8x1000xf32>
    %cst_5 = arith.constant 0.000000e+00 : f32
    %7 = vector.broadcast %cst_5 : f32 to vector<8x1000xf32>
    %8 = arith.maximumf %6, %7 : vector<8x1000xf32>
    %9 = arith.truncf %8 : vector<8x1000xf32> to vector<8x1000xbf16>
    %c0_6 = arith.constant 0 : index
    %c0_7 = arith.constant 0 : index
    %10 = vector.load %arg4[%c0_6, %c0_7] : memref<1000x1000xbf16, #tpu.memory_space<vmem>>, vector<1000x1000xbf16>
    %cst_8 = arith.constant dense<0.000000e+00> : vector<8x1000xf32>
    %11 = tpu.matmul %9, %10, %cst_8 {dimension_numbers = #tpu.dot_dimension_numbers<[1], [0], [0], [1], [0, 0, 1, 1], [], []>} : vector<8x1000xbf16>, vector<1000x1000xbf16>, vector<8x1000xf32> -> vector<8x1000xf32>
    %c0_9 = arith.constant 0 : index
    %c0_10 = arith.constant 0 : index
    %12 = vector.load %arg5[%c0_9, %c0_10] : memref<1x1000xf32, #tpu.memory_space<vmem>>, vector<1x1000xf32>
    %13 = vector.broadcast %12 : vector<1x1000xf32> to vector<8x1000xf32>
    %14 = arith.addf %11, %13 : vector<8x1000xf32>
    %15 = arith.truncf %14 : vector<8x1000xf32> to vector<8x1000xbf16>
    %c0_11 = arith.constant 0 : index
    %c0_12 = arith.constant 0 : index
    %16 = vector.load %arg6[%c0_11, %c0_12] : memref<1000x784xbf16, #tpu.memory_space<vmem>>, vector<1000x784xbf16>
    %cst_13 = arith.constant dense<0.000000e+00> : vector<8x784xf32>
    %17 = tpu.matmul %15, %16, %cst_13 {dimension_numbers = #tpu.dot_dimension_numbers<[1], [0], [0], [1], [0, 0, 1, 1], [], []>} : vector<8x1000xbf16>, vector<1000x784xbf16>, vector<8x784xf32> -> vector<8x784xf32>
    %c0_14 = arith.constant 0 : index
    %c0_15 = arith.constant 0 : index
    %18 = vector.load %arg7[%c0_14, %c0_15] : memref<1x784xf32, #tpu.memory_space<vmem>>, vector<1x784xf32>
    %19 = vector.broadcast %18 : vector<1x784xf32> to vector<8x784xf32>
    %20 = arith.addf %17, %19 : vector<8x784xf32>
    %21 = arith.negf %20 : vector<8x784xf32>
    %22 = math.exp %21 : vector<8x784xf32>
    %cst_16 = arith.constant 1.000000e+00 : f32
    %23 = vector.broadcast %cst_16 : f32 to vector<8x784xf32>
    %24 = arith.addf %23, %22 : vector<8x784xf32>
    %25 = arith.divf %23, %24 : vector<8x784xf32>
    %c0_17 = arith.constant 0 : index
    %c0_18 = arith.constant 0 : index
    %26 = vector.load %arg8[%c0_17, %c0_18] : memref<8x784xf32, #tpu.memory_space<vmem>>, vector<8x784xf32>
    tpu.vector_store %arg8[%c0_17, %c0_18], %25 {strides = array<i32>} : memref<8x784xf32, #tpu.memory_space<vmem>>, vector<8x784xf32>,
    return
  }
  func.func @transform_0(%arg0: i32) -> (i32, i32) {
    %c0_i32 = arith.constant 0 : i32
    %c0_i32_0 = arith.constant 0 : i32
    return %arg0, %c0_i32 : i32, i32
  }
  func.func @transform_1(%arg0: i32) -> (i32, i32) {
    %c0_i32 = arith.constant 0 : i32
    %c0_i32_0 = arith.constant 0 : i32
    %c0_i32_1 = arith.constant 0 : i32
    return %c0_i32, %c0_i32_0 : i32, i32
  }
  func.func @transform_2(%arg0: i32) -> (i32, i32) {
    %c0_i32 = arith.constant 0 : i32
    %c0_i32_0 = arith.constant 0 : i32
    %c0_i32_1 = arith.constant 0 : i32
    return %c0_i32, %c0_i32_0 : i32, i32
  }
  func.func @transform_3(%arg0: i32) -> (i32, i32) {
    %c0_i32 = arith.constant 0 : i32
    %c0_i32_0 = arith.constant 0 : i32
    %c0_i32_1 = arith.constant 0 : i32
    return %c0_i32, %c0_i32_0 : i32, i32
  }
  func.func @transform_4(%arg0: i32) -> (i32, i32) {
    %c0_i32 = arith.constant 0 : i32
    %c0_i32_0 = arith.constant 0 : i32
    %c0_i32_1 = arith.constant 0 : i32
    return %c0_i32, %c0_i32_0 : i32, i32
  }
  func.func @transform_5(%arg0: i32) -> (i32, i32) {
    %c0_i32 = arith.constant 0 : i32
    %c0_i32_0 = arith.constant 0 : i32
    %c0_i32_1 = arith.constant 0 : i32
    return %c0_i32, %c0_i32_0 : i32, i32
  }
  func.func @transform_6(%arg0: i32) -> (i32, i32) {
    %c0_i32 = arith.constant 0 : i32
    %c0_i32_0 = arith.constant 0 : i32
    %c0_i32_1 = arith.constant 0 : i32
    return %c0_i32, %c0_i32_0 : i32, i32
  }
  func.func @transform_7(%arg0: i32) -> (i32, i32) {
    %c0_i32 = arith.constant 0 : i32
    %c0_i32_0 = arith.constant 0 : i32
    return %arg0, %c0_i32 : i32, i32
  }
}

</mosaic_0001>

<llo_original>
// kernel: tpu_custom_call.1
$region0: #{tpu_custom_call.1}
  #allocation0 [shape = 'u32[]', space=smem, size = 0x4, offset = 0x4, fixed_abs, tag = 'smem constant byte address 0x4 - core index']
  #allocation1 [shape = 'u32[72,128]{1,0:T(1,128)}', space=vmem, size = 0x9000, scoped, tag = 'internal scratch']
  %s0 = inlined_call_operand.vmem [shape: f32[8,12], index: 0, kind: input, shape index: {}]
  %s1 = inlined_call_operand.vmem [shape: bf16[12,1000], index: 1, kind: input, shape index: {}]
  %s2 = inlined_call_operand.vmem [shape: f32[1,1000], index: 2, kind: input, shape index: {}]
  %s3 = inlined_call_operand.vmem [shape: bf16[1000,1000], index: 3, kind: input, shape index: {}]
  %s4 = inlined_call_operand.vmem [shape: f32[1,1000], index: 4, kind: input, shape index: {}]
  %s5 = inlined_call_operand.vmem [shape: bf16[1000,784], index: 5, kind: input, shape index: {}]
  %s6 = inlined_call_operand.vmem [shape: f32[1,784], index: 6, kind: input, shape index: {}]
  %s7 = inlined_call_operand.hbm [shape: f32[8,784], index: 7, kind: output, shape index: {}]
  %s8 = sld [smem:[#allocation0]]
  $region38: #{tpu_custom_call.1} parent=0
    _
  %s10 = ssub.s32 1, %s8
  %s11 = scalar_select 0, %s10, %s8
  $region1: #{tpu_custom_call.1} parent=0
    #allocation2 [shape = 'u8[28672]{0}', space=vmem, size = 0x7000, scoped, tag = 'output window, operand 0, single buffered']
    #allocation3 [shape = 's32[1]{0}', space=sflag, size = 0x4, scoped, tag = 'scoped memory for tpu_custom_call.1']
    %12 = vsyncpa [#allocation3], 0
    // Predicated region
    $region2: #{tpu_custom_call.1} parent=1 // pred_check
      _
    $region3: #{tpu_custom_call.1} parent=1 // pred_check_branch
      %14 = sbr.rel (0) target = $region5
    $region4: #{tpu_custom_call.1} parent=1 // pred_region
      _
    $region5: #{tpu_custom_call.1} parent=1 // pred_fallthru
      _
    // Predicated region
    $region6: #{tpu_custom_call.1} parent=1 // pred_check
      _
    $region7: #{tpu_custom_call.1} parent=1 // pred_check_branch
      %16 = sbr.rel (0) target = $region9
    $region8: #{tpu_custom_call.1} parent=1 // pred_region
      _
    $region9: #{tpu_custom_call.1} parent=1 // pred_fallthru
      _
    // Predicated region
    $region10: #{tpu_custom_call.1} parent=1 // pred_check
      _
    $region11: #{tpu_custom_call.1} parent=1 // pred_check_branch
      %18 = sbr.rel (0) target = $region13
    $region12: #{tpu_custom_call.1} parent=1 // pred_region
      _
    $region13: #{tpu_custom_call.1} parent=1 // pred_fallthru
      _
    // Predicated region
    $region14: #{tpu_custom_call.1} parent=1 // pred_check
      _
    $region15: #{tpu_custom_call.1} parent=1 // pred_check_branch
      %20 = sbr.rel (0) target = $region17
    $region16: #{tpu_custom_call.1} parent=1 // pred_region
      _
    $region17: #{tpu_custom_call.1} parent=1 // pred_fallthru
      _
    // Predicated region
    $region18: #{tpu_custom_call.1} parent=1 // pred_check
      _
    $region19: #{tpu_custom_call.1} parent=1 // pred_check_branch
      %22 = sbr.rel (0) target = $region21
    $region20: #{tpu_custom_call.1} parent=1 // pred_region
      _
    $region21: #{tpu_custom_call.1} parent=1 // pred_fallthru
      _
    // Predicated region
    $region22: #{tpu_custom_call.1} parent=1 // pred_check
      _
    $region23: #{tpu_custom_call.1} parent=1 // pred_check_branch
      %24 = sbr.rel (0) target = $region25
    $region24: #{tpu_custom_call.1} parent=1 // pred_region
      _
    $region25: #{tpu_custom_call.1} parent=1 // pred_fallthru
      _
    // Predicated region
    $region26: #{tpu_custom_call.1} parent=1 // pred_check
      _
    $region27: #{tpu_custom_call.1} parent=1 // pred_check_branch
      %26 = sbr.rel (0) target = $region29
    $region28: #{tpu_custom_call.1} parent=1 // pred_region
      _
    $region29: #{tpu_custom_call.1} parent=1 // pred_fallthru
      _
    %v28 = vld [vmem:[%s0] sm:$0xff]
    %v29 = vpack.c.bf16 %v28, %v28
    %v30 = vld [vmem:[%s1] sm:$0xff]
    %v31 = vld [vmem:[%s1 + $0x8] sm:$0xff]
    %v32 = vld [vmem:[%s1 + $0x10] sm:$0xff]
    %v33 = vld [vmem:[%s1 + $0x18] sm:$0xff]
    %v34 = vld [vmem:[%s1 + $0x20] sm:$0x33]
    %v35 = vld [vmem:[%s1 + $0x28] sm:$0x33]
    %v36 = vld [vmem:[%s1 + $0x30] sm:$0x33]
    %v37 = vld [vmem:[%s1 + $0x38] sm:$0x33]
    %v38 = vld [vmem:[%s2] sm:$0xff]
    %v40 = vperm.slane %v38, 0
    %v41 = vperm.slane %v38, 1
    %v42 = vperm.slane %v38, 2
    %v43 = vperm.slane %v38, 3
    %v44 = vperm.slane %v38, 4
    %v45 = vperm.slane %v38, 5
    %v46 = vperm.slane %v38, 6
    %v47 = vperm.slane %v38, 7
    %v64 = vunpack.c.l.b16 %v30
    %v65 = vunpack.c.h.b16 %v30
    %v66 = vunpack.c.l.b16 %v31
    %v67 = vunpack.c.h.b16 %v31
    %v68 = vunpack.c.l.b16 %v32
    %v69 = vunpack.c.h.b16 %v32
    %v70 = vunpack.c.l.b16 %v33
    %v71 = vunpack.c.h.b16 %v33
    %v72 = vunpack.c.l.b16 %v34
    %v73 = vunpack.c.h.b16 %v34
    %v74 = vunpack.c.l.b16 %v35
    %v75 = vunpack.c.h.b16 %v35
    %v76 = vunpack.c.l.b16 %v36
    %v77 = vunpack.c.h.b16 %v36
    %v78 = vunpack.c.l.b16 %v37
    %v79 = vunpack.c.h.b16 %v37
    %v80 = vpack.c.b16 %v72, %v64
    %v81 = vpack.c.b16 %v73, %v65
    %v82 = vpack.c.b16 %v74, %v66
    %v83 = vpack.c.b16 %v75, %v67
    %v84 = vpack.c.b16 %v76, %v68
    %v85 = vpack.c.b16 %v77, %v69
    %v86 = vpack.c.b16 %v78, %v70
    %v87 = vpack.c.b16 %v79, %v71
    %vm88 = vcmask 97280
    %v90 = vsel %vm88, %v29, 0
    %vm92 = vcmask 1045504
    %v94 = vsel %vm92, %v80, 0
    %v97 = vsel %vm92, %v81, 0
    %v100 = vsel %vm92, %v82, 0
    %v103 = vsel %vm92, %v83, 0
    %v106 = vsel %vm92, %v84, 0
    %v109 = vsel %vm92, %v85, 0
    %v112 = vsel %vm92, %v86, 0
    %v115 = vsel %vm92, %v87, 0
    %117 = vmatpush.bf16.msra.mxu0 0
    %118 = vmatpush.bf16.msra.mxu0 0
    %119 = vmatpush.bf16.msra.mxu0 0
    %120 = vmatpush.bf16.msra.mxu0 0
    %121 = vmatpush.bf16.msra.mxu0 0
    %122 = vmatpush.bf16.msra.mxu0 0
    %123 = vmatpush.bf16.msra.mxu0 0
    %124 = vmatpush.bf16.msra.mxu0 %v94
    %125 = vmatmul.bf16.gmra.mxu0 %v90
    %v126 = vpop.f32.mrf.mxu0
    %v127 = vadd.f32 %v40, %v126
    %v128 = vpop.f32.mrf.mxu0
    %129 = vdwg.mxu0
    %130 = vmatpush.bf16.msra.mxu0 0
    %131 = vmatpush.bf16.msra.mxu0 0
    %132 = vmatpush.bf16.msra.mxu0 0
    %133 = vmatpush.bf16.msra.mxu0 0
    %134 = vmatpush.bf16.msra.mxu0 0
    %135 = vmatpush.bf16.msra.mxu0 0
    %136 = vmatpush.bf16.msra.mxu0 0
    %137 = vmatpush.bf16.msra.mxu0 %v97
    %138 = vmatmul.bf16.gmra.mxu0 %v90
    %v139 = vpop.f32.mrf.mxu0
    %v140 = vadd.f32 %v41, %v139
    %v141 = vpop.f32.mrf.mxu0
    %142 = vdwg.mxu0
    %143 = vmatpush.bf16.msra.mxu0 0
    %144 = vmatpush.bf16.msra.mxu0 0
    %145 = vmatpush.bf16.msra.mxu0 0
    %146 = vmatpush.bf16.msra.mxu0 0
    %147 = vmatpush.bf16.msra.mxu0 0
    %148 = vmatpush.bf16.msra.mxu0 0
    %149 = vmatpush.bf16.msra.mxu0 0
    %150 = vmatpush.bf16.msra.mxu0 %v100
    %151 = vmatmul.bf16.gmra.mxu0 %v90
    %v152 = vpop.f32.mrf.mxu0
    %v153 = vadd.f32 %v42, %v152
    %v154 = vpop.f32.mrf.mxu0
    %155 = vdwg.mxu0
    %156 = vmatpush.bf16.msra.mxu0 0
    %157 = vmatpush.bf16.msra.mxu0 0
    %158 = vmatpush.bf16.msra.mxu0 0
    %159 = vmatpush.bf16.msra.mxu0 0
    %160 = vmatpush.bf16.msra.mxu0 0
    %161 = vmatpush.bf16.msra.mxu0 0
    %162 = vmatpush.bf16.msra.mxu0 0
    %163 = vmatpush.bf16.msra.mxu0 %v103
    %164 = vmatmul.bf16.gmra.mxu0 %v90
    %v165 = vpop.f32.mrf.mxu0
    %v166 = vadd.f32 %v43, %v165
    %v167 = vpop.f32.mrf.mxu0
    %168 = vdwg.mxu0
    %169 = vmatpush.bf16.msra.mxu0 0
    %170 = vmatpush.bf16.msra.mxu0 0
    %171 = vmatpush.bf16.msra.mxu0 0
    %172 = vmatpush.bf16.msra.mxu0 0
    %173 = vmatpush.bf16.msra.mxu0 0
    %174 = vmatpush.bf16.msra.mxu0 0
    %175 = vmatpush.bf16.msra.mxu0 0
    %176 = vmatpush.bf16.msra.mxu0 %v106
    %177 = vmatmul.bf16.gmra.mxu0 %v90
    %v178 = vpop.f32.mrf.mxu0
    %v179 = vadd.f32 %v44, %v178
    %v180 = vpop.f32.mrf.mxu0
    %181 = vdwg.mxu0
    %182 = vmatpush.bf16.msra.mxu0 0
    %183 = vmatpush.bf16.msra.mxu0 0
    %184 = vmatpush.bf16.msra.mxu0 0
    %185 = vmatpush.bf16.msra.mxu0 0
    %186 = vmatpush.bf16.msra.mxu0 0
    %187 = vmatpush.bf16.msra.mxu0 0
    %188 = vmatpush.bf16.msra.mxu0 0
    %189 = vmatpush.bf16.msra.mxu0 %v109
    %190 = vmatmul.bf16.gmra.mxu0 %v90
    %v191 = vpop.f32.mrf.mxu0
    %v192 = vadd.f32 %v45, %v191
    %v193 = vpop.f32.mrf.mxu0
    %194 = vdwg.mxu0
    %195 = vmatpush.bf16.msra.mxu0 0
    %196 = vmatpush.bf16.msra.mxu0 0
    %197 = vmatpush.bf16.msra.mxu0 0
    %198 = vmatpush.bf16.msra.mxu0 0
    %199 = vmatpush.bf16.msra.mxu0 0
    %200 = vmatpush.bf16.msra.mxu0 0
    %201 = vmatpush.bf16.msra.mxu0 0
    %202 = vmatpush.bf16.msra.mxu0 %v112
    %203 = vmatmul.bf16.gmra.mxu0 %v90
    %v204 = vpop.f32.mrf.mxu0
    %v205 = vadd.f32 %v46, %v204
    %v206 = vpop.f32.mrf.mxu0
    %207 = vdwg.mxu0
    %208 = vmatpush.bf16.msra.mxu0 0
    %209 = vmatpush.bf16.msra.mxu0 0
    %210 = vmatpush.bf16.msra.mxu0 0
    %211 = vmatpush.bf16.msra.mxu0 0
    %212 = vmatpush.bf16.msra.mxu0 0
    %213 = vmatpush.bf16.msra.mxu0 0
    %214 = vmatpush.bf16.msra.mxu0 0
    %215 = vmatpush.bf16.msra.mxu0 %v115
    %216 = vmatmul.bf16.gmra.mxu0 %v90
    %v217 = vpop.f32.mrf.mxu0
    %v218 = vadd.f32 %v47, %v217
    %v219 = vpop.f32.mrf.mxu0
    %220 = vdwg.mxu0
    %v221 = vmax.f32 %v127, 0.0
    %v222 = vmax.f32 %v140, 0.0
    %v223 = vmax.f32 %v153, 0.0
    %v224 = vmax.f32 %v166, 0.0
    %v225 = vmax.f32 %v179, 0.0
    %v226 = vmax.f32 %v192, 0.0
    %v227 = vmax.f32 %v205, 0.0
    %v228 = vmax.f32 %v218, 0.0
    %v229 = vpack.c.bf16 %v221, %v221
    %v230 = vpack.c.bf16 %v222, %v222
    %v231 = vpack.c.bf16 %v223, %v223
    %v232 = vpack.c.bf16 %v224, %v224
    %v233 = vpack.c.bf16 %v225, %v225
    %v234 = vpack.c.bf16 %v226, %v226
    %v235 = vpack.c.bf16 %v227, %v227
    %v236 = vpack.c.bf16 %v228, %v228
    %v237 = vld [vmem:[%s3] sm:$0xff]
    %v238 = vld [vmem:[%s3 + $0x8] sm:$0xff]
    %v239 = vld [vmem:[%s3 + $0x10] sm:$0xff]
    %v240 = vld [vmem:[%s3 + $0x18] sm:$0xff]
    %v241 = vld [vmem:[%s3 + $0x20] sm:$0xff]
    %v242 = vld [vmem:[%s3 + $0x28] sm:$0xff]
    %v243 = vld [vmem:[%s3 + $0x30] sm:$0xff]
    %v244 = vld [vmem:[%s3 + $0x38] sm:$0xff]
    %v245 = vld [vmem:[%s3 + $0x40] sm:$0xff]
    %v246 = vld [vmem:[%s3 + $0x48] sm:$0xff]
    %v247 = vld [vmem:[%s3 + $0x50] sm:$0xff]
    %v248 = vld [vmem:[%s3 + $0x58] sm:$0xff]
    %v249 = vld [vmem:[%s3 + $0x60] sm:$0xff]
    %v250 = vld [vmem:[%s3 + $0x68] sm:$0xff]
    %v251 = vld [vmem:[%s3 + $0x70] sm:$0xff]
    %v252 = vld [vmem:[%s3 + $0x78] sm:$0xff]
    %v253 = vld [vmem:[%s3 + $0x80] sm:$0xff]
    %v254 = vld [vmem:[%s3 + $0x88] sm:$0xff]
    %v255 = vld [vmem:[%s3 + $0x90] sm:$0xff]
    %v256 = vld [vmem:[%s3 + $0x98] sm:$0xff]
    %v257 = vld [vmem:[%s3 + $0xa0] sm:$0xff]
    %v258 = vld [vmem:[%s3 + $0xa8] sm:$0xff]
    %v259 = vld [vmem:[%s3 + $0xb0] sm:$0xff]
    %v260 = vld [vmem:[%s3 + $0xb8] sm:$0xff]
    %v261 = vld [vmem:[%s3 + $0xc0] sm:$0xff]
    %v262 = vld [vmem:[%s3 + $0xc8] sm:$0xff]
    %v263 = vld [vmem:[%s3 + $0xd0] sm:$0xff]
    %v264 = vld [vmem:[%s3 + $0xd8] sm:$0xff]
    %v265 = vld [vmem:[%s3 + $0xe0] sm:$0xff]
    %v266 = vld [vmem:[%s3 + $0xe8] sm:$0xff]
    %v267 = vld [vmem:[%s3 + $0xf0] sm:$0xff]
    %v268 = vld [vmem:[%s3 + $0xf8] sm:$0xff]
    %v269 = vld [vmem:[%s3 + $0x100] sm:$0xff]
    %v270 = vld [vmem:[%s3 + $0x108] sm:$0xff]
    %v271 = vld [vmem:[%s3 + $0x110] sm:$0xff]
    %v272 = vld [vmem:[%s3 + $0x118] sm:$0xff]
    %v273 = vld [vmem:[%s3 + $0x120] sm:$0xff]
    %v274 = vld [vmem:[%s3 + $0x128] sm:$0xff]
    %v275 = vld [vmem:[%s3 + $0x130] sm:$0xff]
    %v276 = vld [vmem:[%s3 + $0x138] sm:$0xff]
    %v277 = vld [vmem:[%s3 + $0x140] sm:$0xff]
    %v278 = vld [vmem:[%s3 + $0x148] sm:$0xff]
    %v279 = vld [vmem:[%s3 + $0x150] sm:$0xff]
    %v280 = vld [vmem:[%s3 + $0x158] sm:$0xff]
    %v281 = vld [vmem:[%s3 + $0x160] sm:$0xff]
    %v282 = vld [vmem:[%s3 + $0x168] sm:$0xff]
    %v283 = vld [vmem:[%s3 + $0x170] sm:$0xff]
    %v284 = vld [vmem:[%s3 + $0x178] sm:$0xff]
    %v285 = vld [vmem:[%s3 + $0x180] sm:$0xff]
    %v286 = vld [vmem:[%s3 + $0x188] sm:$0xff]
    %v287 = vld [vmem:[%s3 + $0x190] sm:$0xff]
    %v288 = vld [vmem:[%s3 + $0x198] sm:$0xff]
    %v289 = vld [vmem:[%s3 + $0x1a0] sm:$0xff]
    %v290 = vld [vmem:[%s3 + $0x1a8] sm:$0xff]
    %v291 = vld [vmem:[%s3 + $0x1b0] sm:$0xff]
    %v292 = vld [vmem:[%s3 + $0x1b8] sm:$0xff]
    %v293 = vld [vmem:[%s3 + $0x1c0] sm:$0xff]
    %v294 = vld [vmem:[%s3 + $0x1c8] sm:$0xff]
    %v295 = vld [vmem:[%s3 + $0x1d0] sm:$0xff]
    %v296 = vld [vmem:[%s3 + $0x1d8] sm:$0xff]
    %v297 = vld [vmem:[%s3 + $0x1e0] sm:$0xff]
    %v298 = vld [vmem:[%s3 + $0x1e8] sm:$0xff]
    %v299 = vld [vmem:[%s3 + $0x1f0] sm:$0xff]
    %v300 = vld [vmem:[%s3 + $0x1f8] sm:$0xff]
    %v301 = vld [vmem:[%s3 + $0x200] sm:$0xff]
    %v302 = vld [vmem:[%s3 + $0x208] sm:$0xff]
    %v303 = vld [vmem:[%s3 + $0x210] sm:$0xff]
    %v304 = vld [vmem:[%s3 + $0x218] sm:$0xff]
    %v305 = vld [vmem:[%s3 + $0x220] sm:$0xff]
    %v306 = vld [vmem:[%s3 + $0x228] sm:$0xff]
    %v307 = vld [vmem:[%s3 + $0x230] sm:$0xff]
    %v308 = vld [vmem:[%s3 + $0x238] sm:$0xff]
    %v309 = vld [vmem:[%s3 + $0x240] sm:$0xff]
    %v310 = vld [vmem:[%s3 + $0x248] sm:$0xff]
    %v311 = vld [vmem:[%s3 + $0x250] sm:$0xff]
    %v312 = vld [vmem:[%s3 + $0x258] sm:$0xff]
    %v313 = vld [vmem:[%s3 + $0x260] sm:$0xff]
    %v314 = vld [vmem:[%s3 + $0x268] sm:$0xff]
    %v315 = vld [vmem:[%s3 + $0x270] sm:$0xff]
    %v316 = vld [vmem:[%s3 + $0x278] sm:$0xff]
    %v317 = vld [vmem:[%s3 + $0x280] sm:$0xff]
    %v318 = vld [vmem:[%s3 + $0x288] sm:$0xff]
    %v319 = vld [vmem:[%s3 + $0x290] sm:$0xff]
    %v320 = vld [vmem:[%s3 + $0x298] sm:$0xff]
    %v321 = vld [vmem:[%s3 + $0x2a0] sm:$0xff]
    %v322 = vld [vmem:[%s3 + $0x2a8] sm:$0xff]
    %v323 = vld [vmem:[%s3 + $0x2b0] sm:$0xff]
    %v324 = vld [vmem:[%s3 + $0x2b8] sm:$0xff]
    %v325 = vld [vmem:[%s3 + $0x2c0] sm:$0xff]
    %v326 = vld [vmem:[%s3 + $0x2c8] sm:$0xff]
    %v327 = vld [vmem:[%s3 + $0x2d0] sm:$0xff]
    %v328 = vld [vmem:[%s3 + $0x2d8] sm:$0xff]
    %v329 = vld [vmem:[%s3 + $0x2e0] sm:$0xff]
    %v330 = vld [vmem:[%s3 + $0x2e8] sm:$0xff]
    %v331 = vld [vmem:[%s3 + $0x2f0] sm:$0xff]
    %v332 = vld [vmem:[%s3 + $0x2f8] sm:$0xff]
    %v333 = vld [vmem:[%s3 + $0x300] sm:$0xff]
    %v334 = vld [vmem:[%s3 + $0x308] sm:$0xff]
    %v335 = vld [vmem:[%s3 + $0x310] sm:$0xff]
    %v336 = vld [vmem:[%s3 + $0x318] sm:$0xff]
    %v337 = vld [vmem:[%s3 + $0x320] sm:$0xff]
    %v338 = vld [vmem:[%s3 + $0x328] sm:$0xff]
    %v339 = vld [vmem:[%s3 + $0x330] sm:$0xff]
    %v340 = vld [vmem:[%s3 + $0x338] sm:$0xff]
    %v341 = vld [vmem:[%s3 + $0x340] sm:$0xff]
    %v342 = vld [vmem:[%s3 + $0x348] sm:$0xff]
    %v343 = vld [vmem:[%s3 + $0x350] sm:$0xff]
    %v344 = vld [vmem:[%s3 + $0x358] sm:$0xff]
    %v345 = vld [vmem:[%s3 + $0x360] sm:$0xff]
    %v346 = vld [vmem:[%s3 + $0x368] sm:$0xff]
    %v347 = vld [vmem:[%s3 + $0x370] sm:$0xff]
    %v348 = vld [vmem:[%s3 + $0x378] sm:$0xff]
    %v349 = vld [vmem:[%s3 + $0x380] sm:$0xff]
    %v350 = vld [vmem:[%s3 + $0x388] sm:$0xff]
    %v351 = vld [vmem:[%s3 + $0x390] sm:$0xff]
    %v352 = vld [vmem:[%s3 + $0x398] sm:$0xff]
    %v353 = vld [vmem:[%s3 + $0x3a0] sm:$0xff]
    %v354 = vld [vmem:[%s3 + $0x3a8] sm:$0xff]
    %v355 = vld [vmem:[%s3 + $0x3b0] sm:$0xff]
    %v356 = vld [vmem:[%s3 + $0x3b8] sm:$0xff]
    %v357 = vld [vmem:[%s3 + $0x3c0] sm:$0xff]
    %v358 = vld [vmem:[%s3 + $0x3c8] sm:$0xff]
    %v359 = vld [vmem:[%s3 + $0x3d0] sm:$0xff]
    %v360 = vld [vmem:[%s3 + $0x3d8] sm:$0xff]
    %v361 = vld [vmem:[%s3 + $0x3e0] sm:$0xff]
    %v362 = vld [vmem:[%s3 + $0x3e8] sm:$0xff]
    %v363 = vld [vmem:[%s3 + $0x3f0] sm:$0xff]
    %v364 = vld [vmem:[%s3 + $0x3f8] sm:$0xff]
    %v365 = vld [vmem:[%s3 + $0x400] sm:$0xff]
    %v366 = vld [vmem:[%s3 + $0x408] sm:$0xff]
    %v367 = vld [vmem:[%s3 + $0x410] sm:$0xff]
    %v368 = vld [vmem:[%s3 + $0x418] sm:$0xff]
    %v369 = vld [vmem:[%s3 + $0x420] sm:$0xff]
    %v370 = vld [vmem:[%s3 + $0x428] sm:$0xff]
    %v371 = vld [vmem:[%s3 + $0x430] sm:$0xff]
    %v372 = vld [vmem:[%s3 + $0x438] sm:$0xff]
    %v373 = vld [vmem:[%s3 + $0x440] sm:$0xff]
    %v374 = vld [vmem:[%s3 + $0x448] sm:$0xff]
    %v375 = vld [vmem:[%s3 + $0x450] sm:$0xff]
    %v376 = vld [vmem:[%s3 + $0x458] sm:$0xff]
    %v377 = vld [vmem:[%s3 + $0x460] sm:$0xff]
    %v378 = vld [vmem:[%s3 + $0x468] sm:$0xff]
    %v379 = vld [vmem:[%s3 + $0x470] sm:$0xff]
    %v380 = vld [vmem:[%s3 + $0x478] sm:$0xff]
    %v381 = vld [vmem:[%s3 + $0x480] sm:$0xff]
    %v382 = vld [vmem:[%s3 + $0x488] sm:$0xff]
    %v383 = vld [vmem:[%s3 + $0x490] sm:$0xff]
    %v384 = vld [vmem:[%s3 + $0x498] sm:$0xff]
    %v385 = vld [vmem:[%s3 + $0x4a0] sm:$0xff]
    %v386 = vld [vmem:[%s3 + $0x4a8] sm:$0xff]
    %v387 = vld [vmem:[%s3 + $0x4b0] sm:$0xff]
    %v388 = vld [vmem:[%s3 + $0x4b8] sm:$0xff]
    %v389 = vld [vmem:[%s3 + $0x4c0] sm:$0xff]
    %v390 = vld [vmem:[%s3 + $0x4c8] sm:$0xff]
    %v391 = vld [vmem:[%s3 + $0x4d0] sm:$0xff]
    %v392 = vld [vmem:[%s3 + $0x4d8] sm:$0xff]
    %v393 = vld [vmem:[%s3 + $0x4e0] sm:$0xff]
    %v394 = vld [vmem:[%s3 + $0x4e8] sm:$0xff]
    %v395 = vld [vmem:[%s3 + $0x4f0] sm:$0xff]
    %v396 = vld [vmem:[%s3 + $0x4f8] sm:$0xff]
    %v397 = vld [vmem:[%s3 + $0x500] sm:$0xff]
    %v398 = vld [vmem:[%s3 + $0x508] sm:$0xff]
    %v399 = vld [vmem:[%s3 + $0x510] sm:$0xff]
    %v400 = vld [vmem:[%s3 + $0x518] sm:$0xff]
    %v401 = vld [vmem:[%s3 + $0x520] sm:$0xff]
    %v402 = vld [vmem:[%s3 + $0x528] sm:$0xff]
    %v403 = vld [vmem:[%s3 + $0x530] sm:$0xff]
    %v404 = vld [vmem:[%s3 + $0x538] sm:$0xff]
    %v405 = vld [vmem:[%s3 + $0x540] sm:$0xff]
    %v406 = vld [vmem:[%s3 + $0x548] sm:$0xff]
    %v407 = vld [vmem:[%s3 + $0x550] sm:$0xff]
    %v408 = vld [vmem:[%s3 + $0x558] sm:$0xff]
    %v409 = vld [vmem:[%s3 + $0x560] sm:$0xff]
    %v410 = vld [vmem:[%s3 + $0x568] sm:$0xff]
    %v411 = vld [vmem:[%s3 + $0x570] sm:$0xff]
    %v412 = vld [vmem:[%s3 + $0x578] sm:$0xff]
    %v413 = vld [vmem:[%s3 + $0x580] sm:$0xff]
    %v414 = vld [vmem:[%s3 + $0x588] sm:$0xff]
    %v415 = vld [vmem:[%s3 + $0x590] sm:$0xff]
    %v416 = vld [vmem:[%s3 + $0x598] sm:$0xff]
    %v417 = vld [vmem:[%s3 + $0x5a0] sm:$0xff]
    %v418 = vld [vmem:[%s3 + $0x5a8] sm:$0xff]
    %v419 = vld [vmem:[%s3 + $0x5b0] sm:$0xff]
    %v420 = vld [vmem:[%s3 + $0x5b8] sm:$0xff]
    %v421 = vld [vmem:[%s3 + $0x5c0] sm:$0xff]
    %v422 = vld [vmem:[%s3 + $0x5c8] sm:$0xff]
    %v423 = vld [vmem:[%s3 + $0x5d0] sm:$0xff]
    %v424 = vld [vmem:[%s3 + $0x5d8] sm:$0xff]
    %v425 = vld [vmem:[%s3 + $0x5e0] sm:$0xff]
    %v426 = vld [vmem:[%s3 + $0x5e8] sm:$0xff]
    %v427 = vld [vmem:[%s3 + $0x5f0] sm:$0xff]
    %v428 = vld [vmem:[%s3 + $0x5f8] sm:$0xff]
    %v429 = vld [vmem:[%s3 + $0x600] sm:$0xff]
    %v430 = vld [vmem:[%s3 + $0x608] sm:$0xff]
    %v431 = vld [vmem:[%s3 + $0x610] sm:$0xff]
    %v432 = vld [vmem:[%s3 + $0x618] sm:$0xff]
    %v433 = vld [vmem:[%s3 + $0x620] sm:$0xff]
    %v434 = vld [vmem:[%s3 + $0x628] sm:$0xff]
    %v435 = vld [vmem:[%s3 + $0x630] sm:$0xff]
    %v436 = vld [vmem:[%s3 + $0x638] sm:$0xff]
    %v437 = vld [vmem:[%s3 + $0x640] sm:$0xff]
    %v438 = vld [vmem:[%s3 + $0x648] sm:$0xff]
    %v439 = vld [vmem:[%s3 + $0x650] sm:$0xff]
    %v440 = vld [vmem:[%s3 + $0x658] sm:$0xff]
    %v441 = vld [vmem:[%s3 + $0x660] sm:$0xff]
    %v442 = vld [vmem:[%s3 + $0x668] sm:$0xff]
    %v443 = vld [vmem:[%s3 + $0x670] sm:$0xff]
    %v444 = vld [vmem:[%s3 + $0x678] sm:$0xff]
    %v445 = vld [vmem:[%s3 + $0x680] sm:$0xff]
    %v446 = vld [vmem:[%s3 + $0x688] sm:$0xff]
    %v447 = vld [vmem:[%s3 + $0x690] sm:$0xff]
    %v448 = vld [vmem:[%s3 + $0x698] sm:$0xff]
    %v449 = vld [vmem:[%s3 + $0x6a0] sm:$0xff]
    %v450 = vld [vmem:[%s3 + $0x6a8] sm:$0xff]
    %v451 = vld [vmem:[%s3 + $0x6b0] sm:$0xff]
    %v452 = vld [vmem:[%s3 + $0x6b8] sm:$0xff]
    %v453 = vld [vmem:[%s3 + $0x6c0] sm:$0xff]
    %v454 = vld [vmem:[%s3 + $0x6c8] sm:$0xff]
    %v455 = vld [vmem:[%s3 + $0x6d0] sm:$0xff]
    %v456 = vld [vmem:[%s3 + $0x6d8] sm:$0xff]
    %v457 = vld [vmem:[%s3 + $0x6e0] sm:$0xff]
    %v458 = vld [vmem:[%s3 + $0x6e8] sm:$0xff]
    %v459 = vld [vmem:[%s3 + $0x6f0] sm:$0xff]
    %v460 = vld [vmem:[%s3 + $0x6f8] sm:$0xff]
    %v461 = vld [vmem:[%s3 + $0x700] sm:$0xff]
    %v462 = vld [vmem:[%s3 + $0x708] sm:$0xff]
    %v463 = vld [vmem:[%s3 + $0x710] sm:$0xff]
    %v464 = vld [vmem:[%s3 + $0x718] sm:$0xff]
    %v465 = vld [vmem:[%s3 + $0x720] sm:$0xff]
    %v466 = vld [vmem:[%s3 + $0x728] sm:$0xff]
    %v467 = vld [vmem:[%s3 + $0x730] sm:$0xff]
    %v468 = vld [vmem:[%s3 + $0x738] sm:$0xff]
    %v469 = vld [vmem:[%s3 + $0x740] sm:$0xff]
    %v470 = vld [vmem:[%s3 + $0x748] sm:$0xff]
    %v471 = vld [vmem:[%s3 + $0x750] sm:$0xff]
    %v472 = vld [vmem:[%s3 + $0x758] sm:$0xff]
    %v473 = vld [vmem:[%s3 + $0x760] sm:$0xff]
    %v474 = vld [vmem:[%s3 + $0x768] sm:$0xff]
    %v475 = vld [vmem:[%s3 + $0x770] sm:$0xff]
    %v476 = vld [vmem:[%s3 + $0x778] sm:$0xff]
    %v477 = vld [vmem:[%s3 + $0x780] sm:$0xff]
    %v478 = vld [vmem:[%s3 + $0x788] sm:$0xff]
    %v479 = vld [vmem:[%s3 + $0x790] sm:$0xff]
    %v480 = vld [vmem:[%s3 + $0x798] sm:$0xff]
    %v481 = vld [vmem:[%s3 + $0x7a0] sm:$0xff]
    %v482 = vld [vmem:[%s3 + $0x7a8] sm:$0xff]
    %v483 = vld [vmem:[%s3 + $0x7b0] sm:$0xff]
    %v484 = vld [vmem:[%s3 + $0x7b8] sm:$0xff]
    %v485 = vld [vmem:[%s3 + $0x7c0] sm:$0xff]
    %v486 = vld [vmem:[%s3 + $0x7c8] sm:$0xff]
    %v487 = vld [vmem:[%s3 + $0x7d0] sm:$0xff]
    %v488 = vld [vmem:[%s3 + $0x7d8] sm:$0xff]
    %v489 = vld [vmem:[%s3 + $0x7e0] sm:$0xff]
    %v490 = vld [vmem:[%s3 + $0x7e8] sm:$0xff]
    %v491 = vld [vmem:[%s3 + $0x7f0] sm:$0xff]
    %v492 = vld [vmem:[%s3 + $0x7f8] sm:$0xff]
    %v493 = vld [vmem:[%s3 + $0x800] sm:$0xff]
    %v494 = vld [vmem:[%s3 + $0x808] sm:$0xff]
    %v495 = vld [vmem:[%s3 + $0x810] sm:$0xff]
    %v496 = vld [vmem:[%s3 + $0x818] sm:$0xff]
    %v497 = vld [vmem:[%s3 + $0x820] sm:$0xff]
    %v498 = vld [vmem:[%s3 + $0x828] sm:$0xff]
    %v499 = vld [vmem:[%s3 + $0x830] sm:$0xff]
    %v500 = vld [vmem:[%s3 + $0x838] sm:$0xff]
    %v501 = vld [vmem:[%s3 + $0x840] sm:$0xff]
    %v502 = vld [vmem:[%s3 + $0x848] sm:$0xff]
    %v503 = vld [vmem:[%s3 + $0x850] sm:$0xff]
    %v504 = vld [vmem:[%s3 + $0x858] sm:$0xff]
    %v505 = vld [vmem:[%s3 + $0x860] sm:$0xff]
    %v506 = vld [vmem:[%s3 + $0x868] sm:$0xff]
    %v507 = vld [vmem:[%s3 + $0x870] sm:$0xff]
    %v508 = vld [vmem:[%s3 + $0x878] sm:$0xff]
    %v509 = vld [vmem:[%s3 + $0x880] sm:$0xff]
    %v510 = vld [vmem:[%s3 + $0x888] sm:$0xff]
    %v511 = vld [vmem:[%s3 + $0x890] sm:$0xff]
    %v512 = vld [vmem:[%s3 + $0x898] sm:$0xff]
    %v513 = vld [vmem:[%s3 + $0x8a0] sm:$0xff]
    %v514 = vld [vmem:[%s3 + $0x8a8] sm:$0xff]
    %v515 = vld [vmem:[%s3 + $0x8b0] sm:$0xff]
    %v516 = vld [vmem:[%s3 + $0x8b8] sm:$0xff]
    %v517 = vld [vmem:[%s3 + $0x8c0] sm:$0xff]
    %v518 = vld [vmem:[%s3 + $0x8c8] sm:$0xff]
    %v519 = vld [vmem:[%s3 + $0x8d0] sm:$0xff]
    %v520 = vld [vmem:[%s3 + $0x8d8] sm:$0xff]
    %v521 = vld [vmem:[%s3 + $0x8e0] sm:$0xff]
    %v522 = vld [vmem:[%s3 + $0x8e8] sm:$0xff]
    %v523 = vld [vmem:[%s3 + $0x8f0] sm:$0xff]
    %v524 = vld [vmem:[%s3 + $0x8f8] sm:$0xff]
    %v525 = vld [vmem:[%s3 + $0x900] sm:$0xff]
    %v526 = vld [vmem:[%s3 + $0x908] sm:$0xff]
    %v527 = vld [vmem:[%s3 + $0x910] sm:$0xff]
    %v528 = vld [vmem:[%s3 + $0x918] sm:$0xff]
    %v529 = vld [vmem:[%s3 + $0x920] sm:$0xff]
    %v530 = vld [vmem:[%s3 + $0x928] sm:$0xff]
    %v531 = vld [vmem:[%s3 + $0x930] sm:$0xff]
    %v532 = vld [vmem:[%s3 + $0x938] sm:$0xff]
    %v533 = vld [vmem:[%s3 + $0x940] sm:$0xff]
    %v534 = vld [vmem:[%s3 + $0x948] sm:$0xff]
    %v535 = vld [vmem:[%s3 + $0x950] sm:$0xff]
    %v536 = vld [vmem:[%s3 + $0x958] sm:$0xff]
    %v537 = vld [vmem:[%s3 + $0x960] sm:$0xff]
    %v538 = vld [vmem:[%s3 + $0x968] sm:$0xff]
    %v539 = vld [vmem:[%s3 + $0x970] sm:$0xff]
    %v540 = vld [vmem:[%s3 + $0x978] sm:$0xff]
    %v541 = vld [vmem:[%s3 + $0x980] sm:$0xff]
    %v542 = vld [vmem:[%s3 + $0x988] sm:$0xff]
    %v543 = vld [vmem:[%s3 + $0x990] sm:$0xff]
    %v544 = vld [vmem:[%s3 + $0x998] sm:$0xff]
    %v545 = vld [vmem:[%s3 + $0x9a0] sm:$0xff]
    %v546 = vld [vmem:[%s3 + $0x9a8] sm:$0xff]
    %v547 = vld [vmem:[%s3 + $0x9b0] sm:$0xff]
    %v548 = vld [vmem:[%s3 + $0x9b8] sm:$0xff]
    %v549 = vld [vmem:[%s3 + $0x9c0] sm:$0xff]
    %v550 = vld [vmem:[%s3 + $0x9c8] sm:$0xff]
    %v551 = vld [vmem:[%s3 + $0x9d0] sm:$0xff]
    %v552 = vld [vmem:[%s3 + $0x9d8] sm:$0xff]
    %v553 = vld [vmem:[%s3 + $0x9e0] sm:$0xff]
    %v554 = vld [vmem:[%s3 + $0x9e8] sm:$0xff]
    %v555 = vld [vmem:[%s3 + $0x9f0] sm:$0xff]
    %v556 = vld [vmem:[%s3 + $0x9f8] sm:$0xff]
    %v557 = vld [vmem:[%s3 + $0xa00] sm:$0xff]
    %v558 = vld [vmem:[%s3 + $0xa08] sm:$0xff]
    %v559 = vld [vmem:[%s3 + $0xa10] sm:$0xff]
    %v560 = vld [vmem:[%s3 + $0xa18] sm:$0xff]
    %v561 = vld [vmem:[%s3 + $0xa20] sm:$0xff]
    %v562 = vld [vmem:[%s3 + $0xa28] sm:$0xff]
    %v563 = vld [vmem:[%s3 + $0xa30] sm:$0xff]
    %v564 = vld [vmem:[%s3 + $0xa38] sm:$0xff]
    %v565 = vld [vmem:[%s3 + $0xa40] sm:$0xff]
    %v566 = vld [vmem:[%s3 + $0xa48] sm:$0xff]
    %v567 = vld [vmem:[%s3 + $0xa50] sm:$0xff]
    %v568 = vld [vmem:[%s3 + $0xa58] sm:$0xff]
    %v569 = vld [vmem:[%s3 + $0xa60] sm:$0xff]
    %v570 = vld [vmem:[%s3 + $0xa68] sm:$0xff]
    %v571 = vld [vmem:[%s3 + $0xa70] sm:$0xff]
    %v572 = vld [vmem:[%s3 + $0xa78] sm:$0xff]
    %v573 = vld [vmem:[%s3 + $0xa80] sm:$0xff]
    %v574 = vld [vmem:[%s3 + $0xa88] sm:$0xff]
    %v575 = vld [vmem:[%s3 + $0xa90] sm:$0xff]
    %v576 = vld [vmem:[%s3 + $0xa98] sm:$0xff]
    %v577 = vld [vmem:[%s3 + $0xaa0] sm:$0xff]
    %v578 = vld [vmem:[%s3 + $0xaa8] sm:$0xff]
    %v579 = vld [vmem:[%s3 + $0xab0] sm:$0xff]
    %v580 = vld [vmem:[%s3 + $0xab8] sm:$0xff]
    %v581 = vld [vmem:[%s3 + $0xac0] sm:$0xff]
    %v582 = vld [vmem:[%s3 + $0xac8] sm:$0xff]
    %v583 = vld [vmem:[%s3 + $0xad0] sm:$0xff]
    %v584 = vld [vmem:[%s3 + $0xad8] sm:$0xff]
    %v585 = vld [vmem:[%s3 + $0xae0] sm:$0xff]
    %v586 = vld [vmem:[%s3 + $0xae8] sm:$0xff]
    %v587 = vld [vmem:[%s3 + $0xaf0] sm:$0xff]
    %v588 = vld [vmem:[%s3 + $0xaf8] sm:$0xff]
    %v589 = vld [vmem:[%s3 + $0xb00] sm:$0xff]
    %v590 = vld [vmem:[%s3 + $0xb08] sm:$0xff]
    %v591 = vld [vmem:[%s3 + $0xb10] sm:$0xff]
    %v592 = vld [vmem:[%s3 + $0xb18] sm:$0xff]
    %v593 = vld [vmem:[%s3 + $0xb20] sm:$0xff]
    %v594 = vld [vmem:[%s3 + $0xb28] sm:$0xff]
    %v595 = vld [vmem:[%s3 + $0xb30] sm:$0xff]
    %v596 = vld [vmem:[%s3 + $0xb38] sm:$0xff]
    %v597 = vld [vmem:[%s3 + $0xb40] sm:$0xff]
    %v598 = vld [vmem:[%s3 + $0xb48] sm:$0xff]
    %v599 = vld [vmem:[%s3 + $0xb50] sm:$0xff]
    %v600 = vld [vmem:[%s3 + $0xb58] sm:$0xff]
    %v601 = vld [vmem:[%s3 + $0xb60] sm:$0xff]
    %v602 = vld [vmem:[%s3 + $0xb68] sm:$0xff]
    %v603 = vld [vmem:[%s3 + $0xb70] sm:$0xff]
    %v604 = vld [vmem:[%s3 + $0xb78] sm:$0xff]
    %v605 = vld [vmem:[%s3 + $0xb80] sm:$0xff]
    %v606 = vld [vmem:[%s3 + $0xb88] sm:$0xff]
    %v607 = vld [vmem:[%s3 + $0xb90] sm:$0xff]
    %v608 = vld [vmem:[%s3 + $0xb98] sm:$0xff]
    %v609 = vld [vmem:[%s3 + $0xba0] sm:$0xff]
    %v610 = vld [vmem:[%s3 + $0xba8] sm:$0xff]
    %v611 = vld [vmem:[%s3 + $0xbb0] sm:$0xff]
    %v612 = vld [vmem:[%s3 + $0xbb8] sm:$0xff]
    %v613 = vld [vmem:[%s3 + $0xbc0] sm:$0xff]
    %v614 = vld [vmem:[%s3 + $0xbc8] sm:$0xff]
    %v615 = vld [vmem:[%s3 + $0xbd0] sm:$0xff]
    %v616 = vld [vmem:[%s3 + $0xbd8] sm:$0xff]
    %v617 = vld [vmem:[%s3 + $0xbe0] sm:$0xff]
    %v618 = vld [vmem:[%s3 + $0xbe8] sm:$0xff]
    %v619 = vld [vmem:[%s3 + $0xbf0] sm:$0xff]
    %v620 = vld [vmem:[%s3 + $0xbf8] sm:$0xff]
    %v621 = vld [vmem:[%s3 + $0xc00] sm:$0xff]
    %v622 = vld [vmem:[%s3 + $0xc08] sm:$0xff]
    %v623 = vld [vmem:[%s3 + $0xc10] sm:$0xff]
    %v624 = vld [vmem:[%s3 + $0xc18] sm:$0xff]
    %v625 = vld [vmem:[%s3 + $0xc20] sm:$0xff]
    %v626 = vld [vmem:[%s3 + $0xc28] sm:$0xff]
    %v627 = vld [vmem:[%s3 + $0xc30] sm:$0xff]
    %v628 = vld [vmem:[%s3 + $0xc38] sm:$0xff]
    %v629 = vld [vmem:[%s3 + $0xc40] sm:$0xff]
    %v630 = vld [vmem:[%s3 + $0xc48] sm:$0xff]
    %v631 = vld [vmem:[%s3 + $0xc50] sm:$0xff]
    %v632 = vld [vmem:[%s3 + $0xc58] sm:$0xff]
    %v633 = vld [vmem:[%s3 + $0xc60] sm:$0xff]
    %v634 = vld [vmem:[%s3 + $0xc68] sm:$0xff]
    %v635 = vld [vmem:[%s3 + $0xc70] sm:$0xff]
    %v636 = vld [vmem:[%s3 + $0xc78] sm:$0xff]
    %v637 = vld [vmem:[%s3 + $0xc80] sm:$0xff]
    %v638 = vld [vmem:[%s3 + $0xc88] sm:$0xff]
    %v639 = vld [vmem:[%s3 + $0xc90] sm:$0xff]
    %v640 = vld [vmem:[%s3 + $0xc98] sm:$0xff]
    %v641 = vld [vmem:[%s3 + $0xca0] sm:$0xff]
    %v642 = vld [vmem:[%s3 + $0xca8] sm:$0xff]
    %v643 = vld [vmem:[%s3 + $0xcb0] sm:$0xff]
    %v644 = vld [vmem:[%s3 + $0xcb8] sm:$0xff]
    %v645 = vld [vmem:[%s3 + $0xcc0] sm:$0xff]
    %v646 = vld [vmem:[%s3 + $0xcc8] sm:$0xff]
    %v647 = vld [vmem:[%s3 + $0xcd0] sm:$0xff]
    %v648 = vld [vmem:[%s3 + $0xcd8] sm:$0xff]
    %v649 = vld [vmem:[%s3 + $0xce0] sm:$0xff]
    %v650 = vld [vmem:[%s3 + $0xce8] sm:$0xff]
    %v651 = vld [vmem:[%s3 + $0xcf0] sm:$0xff]
    %v652 = vld [vmem:[%s3 + $0xcf8] sm:$0xff]
    %v653 = vld [vmem:[%s3 + $0xd00] sm:$0xff]
    %v654 = vld [vmem:[%s3 + $0xd08] sm:$0xff]
    %v655 = vld [vmem:[%s3 + $0xd10] sm:$0xff]
    %v656 = vld [vmem:[%s3 + $0xd18] sm:$0xff]
    %v657 = vld [vmem:[%s3 + $0xd20] sm:$0xff]
    %v658 = vld [vmem:[%s3 + $0xd28] sm:$0xff]
    %v659 = vld [vmem:[%s3 + $0xd30] sm:$0xff]
    %v660 = vld [vmem:[%s3 + $0xd38] sm:$0xff]
    %v661 = vld [vmem:[%s3 + $0xd40] sm:$0xff]
    %v662 = vld [vmem:[%s3 + $0xd48] sm:$0xff]
    %v663 = vld [vmem:[%s3 + $0xd50] sm:$0xff]
    %v664 = vld [vmem:[%s3 + $0xd58] sm:$0xff]
    %v665 = vld [vmem:[%s3 + $0xd60] sm:$0xff]
    %v666 = vld [vmem:[%s3 + $0xd68] sm:$0xff]
    %v667 = vld [vmem:[%s3 + $0xd70] sm:$0xff]
    %v668 = vld [vmem:[%s3 + $0xd78] sm:$0xff]
    %v669 = vld [vmem:[%s3 + $0xd80] sm:$0xff]
    %v670 = vld [vmem:[%s3 + $0xd88] sm:$0xff]
    %v671 = vld [vmem:[%s3 + $0xd90] sm:$0xff]
    %v672 = vld [vmem:[%s3 + $0xd98] sm:$0xff]
    %v673 = vld [vmem:[%s3 + $0xda0] sm:$0xff]
    %v674 = vld [vmem:[%s3 + $0xda8] sm:$0xff]
    %v675 = vld [vmem:[%s3 + $0xdb0] sm:$0xff]
    %v676 = vld [vmem:[%s3 + $0xdb8] sm:$0xff]
    %v677 = vld [vmem:[%s3 + $0xdc0] sm:$0xff]
    %v678 = vld [vmem:[%s3 + $0xdc8] sm:$0xff]
    %v679 = vld [vmem:[%s3 + $0xdd0] sm:$0xff]
    %v680 = vld [vmem:[%s3 + $0xdd8] sm:$0xff]
    %v681 = vld [vmem:[%s3 + $0xde0] sm:$0xff]
    %v682 = vld [vmem:[%s3 + $0xde8] sm:$0xff]
    %v683 = vld [vmem:[%s3 + $0xdf0] sm:$0xff]
    %v684 = vld [vmem:[%s3 + $0xdf8] sm:$0xff]
    %v685 = vld [vmem:[%s3 + $0xe00] sm:$0xff]
    %v686 = vld [vmem:[%s3 + $0xe08] sm:$0xff]
    %v687 = vld [vmem:[%s3 + $0xe10] sm:$0xff]
    %v688 = vld [vmem:[%s3 + $0xe18] sm:$0xff]
    %v689 = vld [vmem:[%s3 + $0xe20] sm:$0xff]
    %v690 = vld [vmem:[%s3 + $0xe28] sm:$0xff]
    %v691 = vld [vmem:[%s3 + $0xe30] sm:$0xff]
    %v692 = vld [vmem:[%s3 + $0xe38] sm:$0xff]
    %v693 = vld [vmem:[%s3 + $0xe40] sm:$0xff]
    %v694 = vld [vmem:[%s3 + $0xe48] sm:$0xff]
    %v695 = vld [vmem:[%s3 + $0xe50] sm:$0xff]
    %v696 = vld [vmem:[%s3 + $0xe58] sm:$0xff]
    %v697 = vld [vmem:[%s3 + $0xe60] sm:$0xff]
    %v698 = vld [vmem:[%s3 + $0xe68] sm:$0xff]
    %v699 = vld [vmem:[%s3 + $0xe70] sm:$0xff]
    %v700 = vld [vmem:[%s3 + $0xe78] sm:$0xff]
    %v701 = vld [vmem:[%s3 + $0xe80] sm:$0xff]
    %v702 = vld [vmem:[%s3 + $0xe88] sm:$0xff]
    %v703 = vld [vmem:[%s3 + $0xe90] sm:$0xff]
    %v704 = vld [vmem:[%s3 + $0xe98] sm:$0xff]
    %v705 = vld [vmem:[%s3 + $0xea0] sm:$0xff]
    %v706 = vld [vmem:[%s3 + $0xea8] sm:$0xff]
    %v707 = vld [vmem:[%s3 + $0xeb0] sm:$0xff]
    %v708 = vld [vmem:[%s3 + $0xeb8] sm:$0xff]
    %v709 = vld [vmem:[%s3 + $0xec0] sm:$0xff]
    %v710 = vld [vmem:[%s3 + $0xec8] sm:$0xff]
    %v711 = vld [vmem:[%s3 + $0xed0] sm:$0xff]
    %v712 = vld [vmem:[%s3 + $0xed8] sm:$0xff]
    %v713 = vld [vmem:[%s3 + $0xee0] sm:$0xff]
    %v714 = vld [vmem:[%s3 + $0xee8] sm:$0xff]
    %v715 = vld [vmem:[%s3 + $0xef0] sm:$0xff]
    %v716 = vld [vmem:[%s3 + $0xef8] sm:$0xff]
    %v717 = vld [vmem:[%s3 + $0xf00] sm:$0xff]
    %v718 = vld [vmem:[%s3 + $0xf08] sm:$0xff]
    %v719 = vld [vmem:[%s3 + $0xf10] sm:$0xff]
    %v720 = vld [vmem:[%s3 + $0xf18] sm:$0xff]
    %v721 = vld [vmem:[%s3 + $0xf20] sm:$0xff]
    %v722 = vld [vmem:[%s3 + $0xf28] sm:$0xff]
    %v723 = vld [vmem:[%s3 + $0xf30] sm:$0xff]
    %v724 = vld [vmem:[%s3 + $0xf38] sm:$0xff]
    %v725 = vld [vmem:[%s3 + $0xf40] sm:$0xff]
    %v726 = vld [vmem:[%s3 + $0xf48] sm:$0xff]
    %v727 = vld [vmem:[%s3 + $0xf50] sm:$0xff]
    %v728 = vld [vmem:[%s3 + $0xf58] sm:$0xff]
    %v729 = vld [vmem:[%s3 + $0xf60] sm:$0xff]
    %v730 = vld [vmem:[%s3 + $0xf68] sm:$0xff]
    %v731 = vld [vmem:[%s3 + $0xf70] sm:$0xff]
    %v732 = vld [vmem:[%s3 + $0xf78] sm:$0xff]
    %v733 = vld [vmem:[%s3 + $0xf80] sm:$0xff]
    %v734 = vld [vmem:[%s3 + $0xf88] sm:$0xff]
    %v735 = vld [vmem:[%s3 + $0xf90] sm:$0xff]
    %v736 = vld [vmem:[%s3 + $0xf98] sm:$0xff]
    %v737 = vld [vmem:[%s4] sm:$0xff]
    %v739 = vperm.slane %v737, 0
    %v740 = vperm.slane %v737, 1
    %v741 = vperm.slane %v737, 2
    %v742 = vperm.slane %v737, 3
    %v743 = vperm.slane %v737, 4
    %v744 = vperm.slane %v737, 5
    %v745 = vperm.slane %v737, 6
    %v746 = vperm.slane %v737, 7
    %v1255 = vunpack.c.l.b16 %v237
    %v1256 = vunpack.c.h.b16 %v237
    %v1257 = vunpack.c.l.b16 %v238
    %v1258 = vunpack.c.h.b16 %v238
    %v1259 = vunpack.c.l.b16 %v239
    %v1260 = vunpack.c.h.b16 %v239
    %v1261 = vunpack.c.l.b16 %v240
    %v1262 = vunpack.c.h.b16 %v240
    %v1263 = vunpack.c.l.b16 %v241
    %v1264 = vunpack.c.h.b16 %v241
    %v1265 = vunpack.c.l.b16 %v242
    %v1266 = vunpack.c.h.b16 %v242
    %v1267 = vunpack.c.l.b16 %v243
    %v1268 = vunpack.c.h.b16 %v243
    %v1269 = vunpack.c.l.b16 %v244
    %v1270 = vunpack.c.h.b16 %v244
    %v1271 = vunpack.c.l.b16 %v245
    %v1272 = vunpack.c.h.b16 %v245
    %v1273 = vunpack.c.l.b16 %v246
    %v1274 = vunpack.c.h.b16 %v246
    %v1275 = vunpack.c.l.b16 %v247
    %v1276 = vunpack.c.h.b16 %v247
    %v1277 = vunpack.c.l.b16 %v248
    %v1278 = vunpack.c.h.b16 %v248
    %v1279 = vunpack.c.l.b16 %v249
    %v1280 = vunpack.c.h.b16 %v249
    %v1281 = vunpack.c.l.b16 %v250
    %v1282 = vunpack.c.h.b16 %v250
    %v1283 = vunpack.c.l.b16 %v251
    %v1284 = vunpack.c.h.b16 %v251
    %v1285 = vunpack.c.l.b16 %v252
    %v1286 = vunpack.c.h.b16 %v252
    %v1287 = vunpack.c.l.b16 %v253
    %v1288 = vunpack.c.h.b16 %v253
    %v1289 = vunpack.c.l.b16 %v254
    %v1290 = vunpack.c.h.b16 %v254
    %v1291 = vunpack.c.l.b16 %v255
    %v1292 = vunpack.c.h.b16 %v255
    %v1293 = vunpack.c.l.b16 %v256
    %v1294 = vunpack.c.h.b16 %v256
    %v1295 = vunpack.c.l.b16 %v257
    %v1296 = vunpack.c.h.b16 %v257
    %v1297 = vunpack.c.l.b16 %v258
    %v1298 = vunpack.c.h.b16 %v258
    %v1299 = vunpack.c.l.b16 %v259
    %v1300 = vunpack.c.h.b16 %v259
    %v1301 = vunpack.c.l.b16 %v260
    %v1302 = vunpack.c.h.b16 %v260
    %v1303 = vunpack.c.l.b16 %v261
    %v1304 = vunpack.c.h.b16 %v261
    %v1305 = vunpack.c.l.b16 %v262
    %v1306 = vunpack.c.h.b16 %v262
    %v1307 = vunpack.c.l.b16 %v263
    %v1308 = vunpack.c.h.b16 %v263
    %v1309 = vunpack.c.l.b16 %v264
    %v1310 = vunpack.c.h.b16 %v264
    %v1311 = vunpack.c.l.b16 %v265
    %v1312 = vunpack.c.h.b16 %v265
    %v1313 = vunpack.c.l.b16 %v266
    %v1314 = vunpack.c.h.b16 %v266
    %v1315 = vunpack.c.l.b16 %v267
    %v1316 = vunpack.c.h.b16 %v267
    %v1317 = vunpack.c.l.b16 %v268
    %v1318 = vunpack.c.h.b16 %v268
    %v1319 = vunpack.c.l.b16 %v269
    %v1320 = vunpack.c.h.b16 %v269
    %v1321 = vunpack.c.l.b16 %v270
    %v1322 = vunpack.c.h.b16 %v270
    %v1323 = vunpack.c.l.b16 %v271
    %v1324 = vunpack.c.h.b16 %v271
    %v1325 = vunpack.c.l.b16 %v272
    %v1326 = vunpack.c.h.b16 %v272
    %v1327 = vunpack.c.l.b16 %v273
    %v1328 = vunpack.c.h.b16 %v273
    %v1329 = vunpack.c.l.b16 %v274
    %v1330 = vunpack.c.h.b16 %v274
    %v1331 = vunpack.c.l.b16 %v275
    %v1332 = vunpack.c.h.b16 %v275
    %v1333 = vunpack.c.l.b16 %v276
    %v1334 = vunpack.c.h.b16 %v276
    %v1335 = vunpack.c.l.b16 %v277
    %v1336 = vunpack.c.h.b16 %v277
    %v1337 = vunpack.c.l.b16 %v278
    %v1338 = vunpack.c.h.b16 %v278
    %v1339 = vunpack.c.l.b16 %v279
    %v1340 = vunpack.c.h.b16 %v279
    %v1341 = vunpack.c.l.b16 %v280
    %v1342 = vunpack.c.h.b16 %v280
    %v1343 = vunpack.c.l.b16 %v281
    %v1344 = vunpack.c.h.b16 %v281
    %v1345 = vunpack.c.l.b16 %v282
    %v1346 = vunpack.c.h.b16 %v282
    %v1347 = vunpack.c.l.b16 %v283
    %v1348 = vunpack.c.h.b16 %v283
    %v1349 = vunpack.c.l.b16 %v284
    %v1350 = vunpack.c.h.b16 %v284
    %v1351 = vunpack.c.l.b16 %v285
    %v1352 = vunpack.c.h.b16 %v285
    %v1353 = vunpack.c.l.b16 %v286
    %v1354 = vunpack.c.h.b16 %v286
    %v1355 = vunpack.c.l.b16 %v287
    %v1356 = vunpack.c.h.b16 %v287
    %v1357 = vunpack.c.l.b16 %v288
    %v1358 = vunpack.c.h.b16 %v288
    %v1359 = vunpack.c.l.b16 %v289
    %v1360 = vunpack.c.h.b16 %v289
    %v1361 = vunpack.c.l.b16 %v290
    %v1362 = vunpack.c.h.b16 %v290
    %v1363 = vunpack.c.l.b16 %v291
    %v1364 = vunpack.c.h.b16 %v291
    %v1365 = vunpack.c.l.b16 %v292
    %v1366 = vunpack.c.h.b16 %v292
    %v1367 = vunpack.c.l.b16 %v293
    %v1368 = vunpack.c.h.b16 %v293
    %v1369 = vunpack.c.l.b16 %v294
    %v1370 = vunpack.c.h.b16 %v294
    %v1371 = vunpack.c.l.b16 %v295
    %v1372 = vunpack.c.h.b16 %v295
    %v1373 = vunpack.c.l.b16 %v296
    %v1374 = vunpack.c.h.b16 %v296
    %v1375 = vunpack.c.l.b16 %v297
    %v1376 = vunpack.c.h.b16 %v297
    %v1377 = vunpack.c.l.b16 %v298
    %v1378 = vunpack.c.h.b16 %v298
    %v1379 = vunpack.c.l.b16 %v299
    %v1380 = vunpack.c.h.b16 %v299
    %v1381 = vunpack.c.l.b16 %v300
    %v1382 = vunpack.c.h.b16 %v300
    %v1383 = vunpack.c.l.b16 %v301
    %v1384 = vunpack.c.h.b16 %v301
    %v1385 = vunpack.c.l.b16 %v302
    %v1386 = vunpack.c.h.b16 %v302
    %v1387 = vunpack.c.l.b16 %v303
    %v1388 = vunpack.c.h.b16 %v303
    %v1389 = vunpack.c.l.b16 %v304
    %v1390 = vunpack.c.h.b16 %v304
    %v1391 = vunpack.c.l.b16 %v305
    %v1392 = vunpack.c.h.b16 %v305
    %v1393 = vunpack.c.l.b16 %v306
    %v1394 = vunpack.c.h.b16 %v306
    %v1395 = vunpack.c.l.b16 %v307
    %v1396 = vunpack.c.h.b16 %v307
    %v1397 = vunpack.c.l.b16 %v308
    %v1398 = vunpack.c.h.b16 %v308
    %v1399 = vunpack.c.l.b16 %v309
    %v1400 = vunpack.c.h.b16 %v309
    %v1401 = vunpack.c.l.b16 %v310
    %v1402 = vunpack.c.h.b16 %v310
    %v1403 = vunpack.c.l.b16 %v311
    %v1404 = vunpack.c.h.b16 %v311
    %v1405 = vunpack.c.l.b16 %v312
    %v1406 = vunpack.c.h.b16 %v312
    %v1407 = vunpack.c.l.b16 %v313
    %v1408 = vunpack.c.h.b16 %v313
    %v1409 = vunpack.c.l.b16 %v314
    %v1410 = vunpack.c.h.b16 %v314
    %v1411 = vunpack.c.l.b16 %v315
    %v1412 = vunpack.c.h.b16 %v315
    %v1413 = vunpack.c.l.b16 %v316
    %v1414 = vunpack.c.h.b16 %v316
    %v1415 = vunpack.c.l.b16 %v317
    %v1416 = vunpack.c.h.b16 %v317
    %v1417 = vunpack.c.l.b16 %v318
    %v1418 = vunpack.c.h.b16 %v318
    %v1419 = vunpack.c.l.b16 %v319
    %v1420 = vunpack.c.h.b16 %v319
    %v1421 = vunpack.c.l.b16 %v320
    %v1422 = vunpack.c.h.b16 %v320
    %v1423 = vunpack.c.l.b16 %v321
    %v1424 = vunpack.c.h.b16 %v321
    %v1425 = vunpack.c.l.b16 %v322
    %v1426 = vunpack.c.h.b16 %v322
    %v1427 = vunpack.c.l.b16 %v323
    %v1428 = vunpack.c.h.b16 %v323
    %v1429 = vunpack.c.l.b16 %v324
    %v1430 = vunpack.c.h.b16 %v324
    %v1431 = vunpack.c.l.b16 %v325
    %v1432 = vunpack.c.h.b16 %v325
    %v1433 = vunpack.c.l.b16 %v326
    %v1434 = vunpack.c.h.b16 %v326
    %v1435 = vunpack.c.l.b16 %v327
    %v1436 = vunpack.c.h.b16 %v327
    %v1437 = vunpack.c.l.b16 %v328
    %v1438 = vunpack.c.h.b16 %v328
    %v1439 = vunpack.c.l.b16 %v329
    %v1440 = vunpack.c.h.b16 %v329
    %v1441 = vunpack.c.l.b16 %v330
    %v1442 = vunpack.c.h.b16 %v330
    %v1443 = vunpack.c.l.b16 %v331
    %v1444 = vunpack.c.h.b16 %v331
    %v1445 = vunpack.c.l.b16 %v332
    %v1446 = vunpack.c.h.b16 %v332
    %v1447 = vunpack.c.l.b16 %v333
    %v1448 = vunpack.c.h.b16 %v333
    %v1449 = vunpack.c.l.b16 %v334
    %v1450 = vunpack.c.h.b16 %v334
    %v1451 = vunpack.c.l.b16 %v335
    %v1452 = vunpack.c.h.b16 %v335
    %v1453 = vunpack.c.l.b16 %v336
    %v1454 = vunpack.c.h.b16 %v336
    %v1455 = vunpack.c.l.b16 %v337
    %v1456 = vunpack.c.h.b16 %v337
    %v1457 = vunpack.c.l.b16 %v338
    %v1458 = vunpack.c.h.b16 %v338
    %v1459 = vunpack.c.l.b16 %v339
    %v1460 = vunpack.c.h.b16 %v339
    %v1461 = vunpack.c.l.b16 %v340
    %v1462 = vunpack.c.h.b16 %v340
    %v1463 = vunpack.c.l.b16 %v341
    %v1464 = vunpack.c.h.b16 %v341
    %v1465 = vunpack.c.l.b16 %v342
    %v1466 = vunpack.c.h.b16 %v342
    %v1467 = vunpack.c.l.b16 %v343
    %v1468 = vunpack.c.h.b16 %v343
    %v1469 = vunpack.c.l.b16 %v344
    %v1470 = vunpack.c.h.b16 %v344
    %v1471 = vunpack.c.l.b16 %v345
    %v1472 = vunpack.c.h.b16 %v345
    %v1473 = vunpack.c.l.b16 %v346
    %v1474 = vunpack.c.h.b16 %v346
    %v1475 = vunpack.c.l.b16 %v347
    %v1476 = vunpack.c.h.b16 %v347
    %v1477 = vunpack.c.l.b16 %v348
    %v1478 = vunpack.c.h.b16 %v348
    %v1479 = vunpack.c.l.b16 %v349
    %v1480 = vunpack.c.h.b16 %v349
    %v1481 = vunpack.c.l.b16 %v350
    %v1482 = vunpack.c.h.b16 %v350
    %v1483 = vunpack.c.l.b16 %v351
    %v1484 = vunpack.c.h.b16 %v351
    %v1485 = vunpack.c.l.b16 %v352
    %v1486 = vunpack.c.h.b16 %v352
    %v1487 = vunpack.c.l.b16 %v353
    %v1488 = vunpack.c.h.b16 %v353
    %v1489 = vunpack.c.l.b16 %v354
    %v1490 = vunpack.c.h.b16 %v354
    %v1491 = vunpack.c.l.b16 %v355
    %v1492 = vunpack.c.h.b16 %v355
    %v1493 = vunpack.c.l.b16 %v356
    %v1494 = vunpack.c.h.b16 %v356
    %v1495 = vunpack.c.l.b16 %v357
    %v1496 = vunpack.c.h.b16 %v357
    %v1497 = vunpack.c.l.b16 %v358
    %v1498 = vunpack.c.h.b16 %v358
    %v1499 = vunpack.c.l.b16 %v359
    %v1500 = vunpack.c.h.b16 %v359
    %v1501 = vunpack.c.l.b16 %v360
    %v1502 = vunpack.c.h.b16 %v360
    %v1503 = vunpack.c.l.b16 %v361
    %v1504 = vunpack.c.h.b16 %v361
    %v1505 = vunpack.c.l.b16 %v362
    %v1506 = vunpack.c.h.b16 %v362
    %v1507 = vunpack.c.l.b16 %v363
    %v1508 = vunpack.c.h.b16 %v363
    %v1509 = vunpack.c.l.b16 %v364
    %v1510 = vunpack.c.h.b16 %v364
    %v1511 = vunpack.c.l.b16 %v365
    %v1512 = vunpack.c.h.b16 %v365
    %v1513 = vunpack.c.l.b16 %v366
    %v1514 = vunpack.c.h.b16 %v366
    %v1515 = vunpack.c.l.b16 %v367
    %v1516 = vunpack.c.h.b16 %v367
    %v1517 = vunpack.c.l.b16 %v368
    %v1518 = vunpack.c.h.b16 %v368
    %v1519 = vunpack.c.l.b16 %v369
    %v1520 = vunpack.c.h.b16 %v369
    %v1521 = vunpack.c.l.b16 %v370
    %v1522 = vunpack.c.h.b16 %v370
    %v1523 = vunpack.c.l.b16 %v371
    %v1524 = vunpack.c.h.b16 %v371
    %v1525 = vunpack.c.l.b16 %v372
    %v1526 = vunpack.c.h.b16 %v372
    %v1527 = vunpack.c.l.b16 %v373
    %v1528 = vunpack.c.h.b16 %v373
    %v1529 = vunpack.c.l.b16 %v374
    %v1530 = vunpack.c.h.b16 %v374
    %v1531 = vunpack.c.l.b16 %v375
    %v1532 = vunpack.c.h.b16 %v375
    %v1533 = vunpack.c.l.b16 %v376
    %v1534 = vunpack.c.h.b16 %v376
    %v1535 = vunpack.c.l.b16 %v377
    %v1536 = vunpack.c.h.b16 %v377
    %v1537 = vunpack.c.l.b16 %v378
    %v1538 = vunpack.c.h.b16 %v378
    %v1539 = vunpack.c.l.b16 %v379
    %v1540 = vunpack.c.h.b16 %v379
    %v1541 = vunpack.c.l.b16 %v380
    %v1542 = vunpack.c.h.b16 %v380
    %v1543 = vunpack.c.l.b16 %v381
    %v1544 = vunpack.c.h.b16 %v381
    %v1545 = vunpack.c.l.b16 %v382
    %v1546 = vunpack.c.h.b16 %v382
    %v1547 = vunpack.c.l.b16 %v383
    %v1548 = vunpack.c.h.b16 %v383
    %v1549 = vunpack.c.l.b16 %v384
    %v1550 = vunpack.c.h.b16 %v384
    %v1551 = vunpack.c.l.b16 %v385
    %v1552 = vunpack.c.h.b16 %v385
    %v1553 = vunpack.c.l.b16 %v386
    %v1554 = vunpack.c.h.b16 %v386
    %v1555 = vunpack.c.l.b16 %v387
    %v1556 = vunpack.c.h.b16 %v387
    %v1557 = vunpack.c.l.b16 %v388
    %v1558 = vunpack.c.h.b16 %v388
    %v1559 = vunpack.c.l.b16 %v389
    %v1560 = vunpack.c.h.b16 %v389
    %v1561 = vunpack.c.l.b16 %v390
    %v1562 = vunpack.c.h.b16 %v390
    %v1563 = vunpack.c.l.b16 %v391
    %v1564 = vunpack.c.h.b16 %v391
    %v1565 = vunpack.c.l.b16 %v392
    %v1566 = vunpack.c.h.b16 %v392
    %v1567 = vunpack.c.l.b16 %v393
    %v1568 = vunpack.c.h.b16 %v393
    %v1569 = vunpack.c.l.b16 %v394
    %v1570 = vunpack.c.h.b16 %v394
    %v1571 = vunpack.c.l.b16 %v395
    %v1572 = vunpack.c.h.b16 %v395
    %v1573 = vunpack.c.l.b16 %v396
    %v1574 = vunpack.c.h.b16 %v396
    %v1575 = vunpack.c.l.b16 %v397
    %v1576 = vunpack.c.h.b16 %v397
    %v1577 = vunpack.c.l.b16 %v398
    %v1578 = vunpack.c.h.b16 %v398
    %v1579 = vunpack.c.l.b16 %v399
    %v1580 = vunpack.c.h.b16 %v399
    %v1581 = vunpack.c.l.b16 %v400
    %v1582 = vunpack.c.h.b16 %v400
    %v1583 = vunpack.c.l.b16 %v401
    %v1584 = vunpack.c.h.b16 %v401
    %v1585 = vunpack.c.l.b16 %v402
    %v1586 = vunpack.c.h.b16 %v402
    %v1587 = vunpack.c.l.b16 %v403
    %v1588 = vunpack.c.h.b16 %v403
    %v1589 = vunpack.c.l.b16 %v404
    %v1590 = vunpack.c.h.b16 %v404
    %v1591 = vunpack.c.l.b16 %v405
    %v1592 = vunpack.c.h.b16 %v405
    %v1593 = vunpack.c.l.b16 %v406
    %v1594 = vunpack.c.h.b16 %v406
    %v1595 = vunpack.c.l.b16 %v407
    %v1596 = vunpack.c.h.b16 %v407
    %v1597 = vunpack.c.l.b16 %v408
    %v1598 = vunpack.c.h.b16 %v408
    %v1599 = vunpack.c.l.b16 %v409
    %v1600 = vunpack.c.h.b16 %v409
    %v1601 = vunpack.c.l.b16 %v410
    %v1602 = vunpack.c.h.b16 %v410
    %v1603 = vunpack.c.l.b16 %v411
    %v1604 = vunpack.c.h.b16 %v411
    %v1605 = vunpack.c.l.b16 %v412
    %v1606 = vunpack.c.h.b16 %v412
    %v1607 = vunpack.c.l.b16 %v413
    %v1608 = vunpack.c.h.b16 %v413
    %v1609 = vunpack.c.l.b16 %v414
    %v1610 = vunpack.c.h.b16 %v414
    %v1611 = vunpack.c.l.b16 %v415
    %v1612 = vunpack.c.h.b16 %v415
    %v1613 = vunpack.c.l.b16 %v416
    %v1614 = vunpack.c.h.b16 %v416
    %v1615 = vunpack.c.l.b16 %v417
    %v1616 = vunpack.c.h.b16 %v417
    %v1617 = vunpack.c.l.b16 %v418
    %v1618 = vunpack.c.h.b16 %v418
    %v1619 = vunpack.c.l.b16 %v419
    %v1620 = vunpack.c.h.b16 %v419
    %v1621 = vunpack.c.l.b16 %v420
    %v1622 = vunpack.c.h.b16 %v420
    %v1623 = vunpack.c.l.b16 %v421
    %v1624 = vunpack.c.h.b16 %v421
    %v1625 = vunpack.c.l.b16 %v422
    %v1626 = vunpack.c.h.b16 %v422
    %v1627 = vunpack.c.l.b16 %v423
    %v1628 = vunpack.c.h.b16 %v423
    %v1629 = vunpack.c.l.b16 %v424
    %v1630 = vunpack.c.h.b16 %v424
    %v1631 = vunpack.c.l.b16 %v425
    %v1632 = vunpack.c.h.b16 %v425
    %v1633 = vunpack.c.l.b16 %v426
    %v1634 = vunpack.c.h.b16 %v426
    %v1635 = vunpack.c.l.b16 %v427
    %v1636 = vunpack.c.h.b16 %v427
    %v1637 = vunpack.c.l.b16 %v428
    %v1638 = vunpack.c.h.b16 %v428
    %v1639 = vunpack.c.l.b16 %v429
    %v1640 = vunpack.c.h.b16 %v429
    %v1641 = vunpack.c.l.b16 %v430
    %v1642 = vunpack.c.h.b16 %v430
    %v1643 = vunpack.c.l.b16 %v431
    %v1644 = vunpack.c.h.b16 %v431
    %v1645 = vunpack.c.l.b16 %v432
    %v1646 = vunpack.c.h.b16 %v432
    %v1647 = vunpack.c.l.b16 %v433
    %v1648 = vunpack.c.h.b16 %v433
    %v1649 = vunpack.c.l.b16 %v434
    %v1650 = vunpack.c.h.b16 %v434
    %v1651 = vunpack.c.l.b16 %v435
    %v1652 = vunpack.c.h.b16 %v435
    %v1653 = vunpack.c.l.b16 %v436
    %v1654 = vunpack.c.h.b16 %v436
    %v1655 = vunpack.c.l.b16 %v437
    %v1656 = vunpack.c.h.b16 %v437
    %v1657 = vunpack.c.l.b16 %v438
    %v1658 = vunpack.c.h.b16 %v438
    %v1659 = vunpack.c.l.b16 %v439
    %v1660 = vunpack.c.h.b16 %v439
    %v1661 = vunpack.c.l.b16 %v440
    %v1662 = vunpack.c.h.b16 %v440
    %v1663 = vunpack.c.l.b16 %v441
    %v1664 = vunpack.c.h.b16 %v441
    %v1665 = vunpack.c.l.b16 %v442
    %v1666 = vunpack.c.h.b16 %v442
    %v1667 = vunpack.c.l.b16 %v443
    %v1668 = vunpack.c.h.b16 %v443
    %v1669 = vunpack.c.l.b16 %v444
    %v1670 = vunpack.c.h.b16 %v444
    %v1671 = vunpack.c.l.b16 %v445
    %v1672 = vunpack.c.h.b16 %v445
    %v1673 = vunpack.c.l.b16 %v446
    %v1674 = vunpack.c.h.b16 %v446
    %v1675 = vunpack.c.l.b16 %v447
    %v1676 = vunpack.c.h.b16 %v447
    %v1677 = vunpack.c.l.b16 %v448
    %v1678 = vunpack.c.h.b16 %v448
    %v1679 = vunpack.c.l.b16 %v449
    %v1680 = vunpack.c.h.b16 %v449
    %v1681 = vunpack.c.l.b16 %v450
    %v1682 = vunpack.c.h.b16 %v450
    %v1683 = vunpack.c.l.b16 %v451
    %v1684 = vunpack.c.h.b16 %v451
    %v1685 = vunpack.c.l.b16 %v452
    %v1686 = vunpack.c.h.b16 %v452
    %v1687 = vunpack.c.l.b16 %v453
    %v1688 = vunpack.c.h.b16 %v453
    %v1689 = vunpack.c.l.b16 %v454
    %v1690 = vunpack.c.h.b16 %v454
    %v1691 = vunpack.c.l.b16 %v455
    %v1692 = vunpack.c.h.b16 %v455
    %v1693 = vunpack.c.l.b16 %v456
    %v1694 = vunpack.c.h.b16 %v456
    %v1695 = vunpack.c.l.b16 %v457
    %v1696 = vunpack.c.h.b16 %v457
    %v1697 = vunpack.c.l.b16 %v458
    %v1698 = vunpack.c.h.b16 %v458
    %v1699 = vunpack.c.l.b16 %v459
    %v1700 = vunpack.c.h.b16 %v459
    %v1701 = vunpack.c.l.b16 %v460
    %v1702 = vunpack.c.h.b16 %v460
    %v1703 = vunpack.c.l.b16 %v461
    %v1704 = vunpack.c.h.b16 %v461
    %v1705 = vunpack.c.l.b16 %v462
    %v1706 = vunpack.c.h.b16 %v462
    %v1707 = vunpack.c.l.b16 %v463
    %v1708 = vunpack.c.h.b16 %v463
    %v1709 = vunpack.c.l.b16 %v464
    %v1710 = vunpack.c.h.b16 %v464
    %v1711 = vunpack.c.l.b16 %v465
    %v1712 = vunpack.c.h.b16 %v465
    %v1713 = vunpack.c.l.b16 %v466
    %v1714 = vunpack.c.h.b16 %v466
    %v1715 = vunpack.c.l.b16 %v467
    %v1716 = vunpack.c.h.b16 %v467
    %v1717 = vunpack.c.l.b16 %v468
    %v1718 = vunpack.c.h.b16 %v468
    %v1719 = vunpack.c.l.b16 %v469
    %v1720 = vunpack.c.h.b16 %v469
    %v1721 = vunpack.c.l.b16 %v470
    %v1722 = vunpack.c.h.b16 %v470
    %v1723 = vunpack.c.l.b16 %v471
    %v1724 = vunpack.c.h.b16 %v471
    %v1725 = vunpack.c.l.b16 %v472
    %v1726 = vunpack.c.h.b16 %v472
    %v1727 = vunpack.c.l.b16 %v473
    %v1728 = vunpack.c.h.b16 %v473
    %v1729 = vunpack.c.l.b16 %v474
    %v1730 = vunpack.c.h.b16 %v474
    %v1731 = vunpack.c.l.b16 %v475
    %v1732 = vunpack.c.h.b16 %v475
    %v1733 = vunpack.c.l.b16 %v476
    %v1734 = vunpack.c.h.b16 %v476
    %v1735 = vunpack.c.l.b16 %v477
    %v1736 = vunpack.c.h.b16 %v477
    %v1737 = vunpack.c.l.b16 %v478
    %v1738 = vunpack.c.h.b16 %v478
    %v1739 = vunpack.c.l.b16 %v479
    %v1740 = vunpack.c.h.b16 %v479
    %v1741 = vunpack.c.l.b16 %v480
    %v1742 = vunpack.c.h.b16 %v480
    %v1743 = vunpack.c.l.b16 %v481
    %v1744 = vunpack.c.h.b16 %v481
    %v1745 = vunpack.c.l.b16 %v482
    %v1746 = vunpack.c.h.b16 %v482
    %v1747 = vunpack.c.l.b16 %v483
    %v1748 = vunpack.c.h.b16 %v483
    %v1749 = vunpack.c.l.b16 %v484
    %v1750 = vunpack.c.h.b16 %v484
    %v1751 = vunpack.c.l.b16 %v485
    %v1752 = vunpack.c.h.b16 %v485
    %v1753 = vunpack.c.l.b16 %v486
    %v1754 = vunpack.c.h.b16 %v486
    %v1755 = vunpack.c.l.b16 %v487
    %v1756 = vunpack.c.h.b16 %v487
    %v1757 = vunpack.c.l.b16 %v488
    %v1758 = vunpack.c.h.b16 %v488
    %v1759 = vunpack.c.l.b16 %v489
    %v1760 = vunpack.c.h.b16 %v489
    %v1761 = vunpack.c.l.b16 %v490
    %v1762 = vunpack.c.h.b16 %v490
    %v1763 = vunpack.c.l.b16 %v491
    %v1764 = vunpack.c.h.b16 %v491
    %v1765 = vunpack.c.l.b16 %v492
    %v1766 = vunpack.c.h.b16 %v492
    %v1767 = vunpack.c.l.b16 %v493
    %v1768 = vunpack.c.h.b16 %v493
    %v1769 = vunpack.c.l.b16 %v494
    %v1770 = vunpack.c.h.b16 %v494
    %v1771 = vunpack.c.l.b16 %v495
    %v1772 = vunpack.c.h.b16 %v495
    %v1773 = vunpack.c.l.b16 %v496
    %v1774 = vunpack.c.h.b16 %v496
    %v1775 = vunpack.c.l.b16 %v497
    %v1776 = vunpack.c.h.b16 %v497
    %v1777 = vunpack.c.l.b16 %v498
    %v1778 = vunpack.c.h.b16 %v498
    %v1779 = vunpack.c.l.b16 %v499
    %v1780 = vunpack.c.h.b16 %v499
    %v1781 = vunpack.c.l.b16 %v500
    %v1782 = vunpack.c.h.b16 %v500
    %v1783 = vunpack.c.l.b16 %v501
    %v1784 = vunpack.c.h.b16 %v501
    %v1785 = vunpack.c.l.b16 %v502
    %v1786 = vunpack.c.h.b16 %v502
    %v1787 = vunpack.c.l.b16 %v503
    %v1788 = vunpack.c.h.b16 %v503
    %v1789 = vunpack.c.l.b16 %v504
    %v1790 = vunpack.c.h.b16 %v504
    %v1791 = vunpack.c.l.b16 %v505
    %v1792 = vunpack.c.h.b16 %v505
    %v1793 = vunpack.c.l.b16 %v506
    %v1794 = vunpack.c.h.b16 %v506
    %v1795 = vunpack.c.l.b16 %v507
    %v1796 = vunpack.c.h.b16 %v507
    %v1797 = vunpack.c.l.b16 %v508
    %v1798 = vunpack.c.h.b16 %v508
    %v1799 = vunpack.c.l.b16 %v509
    %v1800 = vunpack.c.h.b16 %v509
    %v1801 = vunpack.c.l.b16 %v510
    %v1802 = vunpack.c.h.b16 %v510
    %v1803 = vunpack.c.l.b16 %v511
    %v1804 = vunpack.c.h.b16 %v511
    %v1805 = vunpack.c.l.b16 %v512
    %v1806 = vunpack.c.h.b16 %v512
    %v1807 = vunpack.c.l.b16 %v513
    %v1808 = vunpack.c.h.b16 %v513
    %v1809 = vunpack.c.l.b16 %v514
    %v1810 = vunpack.c.h.b16 %v514
    %v1811 = vunpack.c.l.b16 %v515
    %v1812 = vunpack.c.h.b16 %v515
    %v1813 = vunpack.c.l.b16 %v516
    %v1814 = vunpack.c.h.b16 %v516
    %v1815 = vunpack.c.l.b16 %v517
    %v1816 = vunpack.c.h.b16 %v517
    %v1817 = vunpack.c.l.b16 %v518
    %v1818 = vunpack.c.h.b16 %v518
    %v1819 = vunpack.c.l.b16 %v519
    %v1820 = vunpack.c.h.b16 %v519
    %v1821 = vunpack.c.l.b16 %v520
    %v1822 = vunpack.c.h.b16 %v520
    %v1823 = vunpack.c.l.b16 %v521
    %v1824 = vunpack.c.h.b16 %v521
    %v1825 = vunpack.c.l.b16 %v522
    %v1826 = vunpack.c.h.b16 %v522
    %v1827 = vunpack.c.l.b16 %v523
    %v1828 = vunpack.c.h.b16 %v523
    %v1829 = vunpack.c.l.b16 %v524
    %v1830 = vunpack.c.h.b16 %v524
    %v1831 = vunpack.c.l.b16 %v525
    %v1832 = vunpack.c.h.b16 %v525
    %v1833 = vunpack.c.l.b16 %v526
    %v1834 = vunpack.c.h.b16 %v526
    %v1835 = vunpack.c.l.b16 %v527
    %v1836 = vunpack.c.h.b16 %v527
    %v1837 = vunpack.c.l.b16 %v528
    %v1838 = vunpack.c.h.b16 %v528
    %v1839 = vunpack.c.l.b16 %v529
    %v1840 = vunpack.c.h.b16 %v529
    %v1841 = vunpack.c.l.b16 %v530
    %v1842 = vunpack.c.h.b16 %v530
    %v1843 = vunpack.c.l.b16 %v531
    %v1844 = vunpack.c.h.b16 %v531
    %v1845 = vunpack.c.l.b16 %v532
    %v1846 = vunpack.c.h.b16 %v532
    %v1847 = vunpack.c.l.b16 %v533
    %v1848 = vunpack.c.h.b16 %v533
    %v1849 = vunpack.c.l.b16 %v534
    %v1850 = vunpack.c.h.b16 %v534
    %v1851 = vunpack.c.l.b16 %v535
    %v1852 = vunpack.c.h.b16 %v535
    %v1853 = vunpack.c.l.b16 %v536
    %v1854 = vunpack.c.h.b16 %v536
    %v1855 = vunpack.c.l.b16 %v537
    %v1856 = vunpack.c.h.b16 %v537
    %v1857 = vunpack.c.l.b16 %v538
    %v1858 = vunpack.c.h.b16 %v538
    %v1859 = vunpack.c.l.b16 %v539
    %v1860 = vunpack.c.h.b16 %v539
    %v1861 = vunpack.c.l.b16 %v540
    %v1862 = vunpack.c.h.b16 %v540
    %v1863 = vunpack.c.l.b16 %v541
    %v1864 = vunpack.c.h.b16 %v541
    %v1865 = vunpack.c.l.b16 %v542
    %v1866 = vunpack.c.h.b16 %v542
    %v1867 = vunpack.c.l.b16 %v543
    %v1868 = vunpack.c.h.b16 %v543
    %v1869 = vunpack.c.l.b16 %v544
    %v1870 = vunpack.c.h.b16 %v544
    %v1871 = vunpack.c.l.b16 %v545
    %v1872 = vunpack.c.h.b16 %v545
    %v1873 = vunpack.c.l.b16 %v546
    %v1874 = vunpack.c.h.b16 %v546
    %v1875 = vunpack.c.l.b16 %v547
    %v1876 = vunpack.c.h.b16 %v547
    %v1877 = vunpack.c.l.b16 %v548
    %v1878 = vunpack.c.h.b16 %v548
    %v1879 = vunpack.c.l.b16 %v549
    %v1880 = vunpack.c.h.b16 %v549
    %v1881 = vunpack.c.l.b16 %v550
    %v1882 = vunpack.c.h.b16 %v550
    %v1883 = vunpack.c.l.b16 %v551
    %v1884 = vunpack.c.h.b16 %v551
    %v1885 = vunpack.c.l.b16 %v552
    %v1886 = vunpack.c.h.b16 %v552
    %v1887 = vunpack.c.l.b16 %v553
    %v1888 = vunpack.c.h.b16 %v553
    %v1889 = vunpack.c.l.b16 %v554
    %v1890 = vunpack.c.h.b16 %v554
    %v1891 = vunpack.c.l.b16 %v555
    %v1892 = vunpack.c.h.b16 %v555
    %v1893 = vunpack.c.l.b16 %v556
    %v1894 = vunpack.c.h.b16 %v556
    %v1895 = vunpack.c.l.b16 %v557
    %v1896 = vunpack.c.h.b16 %v557
    %v1897 = vunpack.c.l.b16 %v558
    %v1898 = vunpack.c.h.b16 %v558
    %v1899 = vunpack.c.l.b16 %v559
    %v1900 = vunpack.c.h.b16 %v559
    %v1901 = vunpack.c.l.b16 %v560
    %v1902 = vunpack.c.h.b16 %v560
    %v1903 = vunpack.c.l.b16 %v561
    %v1904 = vunpack.c.h.b16 %v561
    %v1905 = vunpack.c.l.b16 %v562
    %v1906 = vunpack.c.h.b16 %v562
    %v1907 = vunpack.c.l.b16 %v563
    %v1908 = vunpack.c.h.b16 %v563
    %v1909 = vunpack.c.l.b16 %v564
    %v1910 = vunpack.c.h.b16 %v564
    %v1911 = vunpack.c.l.b16 %v565
    %v1912 = vunpack.c.h.b16 %v565
    %v1913 = vunpack.c.l.b16 %v566
    %v1914 = vunpack.c.h.b16 %v566
    %v1915 = vunpack.c.l.b16 %v567
    %v1916 = vunpack.c.h.b16 %v567
    %v1917 = vunpack.c.l.b16 %v568
    %v1918 = vunpack.c.h.b16 %v568
    %v1919 = vunpack.c.l.b16 %v569
    %v1920 = vunpack.c.h.b16 %v569
    %v1921 = vunpack.c.l.b16 %v570
    %v1922 = vunpack.c.h.b16 %v570
    %v1923 = vunpack.c.l.b16 %v571
    %v1924 = vunpack.c.h.b16 %v571
    %v1925 = vunpack.c.l.b16 %v572
    %v1926 = vunpack.c.h.b16 %v572
    %v1927 = vunpack.c.l.b16 %v573
    %v1928 = vunpack.c.h.b16 %v573
    %v1929 = vunpack.c.l.b16 %v574
    %v1930 = vunpack.c.h.b16 %v574
    %v1931 = vunpack.c.l.b16 %v575
    %v1932 = vunpack.c.h.b16 %v575
    %v1933 = vunpack.c.l.b16 %v576
    %v1934 = vunpack.c.h.b16 %v576
    %v1935 = vunpack.c.l.b16 %v577
    %v1936 = vunpack.c.h.b16 %v577
    %v1937 = vunpack.c.l.b16 %v578
    %v1938 = vunpack.c.h.b16 %v578
    %v1939 = vunpack.c.l.b16 %v579
    %v1940 = vunpack.c.h.b16 %v579
    %v1941 = vunpack.c.l.b16 %v580
    %v1942 = vunpack.c.h.b16 %v580
    %v1943 = vunpack.c.l.b16 %v581
    %v1944 = vunpack.c.h.b16 %v581
    %v1945 = vunpack.c.l.b16 %v582
    %v1946 = vunpack.c.h.b16 %v582
    %v1947 = vunpack.c.l.b16 %v583
    %v1948 = vunpack.c.h.b16 %v583
    %v1949 = vunpack.c.l.b16 %v584
    %v1950 = vunpack.c.h.b16 %v584
    %v1951 = vunpack.c.l.b16 %v585
    %v1952 = vunpack.c.h.b16 %v585
    %v1953 = vunpack.c.l.b16 %v586
    %v1954 = vunpack.c.h.b16 %v586
    %v1955 = vunpack.c.l.b16 %v587
    %v1956 = vunpack.c.h.b16 %v587
    %v1957 = vunpack.c.l.b16 %v588
    %v1958 = vunpack.c.h.b16 %v588
    %v1959 = vunpack.c.l.b16 %v589
    %v1960 = vunpack.c.h.b16 %v589
    %v1961 = vunpack.c.l.b16 %v590
    %v1962 = vunpack.c.h.b16 %v590
    %v1963 = vunpack.c.l.b16 %v591
    %v1964 = vunpack.c.h.b16 %v591
    %v1965 = vunpack.c.l.b16 %v592
    %v1966 = vunpack.c.h.b16 %v592
    %v1967 = vunpack.c.l.b16 %v593
    %v1968 = vunpack.c.h.b16 %v593
    %v1969 = vunpack.c.l.b16 %v594
    %v1970 = vunpack.c.h.b16 %v594
    %v1971 = vunpack.c.l.b16 %v595
    %v1972 = vunpack.c.h.b16 %v595
    %v1973 = vunpack.c.l.b16 %v596
    %v1974 = vunpack.c.h.b16 %v596
    %v1975 = vunpack.c.l.b16 %v597
    %v1976 = vunpack.c.h.b16 %v597
    %v1977 = vunpack.c.l.b16 %v598
    %v1978 = vunpack.c.h.b16 %v598
    %v1979 = vunpack.c.l.b16 %v599
    %v1980 = vunpack.c.h.b16 %v599
    %v1981 = vunpack.c.l.b16 %v600
    %v1982 = vunpack.c.h.b16 %v600
    %v1983 = vunpack.c.l.b16 %v601
    %v1984 = vunpack.c.h.b16 %v601
    %v1985 = vunpack.c.l.b16 %v602
    %v1986 = vunpack.c.h.b16 %v602
    %v1987 = vunpack.c.l.b16 %v603
    %v1988 = vunpack.c.h.b16 %v603
    %v1989 = vunpack.c.l.b16 %v604
    %v1990 = vunpack.c.h.b16 %v604
    %v1991 = vunpack.c.l.b16 %v605
    %v1992 = vunpack.c.h.b16 %v605
    %v1993 = vunpack.c.l.b16 %v606
    %v1994 = vunpack.c.h.b16 %v606
    %v1995 = vunpack.c.l.b16 %v607
    %v1996 = vunpack.c.h.b16 %v607
    %v1997 = vunpack.c.l.b16 %v608
    %v1998 = vunpack.c.h.b16 %v608
    %v1999 = vunpack.c.l.b16 %v609
    %v2000 = vunpack.c.h.b16 %v609
    %v2001 = vunpack.c.l.b16 %v610
    %v2002 = vunpack.c.h.b16 %v610
    %v2003 = vunpack.c.l.b16 %v611
    %v2004 = vunpack.c.h.b16 %v611
    %v2005 = vunpack.c.l.b16 %v612
    %v2006 = vunpack.c.h.b16 %v612
    %v2007 = vunpack.c.l.b16 %v613
    %v2008 = vunpack.c.h.b16 %v613
    %v2009 = vunpack.c.l.b16 %v614
    %v2010 = vunpack.c.h.b16 %v614
    %v2011 = vunpack.c.l.b16 %v615
    %v2012 = vunpack.c.h.b16 %v615
    %v2013 = vunpack.c.l.b16 %v616
    %v2014 = vunpack.c.h.b16 %v616
    %v2015 = vunpack.c.l.b16 %v617
    %v2016 = vunpack.c.h.b16 %v617
    %v2017 = vunpack.c.l.b16 %v618
    %v2018 = vunpack.c.h.b16 %v618
    %v2019 = vunpack.c.l.b16 %v619
    %v2020 = vunpack.c.h.b16 %v619
    %v2021 = vunpack.c.l.b16 %v620
    %v2022 = vunpack.c.h.b16 %v620
    %v2023 = vunpack.c.l.b16 %v621
    %v2024 = vunpack.c.h.b16 %v621
    %v2025 = vunpack.c.l.b16 %v622
    %v2026 = vunpack.c.h.b16 %v622
    %v2027 = vunpack.c.l.b16 %v623
    %v2028 = vunpack.c.h.b16 %v623
    %v2029 = vunpack.c.l.b16 %v624
    %v2030 = vunpack.c.h.b16 %v624
    %v2031 = vunpack.c.l.b16 %v625
    %v2032 = vunpack.c.h.b16 %v625
    %v2033 = vunpack.c.l.b16 %v626
    %v2034 = vunpack.c.h.b16 %v626
    %v2035 = vunpack.c.l.b16 %v627
    %v2036 = vunpack.c.h.b16 %v627
    %v2037 = vunpack.c.l.b16 %v628
    %v2038 = vunpack.c.h.b16 %v628
    %v2039 = vunpack.c.l.b16 %v629
    %v2040 = vunpack.c.h.b16 %v629
    %v2041 = vunpack.c.l.b16 %v630
    %v2042 = vunpack.c.h.b16 %v630
    %v2043 = vunpack.c.l.b16 %v631
    %v2044 = vunpack.c.h.b16 %v631
    %v2045 = vunpack.c.l.b16 %v632
    %v2046 = vunpack.c.h.b16 %v632
    %v2047 = vunpack.c.l.b16 %v633
    %v2048 = vunpack.c.h.b16 %v633
    %v2049 = vunpack.c.l.b16 %v634
    %v2050 = vunpack.c.h.b16 %v634
    %v2051 = vunpack.c.l.b16 %v635
    %v2052 = vunpack.c.h.b16 %v635
    %v2053 = vunpack.c.l.b16 %v636
    %v2054 = vunpack.c.h.b16 %v636
    %v2055 = vunpack.c.l.b16 %v637
    %v2056 = vunpack.c.h.b16 %v637
    %v2057 = vunpack.c.l.b16 %v638
    %v2058 = vunpack.c.h.b16 %v638
    %v2059 = vunpack.c.l.b16 %v639
    %v2060 = vunpack.c.h.b16 %v639
    %v2061 = vunpack.c.l.b16 %v640
    %v2062 = vunpack.c.h.b16 %v640
    %v2063 = vunpack.c.l.b16 %v641
    %v2064 = vunpack.c.h.b16 %v641
    %v2065 = vunpack.c.l.b16 %v642
    %v2066 = vunpack.c.h.b16 %v642
    %v2067 = vunpack.c.l.b16 %v643
    %v2068 = vunpack.c.h.b16 %v643
    %v2069 = vunpack.c.l.b16 %v644
    %v2070 = vunpack.c.h.b16 %v644
    %v2071 = vunpack.c.l.b16 %v645
    %v2072 = vunpack.c.h.b16 %v645
    %v2073 = vunpack.c.l.b16 %v646
    %v2074 = vunpack.c.h.b16 %v646
    %v2075 = vunpack.c.l.b16 %v647
    %v2076 = vunpack.c.h.b16 %v647
    %v2077 = vunpack.c.l.b16 %v648
    %v2078 = vunpack.c.h.b16 %v648
    %v2079 = vunpack.c.l.b16 %v649
    %v2080 = vunpack.c.h.b16 %v649
    %v2081 = vunpack.c.l.b16 %v650
    %v2082 = vunpack.c.h.b16 %v650
    %v2083 = vunpack.c.l.b16 %v651
    %v2084 = vunpack.c.h.b16 %v651
    %v2085 = vunpack.c.l.b16 %v652
    %v2086 = vunpack.c.h.b16 %v652
    %v2087 = vunpack.c.l.b16 %v653
    %v2088 = vunpack.c.h.b16 %v653
    %v2089 = vunpack.c.l.b16 %v654
    %v2090 = vunpack.c.h.b16 %v654
    %v2091 = vunpack.c.l.b16 %v655
    %v2092 = vunpack.c.h.b16 %v655
    %v2093 = vunpack.c.l.b16 %v656
    %v2094 = vunpack.c.h.b16 %v656
    %v2095 = vunpack.c.l.b16 %v657
    %v2096 = vunpack.c.h.b16 %v657
    %v2097 = vunpack.c.l.b16 %v658
    %v2098 = vunpack.c.h.b16 %v658
    %v2099 = vunpack.c.l.b16 %v659
    %v2100 = vunpack.c.h.b16 %v659
    %v2101 = vunpack.c.l.b16 %v660
    %v2102 = vunpack.c.h.b16 %v660
    %v2103 = vunpack.c.l.b16 %v661
    %v2104 = vunpack.c.h.b16 %v661
    %v2105 = vunpack.c.l.b16 %v662
    %v2106 = vunpack.c.h.b16 %v662
    %v2107 = vunpack.c.l.b16 %v663
    %v2108 = vunpack.c.h.b16 %v663
    %v2109 = vunpack.c.l.b16 %v664
    %v2110 = vunpack.c.h.b16 %v664
    %v2111 = vunpack.c.l.b16 %v665
    %v2112 = vunpack.c.h.b16 %v665
    %v2113 = vunpack.c.l.b16 %v666
    %v2114 = vunpack.c.h.b16 %v666
    %v2115 = vunpack.c.l.b16 %v667
    %v2116 = vunpack.c.h.b16 %v667
    %v2117 = vunpack.c.l.b16 %v668
    %v2118 = vunpack.c.h.b16 %v668
    %v2119 = vunpack.c.l.b16 %v669
    %v2120 = vunpack.c.h.b16 %v669
    %v2121 = vunpack.c.l.b16 %v670
    %v2122 = vunpack.c.h.b16 %v670
    %v2123 = vunpack.c.l.b16 %v671
    %v2124 = vunpack.c.h.b16 %v671
    %v2125 = vunpack.c.l.b16 %v672
    %v2126 = vunpack.c.h.b16 %v672
    %v2127 = vunpack.c.l.b16 %v673
    %v2128 = vunpack.c.h.b16 %v673
    %v2129 = vunpack.c.l.b16 %v674
    %v2130 = vunpack.c.h.b16 %v674
    %v2131 = vunpack.c.l.b16 %v675
    %v2132 = vunpack.c.h.b16 %v675
    %v2133 = vunpack.c.l.b16 %v676
    %v2134 = vunpack.c.h.b16 %v676
    %v2135 = vunpack.c.l.b16 %v677
    %v2136 = vunpack.c.h.b16 %v677
    %v2137 = vunpack.c.l.b16 %v678
    %v2138 = vunpack.c.h.b16 %v678
    %v2139 = vunpack.c.l.b16 %v679
    %v2140 = vunpack.c.h.b16 %v679
    %v2141 = vunpack.c.l.b16 %v680
    %v2142 = vunpack.c.h.b16 %v680
    %v2143 = vunpack.c.l.b16 %v681
    %v2144 = vunpack.c.h.b16 %v681
    %v2145 = vunpack.c.l.b16 %v682
    %v2146 = vunpack.c.h.b16 %v682
    %v2147 = vunpack.c.l.b16 %v683
    %v2148 = vunpack.c.h.b16 %v683
    %v2149 = vunpack.c.l.b16 %v684
    %v2150 = vunpack.c.h.b16 %v684
    %v2151 = vunpack.c.l.b16 %v685
    %v2152 = vunpack.c.h.b16 %v685
    %v2153 = vunpack.c.l.b16 %v686
    %v2154 = vunpack.c.h.b16 %v686
    %v2155 = vunpack.c.l.b16 %v687
    %v2156 = vunpack.c.h.b16 %v687
    %v2157 = vunpack.c.l.b16 %v688
    %v2158 = vunpack.c.h.b16 %v688
    %v2159 = vunpack.c.l.b16 %v689
    %v2160 = vunpack.c.h.b16 %v689
    %v2161 = vunpack.c.l.b16 %v690
    %v2162 = vunpack.c.h.b16 %v690
    %v2163 = vunpack.c.l.b16 %v691
    %v2164 = vunpack.c.h.b16 %v691
    %v2165 = vunpack.c.l.b16 %v692
    %v2166 = vunpack.c.h.b16 %v692
    %v2167 = vunpack.c.l.b16 %v693
    %v2168 = vunpack.c.h.b16 %v693
    %v2169 = vunpack.c.l.b16 %v694
    %v2170 = vunpack.c.h.b16 %v694
    %v2171 = vunpack.c.l.b16 %v695
    %v2172 = vunpack.c.h.b16 %v695
    %v2173 = vunpack.c.l.b16 %v696
    %v2174 = vunpack.c.h.b16 %v696
    %v2175 = vunpack.c.l.b16 %v697
    %v2176 = vunpack.c.h.b16 %v697
    %v2177 = vunpack.c.l.b16 %v698
    %v2178 = vunpack.c.h.b16 %v698
    %v2179 = vunpack.c.l.b16 %v699
    %v2180 = vunpack.c.h.b16 %v699
    %v2181 = vunpack.c.l.b16 %v700
    %v2182 = vunpack.c.h.b16 %v700
    %v2183 = vunpack.c.l.b16 %v701
    %v2184 = vunpack.c.h.b16 %v701
    %v2185 = vunpack.c.l.b16 %v702
    %v2186 = vunpack.c.h.b16 %v702
    %v2187 = vunpack.c.l.b16 %v703
    %v2188 = vunpack.c.h.b16 %v703
    %v2189 = vunpack.c.l.b16 %v704
    %v2190 = vunpack.c.h.b16 %v704
    %v2191 = vunpack.c.l.b16 %v705
    %v2192 = vunpack.c.h.b16 %v705
    %v2193 = vunpack.c.l.b16 %v706
    %v2194 = vunpack.c.h.b16 %v706
    %v2195 = vunpack.c.l.b16 %v707
    %v2196 = vunpack.c.h.b16 %v707
    %v2197 = vunpack.c.l.b16 %v708
    %v2198 = vunpack.c.h.b16 %v708
    %v2199 = vunpack.c.l.b16 %v709
    %v2200 = vunpack.c.h.b16 %v709
    %v2201 = vunpack.c.l.b16 %v710
    %v2202 = vunpack.c.h.b16 %v710
    %v2203 = vunpack.c.l.b16 %v711
    %v2204 = vunpack.c.h.b16 %v711
    %v2205 = vunpack.c.l.b16 %v712
    %v2206 = vunpack.c.h.b16 %v712
    %v2207 = vunpack.c.l.b16 %v713
    %v2208 = vunpack.c.h.b16 %v713
    %v2209 = vunpack.c.l.b16 %v714
    %v2210 = vunpack.c.h.b16 %v714
    %v2211 = vunpack.c.l.b16 %v715
    %v2212 = vunpack.c.h.b16 %v715
    %v2213 = vunpack.c.l.b16 %v716
    %v2214 = vunpack.c.h.b16 %v716
    %v2215 = vunpack.c.l.b16 %v717
    %v2216 = vunpack.c.h.b16 %v717
    %v2217 = vunpack.c.l.b16 %v718
    %v2218 = vunpack.c.h.b16 %v718
    %v2219 = vunpack.c.l.b16 %v719
    %v2220 = vunpack.c.h.b16 %v719
    %v2221 = vunpack.c.l.b16 %v720
    %v2222 = vunpack.c.h.b16 %v720
    %v2223 = vunpack.c.l.b16 %v721
    %v2224 = vunpack.c.h.b16 %v721
    %v2225 = vunpack.c.l.b16 %v722
    %v2226 = vunpack.c.h.b16 %v722
    %v2227 = vunpack.c.l.b16 %v723
    %v2228 = vunpack.c.h.b16 %v723
    %v2229 = vunpack.c.l.b16 %v724
    %v2230 = vunpack.c.h.b16 %v724
    %v2231 = vunpack.c.l.b16 %v725
    %v2232 = vunpack.c.h.b16 %v725
    %v2233 = vunpack.c.l.b16 %v726
    %v2234 = vunpack.c.h.b16 %v726
    %v2235 = vunpack.c.l.b16 %v727
    %v2236 = vunpack.c.h.b16 %v727
    %v2237 = vunpack.c.l.b16 %v728
    %v2238 = vunpack.c.h.b16 %v728
    %v2239 = vunpack.c.l.b16 %v729
    %v2240 = vunpack.c.h.b16 %v729
    %v2241 = vunpack.c.l.b16 %v730
    %v2242 = vunpack.c.h.b16 %v730
    %v2243 = vunpack.c.l.b16 %v731
    %v2244 = vunpack.c.h.b16 %v731
    %v2245 = vunpack.c.l.b16 %v732
    %v2246 = vunpack.c.h.b16 %v732
    %v2247 = vunpack.c.l.b16 %v733
    %v2248 = vunpack.c.h.b16 %v733
    %v2249 = vunpack.c.l.b16 %v734
    %v2250 = vunpack.c.h.b16 %v734
    %v2251 = vunpack.c.l.b16 %v735
    %v2252 = vunpack.c.h.b16 %v735
    %v2253 = vunpack.c.l.b16 %v736
    %v2254 = vunpack.c.h.b16 %v736
    %v2255 = vpack.c.b16 %v1263, %v1255
    %v2256 = vpack.c.b16 %v1264, %v1256
    %v2257 = vpack.c.b16 %v1265, %v1257
    %v2258 = vpack.c.b16 %v1266, %v1258
    %v2259 = vpack.c.b16 %v1267, %v1259
    %v2260 = vpack.c.b16 %v1268, %v1260
    %v2261 = vpack.c.b16 %v1269, %v1261
    %v2262 = vpack.c.b16 %v1270, %v1262
    %v2263 = vpack.c.b16 %v1279, %v1271
    %v2264 = vpack.c.b16 %v1280, %v1272
    %v2265 = vpack.c.b16 %v1281, %v1273
    %v2266 = vpack.c.b16 %v1282, %v1274
    %v2267 = vpack.c.b16 %v1283, %v1275
    %v2268 = vpack.c.b16 %v1284, %v1276
    %v2269 = vpack.c.b16 %v1285, %v1277
    %v2270 = vpack.c.b16 %v1286, %v1278
    %v2271 = vpack.c.b16 %v1295, %v1287
    %v2272 = vpack.c.b16 %v1296, %v1288
    %v2273 = vpack.c.b16 %v1297, %v1289
    %v2274 = vpack.c.b16 %v1298, %v1290
    %v2275 = vpack.c.b16 %v1299, %v1291
    %v2276 = vpack.c.b16 %v1300, %v1292
    %v2277 = vpack.c.b16 %v1301, %v1293
    %v2278 = vpack.c.b16 %v1302, %v1294
    %v2279 = vpack.c.b16 %v1311, %v1303
    %v2280 = vpack.c.b16 %v1312, %v1304
    %v2281 = vpack.c.b16 %v1313, %v1305
    %v2282 = vpack.c.b16 %v1314, %v1306
    %v2283 = vpack.c.b16 %v1315, %v1307
    %v2284 = vpack.c.b16 %v1316, %v1308
    %v2285 = vpack.c.b16 %v1317, %v1309
    %v2286 = vpack.c.b16 %v1318, %v1310
    %v2287 = vpack.c.b16 %v1327, %v1319
    %v2288 = vpack.c.b16 %v1328, %v1320
    %v2289 = vpack.c.b16 %v1329, %v1321
    %v2290 = vpack.c.b16 %v1330, %v1322
    %v2291 = vpack.c.b16 %v1331, %v1323
    %v2292 = vpack.c.b16 %v1332, %v1324
    %v2293 = vpack.c.b16 %v1333, %v1325
    %v2294 = vpack.c.b16 %v1334, %v1326
    %v2295 = vpack.c.b16 %v1343, %v1335
    %v2296 = vpack.c.b16 %v1344, %v1336
    %v2297 = vpack.c.b16 %v1345, %v1337
    %v2298 = vpack.c.b16 %v1346, %v1338
    %v2299 = vpack.c.b16 %v1347, %v1339
    %v2300 = vpack.c.b16 %v1348, %v1340
    %v2301 = vpack.c.b16 %v1349, %v1341
    %v2302 = vpack.c.b16 %v1350, %v1342
    %v2303 = vpack.c.b16 %v1359, %v1351
    %v2304 = vpack.c.b16 %v1360, %v1352
    %v2305 = vpack.c.b16 %v1361, %v1353
    %v2306 = vpack.c.b16 %v1362, %v1354
    %v2307 = vpack.c.b16 %v1363, %v1355
    %v2308 = vpack.c.b16 %v1364, %v1356
    %v2309 = vpack.c.b16 %v1365, %v1357
    %v2310 = vpack.c.b16 %v1366, %v1358
    %v2311 = vpack.c.b16 %v1375, %v1367
    %v2312 = vpack.c.b16 %v1376, %v1368
    %v2313 = vpack.c.b16 %v1377, %v1369
    %v2314 = vpack.c.b16 %v1378, %v1370
    %v2315 = vpack.c.b16 %v1379, %v1371
    %v2316 = vpack.c.b16 %v1380, %v1372
    %v2317 = vpack.c.b16 %v1381, %v1373
    %v2318 = vpack.c.b16 %v1382, %v1374
    %v2319 = vpack.c.b16 %v1391, %v1383
    %v2320 = vpack.c.b16 %v1392, %v1384
    %v2321 = vpack.c.b16 %v1393, %v1385
    %v2322 = vpack.c.b16 %v1394, %v1386
    %v2323 = vpack.c.b16 %v1395, %v1387
    %v2324 = vpack.c.b16 %v1396, %v1388
    %v2325 = vpack.c.b16 %v1397, %v1389
    %v2326 = vpack.c.b16 %v1398, %v1390
    %v2327 = vpack.c.b16 %v1407, %v1399
    %v2328 = vpack.c.b16 %v1408, %v1400
    %v2329 = vpack.c.b16 %v1409, %v1401
    %v2330 = vpack.c.b16 %v1410, %v1402
    %v2331 = vpack.c.b16 %v1411, %v1403
    %v2332 = vpack.c.b16 %v1412, %v1404
    %v2333 = vpack.c.b16 %v1413, %v1405
    %v2334 = vpack.c.b16 %v1414, %v1406
    %v2335 = vpack.c.b16 %v1423, %v1415
    %v2336 = vpack.c.b16 %v1424, %v1416
    %v2337 = vpack.c.b16 %v1425, %v1417
    %v2338 = vpack.c.b16 %v1426, %v1418
    %v2339 = vpack.c.b16 %v1427, %v1419
    %v2340 = vpack.c.b16 %v1428, %v1420
    %v2341 = vpack.c.b16 %v1429, %v1421
    %v2342 = vpack.c.b16 %v1430, %v1422
    %v2343 = vpack.c.b16 %v1439, %v1431
    %v2344 = vpack.c.b16 %v1440, %v1432
    %v2345 = vpack.c.b16 %v1441, %v1433
    %v2346 = vpack.c.b16 %v1442, %v1434
    %v2347 = vpack.c.b16 %v1443, %v1435
    %v2348 = vpack.c.b16 %v1444, %v1436
    %v2349 = vpack.c.b16 %v1445, %v1437
    %v2350 = vpack.c.b16 %v1446, %v1438
    %v2351 = vpack.c.b16 %v1455, %v1447
    %v2352 = vpack.c.b16 %v1456, %v1448
    %v2353 = vpack.c.b16 %v1457, %v1449
    %v2354 = vpack.c.b16 %v1458, %v1450
    %v2355 = vpack.c.b16 %v1459, %v1451
    %v2356 = vpack.c.b16 %v1460, %v1452
    %v2357 = vpack.c.b16 %v1461, %v1453
    %v2358 = vpack.c.b16 %v1462, %v1454
    %v2359 = vpack.c.b16 %v1471, %v1463
    %v2360 = vpack.c.b16 %v1472, %v1464
    %v2361 = vpack.c.b16 %v1473, %v1465
    %v2362 = vpack.c.b16 %v1474, %v1466
    %v2363 = vpack.c.b16 %v1475, %v1467
    %v2364 = vpack.c.b16 %v1476, %v1468
    %v2365 = vpack.c.b16 %v1477, %v1469
    %v2366 = vpack.c.b16 %v1478, %v1470
    %v2367 = vpack.c.b16 %v1487, %v1479
    %v2368 = vpack.c.b16 %v1488, %v1480
    %v2369 = vpack.c.b16 %v1489, %v1481
    %v2370 = vpack.c.b16 %v1490, %v1482
    %v2371 = vpack.c.b16 %v1491, %v1483
    %v2372 = vpack.c.b16 %v1492, %v1484
    %v2373 = vpack.c.b16 %v1493, %v1485
    %v2374 = vpack.c.b16 %v1494, %v1486
    %v2375 = vpack.c.b16 %v1503, %v1495
    %v2376 = vpack.c.b16 %v1504, %v1496
    %v2377 = vpack.c.b16 %v1505, %v1497
    %v2378 = vpack.c.b16 %v1506, %v1498
    %v2379 = vpack.c.b16 %v1507, %v1499
    %v2380 = vpack.c.b16 %v1508, %v1500
    %v2381 = vpack.c.b16 %v1509, %v1501
    %v2382 = vpack.c.b16 %v1510, %v1502
    %v2383 = vpack.c.b16 %v1519, %v1511
    %v2384 = vpack.c.b16 %v1520, %v1512
    %v2385 = vpack.c.b16 %v1521, %v1513
    %v2386 = vpack.c.b16 %v1522, %v1514
    %v2387 = vpack.c.b16 %v1523, %v1515
    %v2388 = vpack.c.b16 %v1524, %v1516
    %v2389 = vpack.c.b16 %v1525, %v1517
    %v2390 = vpack.c.b16 %v1526, %v1518
    %v2391 = vpack.c.b16 %v1535, %v1527
    %v2392 = vpack.c.b16 %v1536, %v1528
    %v2393 = vpack.c.b16 %v1537, %v1529
    %v2394 = vpack.c.b16 %v1538, %v1530
    %v2395 = vpack.c.b16 %v1539, %v1531
    %v2396 = vpack.c.b16 %v1540, %v1532
    %v2397 = vpack.c.b16 %v1541, %v1533
    %v2398 = vpack.c.b16 %v1542, %v1534
    %v2399 = vpack.c.b16 %v1551, %v1543
    %v2400 = vpack.c.b16 %v1552, %v1544
    %v2401 = vpack.c.b16 %v1553, %v1545
    %v2402 = vpack.c.b16 %v1554, %v1546
    %v2403 = vpack.c.b16 %v1555, %v1547
    %v2404 = vpack.c.b16 %v1556, %v1548
    %v2405 = vpack.c.b16 %v1557, %v1549
    %v2406 = vpack.c.b16 %v1558, %v1550
    %v2407 = vpack.c.b16 %v1567, %v1559
    %v2408 = vpack.c.b16 %v1568, %v1560
    %v2409 = vpack.c.b16 %v1569, %v1561
    %v2410 = vpack.c.b16 %v1570, %v1562
    %v2411 = vpack.c.b16 %v1571, %v1563
    %v2412 = vpack.c.b16 %v1572, %v1564
    %v2413 = vpack.c.b16 %v1573, %v1565
    %v2414 = vpack.c.b16 %v1574, %v1566
    %v2415 = vpack.c.b16 %v1583, %v1575
    %v2416 = vpack.c.b16 %v1584, %v1576
    %v2417 = vpack.c.b16 %v1585, %v1577
    %v2418 = vpack.c.b16 %v1586, %v1578
    %v2419 = vpack.c.b16 %v1587, %v1579
    %v2420 = vpack.c.b16 %v1588, %v1580
    %v2421 = vpack.c.b16 %v1589, %v1581
    %v2422 = vpack.c.b16 %v1590, %v1582
    %v2423 = vpack.c.b16 %v1599, %v1591
    %v2424 = vpack.c.b16 %v1600, %v1592
    %v2425 = vpack.c.b16 %v1601, %v1593
    %v2426 = vpack.c.b16 %v1602, %v1594
    %v2427 = vpack.c.b16 %v1603, %v1595
    %v2428 = vpack.c.b16 %v1604, %v1596
    %v2429 = vpack.c.b16 %v1605, %v1597
    %v2430 = vpack.c.b16 %v1606, %v1598
    %v2431 = vpack.c.b16 %v1615, %v1607
    %v2432 = vpack.c.b16 %v1616, %v1608
    %v2433 = vpack.c.b16 %v1617, %v1609
    %v2434 = vpack.c.b16 %v1618, %v1610
    %v2435 = vpack.c.b16 %v1619, %v1611
    %v2436 = vpack.c.b16 %v1620, %v1612
    %v2437 = vpack.c.b16 %v1621, %v1613
    %v2438 = vpack.c.b16 %v1622, %v1614
    %v2439 = vpack.c.b16 %v1631, %v1623
    %v2440 = vpack.c.b16 %v1632, %v1624
    %v2441 = vpack.c.b16 %v1633, %v1625
    %v2442 = vpack.c.b16 %v1634, %v1626
    %v2443 = vpack.c.b16 %v1635, %v1627
    %v2444 = vpack.c.b16 %v1636, %v1628
    %v2445 = vpack.c.b16 %v1637, %v1629
    %v2446 = vpack.c.b16 %v1638, %v1630
    %v2447 = vpack.c.b16 %v1647, %v1639
    %v2448 = vpack.c.b16 %v1648, %v1640
    %v2449 = vpack.c.b16 %v1649, %v1641
    %v2450 = vpack.c.b16 %v1650, %v1642
    %v2451 = vpack.c.b16 %v1651, %v1643
    %v2452 = vpack.c.b16 %v1652, %v1644
    %v2453 = vpack.c.b16 %v1653, %v1645
    %v2454 = vpack.c.b16 %v1654, %v1646
    %v2455 = vpack.c.b16 %v1663, %v1655
    %v2456 = vpack.c.b16 %v1664, %v1656
    %v2457 = vpack.c.b16 %v1665, %v1657
    %v2458 = vpack.c.b16 %v1666, %v1658
    %v2459 = vpack.c.b16 %v1667, %v1659
    %v2460 = vpack.c.b16 %v1668, %v1660
    %v2461 = vpack.c.b16 %v1669, %v1661
    %v2462 = vpack.c.b16 %v1670, %v1662
    %v2463 = vpack.c.b16 %v1679, %v1671
    %v2464 = vpack.c.b16 %v1680, %v1672
    %v2465 = vpack.c.b16 %v1681, %v1673
    %v2466 = vpack.c.b16 %v1682, %v1674
    %v2467 = vpack.c.b16 %v1683, %v1675
    %v2468 = vpack.c.b16 %v1684, %v1676
    %v2469 = vpack.c.b16 %v1685, %v1677
    %v2470 = vpack.c.b16 %v1686, %v1678
    %v2471 = vpack.c.b16 %v1695, %v1687
    %v2472 = vpack.c.b16 %v1696, %v1688
    %v2473 = vpack.c.b16 %v1697, %v1689
    %v2474 = vpack.c.b16 %v1698, %v1690
    %v2475 = vpack.c.b16 %v1699, %v1691
    %v2476 = vpack.c.b16 %v1700, %v1692
    %v2477 = vpack.c.b16 %v1701, %v1693
    %v2478 = vpack.c.b16 %v1702, %v1694
    %v2479 = vpack.c.b16 %v1711, %v1703
    %v2480 = vpack.c.b16 %v1712, %v1704
    %v2481 = vpack.c.b16 %v1713, %v1705
    %v2482 = vpack.c.b16 %v1714, %v1706
    %v2483 = vpack.c.b16 %v1715, %v1707
    %v2484 = vpack.c.b16 %v1716, %v1708
    %v2485 = vpack.c.b16 %v1717, %v1709
    %v2486 = vpack.c.b16 %v1718, %v1710
    %v2487 = vpack.c.b16 %v1727, %v1719
    %v2488 = vpack.c.b16 %v1728, %v1720
    %v2489 = vpack.c.b16 %v1729, %v1721
    %v2490 = vpack.c.b16 %v1730, %v1722
    %v2491 = vpack.c.b16 %v1731, %v1723
    %v2492 = vpack.c.b16 %v1732, %v1724
    %v2493 = vpack.c.b16 %v1733, %v1725
    %v2494 = vpack.c.b16 %v1734, %v1726
    %v2495 = vpack.c.b16 %v1743, %v1735
    %v2496 = vpack.c.b16 %v1744, %v1736
    %v2497 = vpack.c.b16 %v1745, %v1737
    %v2498 = vpack.c.b16 %v1746, %v1738
    %v2499 = vpack.c.b16 %v1747, %v1739
    %v2500 = vpack.c.b16 %v1748, %v1740
    %v2501 = vpack.c.b16 %v1749, %v1741
    %v2502 = vpack.c.b16 %v1750, %v1742
    %v2503 = vpack.c.b16 %v1759, %v1751
    %v2504 = vpack.c.b16 %v1760, %v1752
    %v2505 = vpack.c.b16 %v1761, %v1753
    %v2506 = vpack.c.b16 %v1762, %v1754
    %v2507 = vpack.c.b16 %v1763, %v1755
    %v2508 = vpack.c.b16 %v1764, %v1756
    %v2509 = vpack.c.b16 %v1765, %v1757
    %v2510 = vpack.c.b16 %v1766, %v1758
    %v2511 = vpack.c.b16 %v1775, %v1767
    %v2512 = vpack.c.b16 %v1776, %v1768
    %v2513 = vpack.c.b16 %v1777, %v1769
    %v2514 = vpack.c.b16 %v1778, %v1770
    %v2515 = vpack.c.b16 %v1779, %v1771
    %v2516 = vpack.c.b16 %v1780, %v1772
    %v2517 = vpack.c.b16 %v1781, %v1773
    %v2518 = vpack.c.b16 %v1782, %v1774
    %v2519 = vpack.c.b16 %v1791, %v1783
    %v2520 = vpack.c.b16 %v1792, %v1784
    %v2521 = vpack.c.b16 %v1793, %v1785
    %v2522 = vpack.c.b16 %v1794, %v1786
    %v2523 = vpack.c.b16 %v1795, %v1787
    %v2524 = vpack.c.b16 %v1796, %v1788
    %v2525 = vpack.c.b16 %v1797, %v1789
    %v2526 = vpack.c.b16 %v1798, %v1790
    %v2527 = vpack.c.b16 %v1807, %v1799
    %v2528 = vpack.c.b16 %v1808, %v1800
    %v2529 = vpack.c.b16 %v1809, %v1801
    %v2530 = vpack.c.b16 %v1810, %v1802
    %v2531 = vpack.c.b16 %v1811, %v1803
    %v2532 = vpack.c.b16 %v1812, %v1804
    %v2533 = vpack.c.b16 %v1813, %v1805
    %v2534 = vpack.c.b16 %v1814, %v1806
    %v2535 = vpack.c.b16 %v1823, %v1815
    %v2536 = vpack.c.b16 %v1824, %v1816
    %v2537 = vpack.c.b16 %v1825, %v1817
    %v2538 = vpack.c.b16 %v1826, %v1818
    %v2539 = vpack.c.b16 %v1827, %v1819
    %v2540 = vpack.c.b16 %v1828, %v1820
    %v2541 = vpack.c.b16 %v1829, %v1821
    %v2542 = vpack.c.b16 %v1830, %v1822
    %v2543 = vpack.c.b16 %v1839, %v1831
    %v2544 = vpack.c.b16 %v1840, %v1832
    %v2545 = vpack.c.b16 %v1841, %v1833
    %v2546 = vpack.c.b16 %v1842, %v1834
    %v2547 = vpack.c.b16 %v1843, %v1835
    %v2548 = vpack.c.b16 %v1844, %v1836
    %v2549 = vpack.c.b16 %v1845, %v1837
    %v2550 = vpack.c.b16 %v1846, %v1838
    %v2551 = vpack.c.b16 %v1855, %v1847
    %v2552 = vpack.c.b16 %v1856, %v1848
    %v2553 = vpack.c.b16 %v1857, %v1849
    %v2554 = vpack.c.b16 %v1858, %v1850
    %v2555 = vpack.c.b16 %v1859, %v1851
    %v2556 = vpack.c.b16 %v1860, %v1852
    %v2557 = vpack.c.b16 %v1861, %v1853
    %v2558 = vpack.c.b16 %v1862, %v1854
    %v2559 = vpack.c.b16 %v1871, %v1863
    %v2560 = vpack.c.b16 %v1872, %v1864
    %v2561 = vpack.c.b16 %v1873, %v1865
    %v2562 = vpack.c.b16 %v1874, %v1866
    %v2563 = vpack.c.b16 %v1875, %v1867
    %v2564 = vpack.c.b16 %v1876, %v1868
    %v2565 = vpack.c.b16 %v1877, %v1869
    %v2566 = vpack.c.b16 %v1878, %v1870
    %v2567 = vpack.c.b16 %v1887, %v1879
    %v2568 = vpack.c.b16 %v1888, %v1880
    %v2569 = vpack.c.b16 %v1889, %v1881
    %v2570 = vpack.c.b16 %v1890, %v1882
    %v2571 = vpack.c.b16 %v1891, %v1883
    %v2572 = vpack.c.b16 %v1892, %v1884
    %v2573 = vpack.c.b16 %v1893, %v1885
    %v2574 = vpack.c.b16 %v1894, %v1886
    %v2575 = vpack.c.b16 %v1903, %v1895
    %v2576 = vpack.c.b16 %v1904, %v1896
    %v2577 = vpack.c.b16 %v1905, %v1897
    %v2578 = vpack.c.b16 %v1906, %v1898
    %v2579 = vpack.c.b16 %v1907, %v1899
    %v2580 = vpack.c.b16 %v1908, %v1900
    %v2581 = vpack.c.b16 %v1909, %v1901
    %v2582 = vpack.c.b16 %v1910, %v1902
    %v2583 = vpack.c.b16 %v1919, %v1911
    %v2584 = vpack.c.b16 %v1920, %v1912
    %v2585 = vpack.c.b16 %v1921, %v1913
    %v2586 = vpack.c.b16 %v1922, %v1914
    %v2587 = vpack.c.b16 %v1923, %v1915
    %v2588 = vpack.c.b16 %v1924, %v1916
    %v2589 = vpack.c.b16 %v1925, %v1917
    %v2590 = vpack.c.b16 %v1926, %v1918
    %v2591 = vpack.c.b16 %v1935, %v1927
    %v2592 = vpack.c.b16 %v1936, %v1928
    %v2593 = vpack.c.b16 %v1937, %v1929
    %v2594 = vpack.c.b16 %v1938, %v1930
    %v2595 = vpack.c.b16 %v1939, %v1931
    %v2596 = vpack.c.b16 %v1940, %v1932
    %v2597 = vpack.c.b16 %v1941, %v1933
    %v2598 = vpack.c.b16 %v1942, %v1934
    %v2599 = vpack.c.b16 %v1951, %v1943
    %v2600 = vpack.c.b16 %v1952, %v1944
    %v2601 = vpack.c.b16 %v1953, %v1945
    %v2602 = vpack.c.b16 %v1954, %v1946
    %v2603 = vpack.c.b16 %v1955, %v1947
    %v2604 = vpack.c.b16 %v1956, %v1948
    %v2605 = vpack.c.b16 %v1957, %v1949
    %v2606 = vpack.c.b16 %v1958, %v1950
    %v2607 = vpack.c.b16 %v1967, %v1959
    %v2608 = vpack.c.b16 %v1968, %v1960
    %v2609 = vpack.c.b16 %v1969, %v1961
    %v2610 = vpack.c.b16 %v1970, %v1962
    %v2611 = vpack.c.b16 %v1971, %v1963
    %v2612 = vpack.c.b16 %v1972, %v1964
    %v2613 = vpack.c.b16 %v1973, %v1965
    %v2614 = vpack.c.b16 %v1974, %v1966
    %v2615 = vpack.c.b16 %v1983, %v1975
    %v2616 = vpack.c.b16 %v1984, %v1976
    %v2617 = vpack.c.b16 %v1985, %v1977
    %v2618 = vpack.c.b16 %v1986, %v1978
    %v2619 = vpack.c.b16 %v1987, %v1979
    %v2620 = vpack.c.b16 %v1988, %v1980
    %v2621 = vpack.c.b16 %v1989, %v1981
    %v2622 = vpack.c.b16 %v1990, %v1982
    %v2623 = vpack.c.b16 %v1999, %v1991
    %v2624 = vpack.c.b16 %v2000, %v1992
    %v2625 = vpack.c.b16 %v2001, %v1993
    %v2626 = vpack.c.b16 %v2002, %v1994
    %v2627 = vpack.c.b16 %v2003, %v1995
    %v2628 = vpack.c.b16 %v2004, %v1996
    %v2629 = vpack.c.b16 %v2005, %v1997
    %v2630 = vpack.c.b16 %v2006, %v1998
    %v2631 = vpack.c.b16 %v2015, %v2007
    %v2632 = vpack.c.b16 %v2016, %v2008
    %v2633 = vpack.c.b16 %v2017, %v2009
    %v2634 = vpack.c.b16 %v2018, %v2010
    %v2635 = vpack.c.b16 %v2019, %v2011
    %v2636 = vpack.c.b16 %v2020, %v2012
    %v2637 = vpack.c.b16 %v2021, %v2013
    %v2638 = vpack.c.b16 %v2022, %v2014
    %v2639 = vpack.c.b16 %v2031, %v2023
    %v2640 = vpack.c.b16 %v2032, %v2024
    %v2641 = vpack.c.b16 %v2033, %v2025
    %v2642 = vpack.c.b16 %v2034, %v2026
    %v2643 = vpack.c.b16 %v2035, %v2027
    %v2644 = vpack.c.b16 %v2036, %v2028
    %v2645 = vpack.c.b16 %v2037, %v2029
    %v2646 = vpack.c.b16 %v2038, %v2030
    %v2647 = vpack.c.b16 %v2047, %v2039
    %v2648 = vpack.c.b16 %v2048, %v2040
    %v2649 = vpack.c.b16 %v2049, %v2041
    %v2650 = vpack.c.b16 %v2050, %v2042
    %v2651 = vpack.c.b16 %v2051, %v2043
    %v2652 = vpack.c.b16 %v2052, %v2044
    %v2653 = vpack.c.b16 %v2053, %v2045
    %v2654 = vpack.c.b16 %v2054, %v2046
    %v2655 = vpack.c.b16 %v2063, %v2055
    %v2656 = vpack.c.b16 %v2064, %v2056
    %v2657 = vpack.c.b16 %v2065, %v2057
    %v2658 = vpack.c.b16 %v2066, %v2058
    %v2659 = vpack.c.b16 %v2067, %v2059
    %v2660 = vpack.c.b16 %v2068, %v2060
    %v2661 = vpack.c.b16 %v2069, %v2061
    %v2662 = vpack.c.b16 %v2070, %v2062
    %v2663 = vpack.c.b16 %v2079, %v2071
    %v2664 = vpack.c.b16 %v2080, %v2072
    %v2665 = vpack.c.b16 %v2081, %v2073
    %v2666 = vpack.c.b16 %v2082, %v2074
    %v2667 = vpack.c.b16 %v2083, %v2075
    %v2668 = vpack.c.b16 %v2084, %v2076
    %v2669 = vpack.c.b16 %v2085, %v2077
    %v2670 = vpack.c.b16 %v2086, %v2078
    %v2671 = vpack.c.b16 %v2095, %v2087
    %v2672 = vpack.c.b16 %v2096, %v2088
    %v2673 = vpack.c.b16 %v2097, %v2089
    %v2674 = vpack.c.b16 %v2098, %v2090
    %v2675 = vpack.c.b16 %v2099, %v2091
    %v2676 = vpack.c.b16 %v2100, %v2092
    %v2677 = vpack.c.b16 %v2101, %v2093
    %v2678 = vpack.c.b16 %v2102, %v2094
    %v2679 = vpack.c.b16 %v2111, %v2103
    %v2680 = vpack.c.b16 %v2112, %v2104
    %v2681 = vpack.c.b16 %v2113, %v2105
    %v2682 = vpack.c.b16 %v2114, %v2106
    %v2683 = vpack.c.b16 %v2115, %v2107
    %v2684 = vpack.c.b16 %v2116, %v2108
    %v2685 = vpack.c.b16 %v2117, %v2109
    %v2686 = vpack.c.b16 %v2118, %v2110
    %v2687 = vpack.c.b16 %v2127, %v2119
    %v2688 = vpack.c.b16 %v2128, %v2120
    %v2689 = vpack.c.b16 %v2129, %v2121
    %v2690 = vpack.c.b16 %v2130, %v2122
    %v2691 = vpack.c.b16 %v2131, %v2123
    %v2692 = vpack.c.b16 %v2132, %v2124
    %v2693 = vpack.c.b16 %v2133, %v2125
    %v2694 = vpack.c.b16 %v2134, %v2126
    %v2695 = vpack.c.b16 %v2143, %v2135
    %v2696 = vpack.c.b16 %v2144, %v2136
    %v2697 = vpack.c.b16 %v2145, %v2137
    %v2698 = vpack.c.b16 %v2146, %v2138
    %v2699 = vpack.c.b16 %v2147, %v2139
    %v2700 = vpack.c.b16 %v2148, %v2140
    %v2701 = vpack.c.b16 %v2149, %v2141
    %v2702 = vpack.c.b16 %v2150, %v2142
    %v2703 = vpack.c.b16 %v2159, %v2151
    %v2704 = vpack.c.b16 %v2160, %v2152
    %v2705 = vpack.c.b16 %v2161, %v2153
    %v2706 = vpack.c.b16 %v2162, %v2154
    %v2707 = vpack.c.b16 %v2163, %v2155
    %v2708 = vpack.c.b16 %v2164, %v2156
    %v2709 = vpack.c.b16 %v2165, %v2157
    %v2710 = vpack.c.b16 %v2166, %v2158
    %v2711 = vpack.c.b16 %v2175, %v2167
    %v2712 = vpack.c.b16 %v2176, %v2168
    %v2713 = vpack.c.b16 %v2177, %v2169
    %v2714 = vpack.c.b16 %v2178, %v2170
    %v2715 = vpack.c.b16 %v2179, %v2171
    %v2716 = vpack.c.b16 %v2180, %v2172
    %v2717 = vpack.c.b16 %v2181, %v2173
    %v2718 = vpack.c.b16 %v2182, %v2174
    %v2719 = vpack.c.b16 %v2191, %v2183
    %v2720 = vpack.c.b16 %v2192, %v2184
    %v2721 = vpack.c.b16 %v2193, %v2185
    %v2722 = vpack.c.b16 %v2194, %v2186
    %v2723 = vpack.c.b16 %v2195, %v2187
    %v2724 = vpack.c.b16 %v2196, %v2188
    %v2725 = vpack.c.b16 %v2197, %v2189
    %v2726 = vpack.c.b16 %v2198, %v2190
    %v2727 = vpack.c.b16 %v2207, %v2199
    %v2728 = vpack.c.b16 %v2208, %v2200
    %v2729 = vpack.c.b16 %v2209, %v2201
    %v2730 = vpack.c.b16 %v2210, %v2202
    %v2731 = vpack.c.b16 %v2211, %v2203
    %v2732 = vpack.c.b16 %v2212, %v2204
    %v2733 = vpack.c.b16 %v2213, %v2205
    %v2734 = vpack.c.b16 %v2214, %v2206
    %v2735 = vpack.c.b16 %v2223, %v2215
    %v2736 = vpack.c.b16 %v2224, %v2216
    %v2737 = vpack.c.b16 %v2225, %v2217
    %v2738 = vpack.c.b16 %v2226, %v2218
    %v2739 = vpack.c.b16 %v2227, %v2219
    %v2740 = vpack.c.b16 %v2228, %v2220
    %v2741 = vpack.c.b16 %v2229, %v2221
    %v2742 = vpack.c.b16 %v2230, %v2222
    %v2743 = vpack.c.b16 %v2239, %v2231
    %v2744 = vpack.c.b16 %v2240, %v2232
    %v2745 = vpack.c.b16 %v2241, %v2233
    %v2746 = vpack.c.b16 %v2242, %v2234
    %v2747 = vpack.c.b16 %v2243, %v2235
    %v2748 = vpack.c.b16 %v2244, %v2236
    %v2749 = vpack.c.b16 %v2245, %v2237
    %v2750 = vpack.c.b16 %v2246, %v2238
    %v2751 = vpack.c.b16 %v2247, %v2247
    %v2752 = vpack.c.b16 %v2248, %v2248
    %v2753 = vpack.c.b16 %v2249, %v2249
    %v2754 = vpack.c.b16 %v2250, %v2250
    %v2755 = vpack.c.b16 %v2251, %v2251
    %v2756 = vpack.c.b16 %v2252, %v2252
    %v2757 = vpack.c.b16 %v2253, %v2253
    %v2758 = vpack.c.b16 %v2254, %v2254
    %vm3255 = vcmask 850944
    %v3257 = vsel %vm3255, %v236, 0
    %vm3259 = vcmask 1043456
    %v3261 = vsel %vm3259, %v2751, 0
    %v3264 = vsel %vm3259, %v2752, 0
    %v3267 = vsel %vm3259, %v2753, 0
    %v3270 = vsel %vm3259, %v2754, 0
    %v3273 = vsel %vm3259, %v2755, 0
    %v3276 = vsel %vm3259, %v2756, 0
    %v3279 = vsel %vm3259, %v2757, 0
    %v3282 = vsel %vm3259, %v2758, 0
    %3284 = vmatpush.bf16.msra.mxu0 %v2311
    %3285 = vmatpush.bf16.msra.mxu0 %v2303
    %3286 = vmatpush.bf16.msra.mxu0 %v2295
    %3287 = vmatpush.bf16.msra.mxu0 %v2287
    %3288 = vmatpush.bf16.msra.mxu0 %v2279
    %3289 = vmatpush.bf16.msra.mxu0 %v2271
    %3290 = vmatpush.bf16.msra.mxu0 %v2263
    %3291 = vmatpush.bf16.msra.mxu0 %v2255
    %3292 = vmatmul.bf16.gmra.mxu0 %v229
    %v3293 = vpop.f32.mrf.mxu0
    %v3294 = vadd.f32 %v739, %v3293
    %v3295 = vpop.f32.mrf.mxu0
    %3296 = vdwg.mxu0
    %3297 = vmatpush.bf16.msra.mxu0 %v2375
    %3298 = vmatpush.bf16.msra.mxu0 %v2367
    %3299 = vmatpush.bf16.msra.mxu0 %v2359
    %3300 = vmatpush.bf16.msra.mxu0 %v2351
    %3301 = vmatpush.bf16.msra.mxu0 %v2343
    %3302 = vmatpush.bf16.msra.mxu0 %v2335
    %3303 = vmatpush.bf16.msra.mxu0 %v2327
    %3304 = vmatpush.bf16.msra.mxu0 %v2319
    %3305 = vmatmul.bf16.gmra.mxu0 %v230
    %v3306 = vpop.f32.mrf.mxu0
    %v3307 = vadd.f32 %v3294, %v3306
    %v3308 = vpop.f32.mrf.mxu0
    %3309 = vdwg.mxu0
    %3310 = vmatpush.bf16.msra.mxu0 %v2439
    %3311 = vmatpush.bf16.msra.mxu0 %v2431
    %3312 = vmatpush.bf16.msra.mxu0 %v2423
    %3313 = vmatpush.bf16.msra.mxu0 %v2415
    %3314 = vmatpush.bf16.msra.mxu0 %v2407
    %3315 = vmatpush.bf16.msra.mxu0 %v2399
    %3316 = vmatpush.bf16.msra.mxu0 %v2391
    %3317 = vmatpush.bf16.msra.mxu0 %v2383
    %3318 = vmatmul.bf16.gmra.mxu0 %v231
    %v3319 = vpop.f32.mrf.mxu0
    %v3320 = vadd.f32 %v3307, %v3319
    %v3321 = vpop.f32.mrf.mxu0
    %3322 = vdwg.mxu0
    %3323 = vmatpush.bf16.msra.mxu0 %v2503
    %3324 = vmatpush.bf16.msra.mxu0 %v2495
    %3325 = vmatpush.bf16.msra.mxu0 %v2487
    %3326 = vmatpush.bf16.msra.mxu0 %v2479
    %3327 = vmatpush.bf16.msra.mxu0 %v2471
    %3328 = vmatpush.bf16.msra.mxu0 %v2463
    %3329 = vmatpush.bf16.msra.mxu0 %v2455
    %3330 = vmatpush.bf16.msra.mxu0 %v2447
    %3331 = vmatmul.bf16.gmra.mxu0 %v232
    %v3332 = vpop.f32.mrf.mxu0
    %v3333 = vadd.f32 %v3320, %v3332
    %v3334 = vpop.f32.mrf.mxu0
    %3335 = vdwg.mxu0
    %3336 = vmatpush.bf16.msra.mxu0 %v2567
    %3337 = vmatpush.bf16.msra.mxu0 %v2559
    %3338 = vmatpush.bf16.msra.mxu0 %v2551
    %3339 = vmatpush.bf16.msra.mxu0 %v2543
    %3340 = vmatpush.bf16.msra.mxu0 %v2535
    %3341 = vmatpush.bf16.msra.mxu0 %v2527
    %3342 = vmatpush.bf16.msra.mxu0 %v2519
    %3343 = vmatpush.bf16.msra.mxu0 %v2511
    %3344 = vmatmul.bf16.gmra.mxu0 %v233
    %v3345 = vpop.f32.mrf.mxu0
    %v3346 = vadd.f32 %v3333, %v3345
    %v3347 = vpop.f32.mrf.mxu0
    %3348 = vdwg.mxu0
    %3349 = vmatpush.bf16.msra.mxu0 %v2631
    %3350 = vmatpush.bf16.msra.mxu0 %v2623
    %3351 = vmatpush.bf16.msra.mxu0 %v2615
    %3352 = vmatpush.bf16.msra.mxu0 %v2607
    %3353 = vmatpush.bf16.msra.mxu0 %v2599
    %3354 = vmatpush.bf16.msra.mxu0 %v2591
    %3355 = vmatpush.bf16.msra.mxu0 %v2583
    %3356 = vmatpush.bf16.msra.mxu0 %v2575
    %3357 = vmatmul.bf16.gmra.mxu0 %v234
    %v3358 = vpop.f32.mrf.mxu0
    %v3359 = vadd.f32 %v3346, %v3358
    %v3360 = vpop.f32.mrf.mxu0
    %3361 = vdwg.mxu0
    %3362 = vmatpush.bf16.msra.mxu0 %v2695
    %3363 = vmatpush.bf16.msra.mxu0 %v2687
    %3364 = vmatpush.bf16.msra.mxu0 %v2679
    %3365 = vmatpush.bf16.msra.mxu0 %v2671
    %3366 = vmatpush.bf16.msra.mxu0 %v2663
    %3367 = vmatpush.bf16.msra.mxu0 %v2655
    %3368 = vmatpush.bf16.msra.mxu0 %v2647
    %3369 = vmatpush.bf16.msra.mxu0 %v2639
    %3370 = vmatmul.bf16.gmra.mxu0 %v235
    %v3371 = vpop.f32.mrf.mxu0
    %v3372 = vadd.f32 %v3359, %v3371
    %v3373 = vpop.f32.mrf.mxu0
    %3374 = vdwg.mxu0
    %3375 = vmatpush.bf16.msra.mxu0 0
    %3376 = vmatpush.bf16.msra.mxu0 %v3261
    %3377 = vmatpush.bf16.msra.mxu0 %v2743
    %3378 = vmatpush.bf16.msra.mxu0 %v2735
    %3379 = vmatpush.bf16.msra.mxu0 %v2727
    %3380 = vmatpush.bf16.msra.mxu0 %v2719
    %3381 = vmatpush.bf16.msra.mxu0 %v2711
    %3382 = vmatpush.bf16.msra.mxu0 %v2703
    %3383 = vmatmul.bf16.gmra.mxu0 %v3257
    %v3384 = vpop.f32.mrf.mxu0
    %v3385 = vadd.f32 %v3372, %v3384
    %v3386 = vpop.f32.mrf.mxu0
    %3387 = vdwg.mxu0
    %3388 = vmatpush.bf16.msra.mxu0 %v2312
    %3389 = vmatpush.bf16.msra.mxu0 %v2304
    %3390 = vmatpush.bf16.msra.mxu0 %v2296
    %3391 = vmatpush.bf16.msra.mxu0 %v2288
    %3392 = vmatpush.bf16.msra.mxu0 %v2280
    %3393 = vmatpush.bf16.msra.mxu0 %v2272
    %3394 = vmatpush.bf16.msra.mxu0 %v2264
    %3395 = vmatpush.bf16.msra.mxu0 %v2256
    %3396 = vmatmul.bf16.gmra.mxu0 %v229
    %v3397 = vpop.f32.mrf.mxu0
    %v3398 = vadd.f32 %v740, %v3397
    %v3399 = vpop.f32.mrf.mxu0
    %3400 = vdwg.mxu0
    %3401 = vmatpush.bf16.msra.mxu0 %v2376
    %3402 = vmatpush.bf16.msra.mxu0 %v2368
    %3403 = vmatpush.bf16.msra.mxu0 %v2360
    %3404 = vmatpush.bf16.msra.mxu0 %v2352
    %3405 = vmatpush.bf16.msra.mxu0 %v2344
    %3406 = vmatpush.bf16.msra.mxu0 %v2336
    %3407 = vmatpush.bf16.msra.mxu0 %v2328
    %3408 = vmatpush.bf16.msra.mxu0 %v2320
    %3409 = vmatmul.bf16.gmra.mxu0 %v230
    %v3410 = vpop.f32.mrf.mxu0
    %v3411 = vadd.f32 %v3398, %v3410
    %v3412 = vpop.f32.mrf.mxu0
    %3413 = vdwg.mxu0
    %3414 = vmatpush.bf16.msra.mxu0 %v2440
    %3415 = vmatpush.bf16.msra.mxu0 %v2432
    %3416 = vmatpush.bf16.msra.mxu0 %v2424
    %3417 = vmatpush.bf16.msra.mxu0 %v2416
    %3418 = vmatpush.bf16.msra.mxu0 %v2408
    %3419 = vmatpush.bf16.msra.mxu0 %v2400
    %3420 = vmatpush.bf16.msra.mxu0 %v2392
    %3421 = vmatpush.bf16.msra.mxu0 %v2384
    %3422 = vmatmul.bf16.gmra.mxu0 %v231
    %v3423 = vpop.f32.mrf.mxu0
    %v3424 = vadd.f32 %v3411, %v3423
    %v3425 = vpop.f32.mrf.mxu0
    %3426 = vdwg.mxu0
    %3427 = vmatpush.bf16.msra.mxu0 %v2504
    %3428 = vmatpush.bf16.msra.mxu0 %v2496
    %3429 = vmatpush.bf16.msra.mxu0 %v2488
    %3430 = vmatpush.bf16.msra.mxu0 %v2480
    %3431 = vmatpush.bf16.msra.mxu0 %v2472
    %3432 = vmatpush.bf16.msra.mxu0 %v2464
    %3433 = vmatpush.bf16.msra.mxu0 %v2456
    %3434 = vmatpush.bf16.msra.mxu0 %v2448
    %3435 = vmatmul.bf16.gmra.mxu0 %v232
    %v3436 = vpop.f32.mrf.mxu0
    %v3437 = vadd.f32 %v3424, %v3436
    %v3438 = vpop.f32.mrf.mxu0
    %3439 = vdwg.mxu0
    %3440 = vmatpush.bf16.msra.mxu0 %v2568
    %3441 = vmatpush.bf16.msra.mxu0 %v2560
    %3442 = vmatpush.bf16.msra.mxu0 %v2552
    %3443 = vmatpush.bf16.msra.mxu0 %v2544
    %3444 = vmatpush.bf16.msra.mxu0 %v2536
    %3445 = vmatpush.bf16.msra.mxu0 %v2528
    %3446 = vmatpush.bf16.msra.mxu0 %v2520
    %3447 = vmatpush.bf16.msra.mxu0 %v2512
    %3448 = vmatmul.bf16.gmra.mxu0 %v233
    %v3449 = vpop.f32.mrf.mxu0
    %v3450 = vadd.f32 %v3437, %v3449
    %v3451 = vpop.f32.mrf.mxu0
    %3452 = vdwg.mxu0
    %3453 = vmatpush.bf16.msra.mxu0 %v2632
    %3454 = vmatpush.bf16.msra.mxu0 %v2624
    %3455 = vmatpush.bf16.msra.mxu0 %v2616
    %3456 = vmatpush.bf16.msra.mxu0 %v2608
    %3457 = vmatpush.bf16.msra.mxu0 %v2600
    %3458 = vmatpush.bf16.msra.mxu0 %v2592
    %3459 = vmatpush.bf16.msra.mxu0 %v2584
    %3460 = vmatpush.bf16.msra.mxu0 %v2576
    %3461 = vmatmul.bf16.gmra.mxu0 %v234
    %v3462 = vpop.f32.mrf.mxu0
    %v3463 = vadd.f32 %v3450, %v3462
    %v3464 = vpop.f32.mrf.mxu0
    %3465 = vdwg.mxu0
    %3466 = vmatpush.bf16.msra.mxu0 %v2696
    %3467 = vmatpush.bf16.msra.mxu0 %v2688
    %3468 = vmatpush.bf16.msra.mxu0 %v2680
    %3469 = vmatpush.bf16.msra.mxu0 %v2672
    %3470 = vmatpush.bf16.msra.mxu0 %v2664
    %3471 = vmatpush.bf16.msra.mxu0 %v2656
    %3472 = vmatpush.bf16.msra.mxu0 %v2648
    %3473 = vmatpush.bf16.msra.mxu0 %v2640
    %3474 = vmatmul.bf16.gmra.mxu0 %v235
    %v3475 = vpop.f32.mrf.mxu0
    %v3476 = vadd.f32 %v3463, %v3475
    %v3477 = vpop.f32.mrf.mxu0
    %3478 = vdwg.mxu0
    %3479 = vmatpush.bf16.msra.mxu0 0
    %3480 = vmatpush.bf16.msra.mxu0 %v3264
    %3481 = vmatpush.bf16.msra.mxu0 %v2744
    %3482 = vmatpush.bf16.msra.mxu0 %v2736
    %3483 = vmatpush.bf16.msra.mxu0 %v2728
    %3484 = vmatpush.bf16.msra.mxu0 %v2720
    %3485 = vmatpush.bf16.msra.mxu0 %v2712
    %3486 = vmatpush.bf16.msra.mxu0 %v2704
    %3487 = vmatmul.bf16.gmra.mxu0 %v3257
    %v3488 = vpop.f32.mrf.mxu0
    %v3489 = vadd.f32 %v3476, %v3488
    %v3490 = vpop.f32.mrf.mxu0
    %3491 = vdwg.mxu0
    %3492 = vmatpush.bf16.msra.mxu0 %v2313
    %3493 = vmatpush.bf16.msra.mxu0 %v2305
    %3494 = vmatpush.bf16.msra.mxu0 %v2297
    %3495 = vmatpush.bf16.msra.mxu0 %v2289
    %3496 = vmatpush.bf16.msra.mxu0 %v2281
    %3497 = vmatpush.bf16.msra.mxu0 %v2273
    %3498 = vmatpush.bf16.msra.mxu0 %v2265
    %3499 = vmatpush.bf16.msra.mxu0 %v2257
    %3500 = vmatmul.bf16.gmra.mxu0 %v229
    %v3501 = vpop.f32.mrf.mxu0
    %v3502 = vadd.f32 %v741, %v3501
    %v3503 = vpop.f32.mrf.mxu0
    %3504 = vdwg.mxu0
    %3505 = vmatpush.bf16.msra.mxu0 %v2377
    %3506 = vmatpush.bf16.msra.mxu0 %v2369
    %3507 = vmatpush.bf16.msra.mxu0 %v2361
    %3508 = vmatpush.bf16.msra.mxu0 %v2353
    %3509 = vmatpush.bf16.msra.mxu0 %v2345
    %3510 = vmatpush.bf16.msra.mxu0 %v2337
    %3511 = vmatpush.bf16.msra.mxu0 %v2329
    %3512 = vmatpush.bf16.msra.mxu0 %v2321
    %3513 = vmatmul.bf16.gmra.mxu0 %v230
    %v3514 = vpop.f32.mrf.mxu0
    %v3515 = vadd.f32 %v3502, %v3514
    %v3516 = vpop.f32.mrf.mxu0
    %3517 = vdwg.mxu0
    %3518 = vmatpush.bf16.msra.mxu0 %v2441
    %3519 = vmatpush.bf16.msra.mxu0 %v2433
    %3520 = vmatpush.bf16.msra.mxu0 %v2425
    %3521 = vmatpush.bf16.msra.mxu0 %v2417
    %3522 = vmatpush.bf16.msra.mxu0 %v2409
    %3523 = vmatpush.bf16.msra.mxu0 %v2401
    %3524 = vmatpush.bf16.msra.mxu0 %v2393
    %3525 = vmatpush.bf16.msra.mxu0 %v2385
    %3526 = vmatmul.bf16.gmra.mxu0 %v231
    %v3527 = vpop.f32.mrf.mxu0
    %v3528 = vadd.f32 %v3515, %v3527
    %v3529 = vpop.f32.mrf.mxu0
    %3530 = vdwg.mxu0
    %3531 = vmatpush.bf16.msra.mxu0 %v2505
    %3532 = vmatpush.bf16.msra.mxu0 %v2497
    %3533 = vmatpush.bf16.msra.mxu0 %v2489
    %3534 = vmatpush.bf16.msra.mxu0 %v2481
    %3535 = vmatpush.bf16.msra.mxu0 %v2473
    %3536 = vmatpush.bf16.msra.mxu0 %v2465
    %3537 = vmatpush.bf16.msra.mxu0 %v2457
    %3538 = vmatpush.bf16.msra.mxu0 %v2449
    %3539 = vmatmul.bf16.gmra.mxu0 %v232
    %v3540 = vpop.f32.mrf.mxu0
    %v3541 = vadd.f32 %v3528, %v3540
    %v3542 = vpop.f32.mrf.mxu0
    %3543 = vdwg.mxu0
    %3544 = vmatpush.bf16.msra.mxu0 %v2569
    %3545 = vmatpush.bf16.msra.mxu0 %v2561
    %3546 = vmatpush.bf16.msra.mxu0 %v2553
    %3547 = vmatpush.bf16.msra.mxu0 %v2545
    %3548 = vmatpush.bf16.msra.mxu0 %v2537
    %3549 = vmatpush.bf16.msra.mxu0 %v2529
    %3550 = vmatpush.bf16.msra.mxu0 %v2521
    %3551 = vmatpush.bf16.msra.mxu0 %v2513
    %3552 = vmatmul.bf16.gmra.mxu0 %v233
    %v3553 = vpop.f32.mrf.mxu0
    %v3554 = vadd.f32 %v3541, %v3553
    %v3555 = vpop.f32.mrf.mxu0
    %3556 = vdwg.mxu0
    %3557 = vmatpush.bf16.msra.mxu0 %v2633
    %3558 = vmatpush.bf16.msra.mxu0 %v2625
    %3559 = vmatpush.bf16.msra.mxu0 %v2617
    %3560 = vmatpush.bf16.msra.mxu0 %v2609
    %3561 = vmatpush.bf16.msra.mxu0 %v2601
    %3562 = vmatpush.bf16.msra.mxu0 %v2593
    %3563 = vmatpush.bf16.msra.mxu0 %v2585
    %3564 = vmatpush.bf16.msra.mxu0 %v2577
    %3565 = vmatmul.bf16.gmra.mxu0 %v234
    %v3566 = vpop.f32.mrf.mxu0
    %v3567 = vadd.f32 %v3554, %v3566
    %v3568 = vpop.f32.mrf.mxu0
    %3569 = vdwg.mxu0
    %3570 = vmatpush.bf16.msra.mxu0 %v2697
    %3571 = vmatpush.bf16.msra.mxu0 %v2689
    %3572 = vmatpush.bf16.msra.mxu0 %v2681
    %3573 = vmatpush.bf16.msra.mxu0 %v2673
    %3574 = vmatpush.bf16.msra.mxu0 %v2665
    %3575 = vmatpush.bf16.msra.mxu0 %v2657
    %3576 = vmatpush.bf16.msra.mxu0 %v2649
    %3577 = vmatpush.bf16.msra.mxu0 %v2641
    %3578 = vmatmul.bf16.gmra.mxu0 %v235
    %v3579 = vpop.f32.mrf.mxu0
    %v3580 = vadd.f32 %v3567, %v3579
    %v3581 = vpop.f32.mrf.mxu0
    %3582 = vdwg.mxu0
    %3583 = vmatpush.bf16.msra.mxu0 0
    %3584 = vmatpush.bf16.msra.mxu0 %v3267
    %3585 = vmatpush.bf16.msra.mxu0 %v2745
    %3586 = vmatpush.bf16.msra.mxu0 %v2737
    %3587 = vmatpush.bf16.msra.mxu0 %v2729
    %3588 = vmatpush.bf16.msra.mxu0 %v2721
    %3589 = vmatpush.bf16.msra.mxu0 %v2713
    %3590 = vmatpush.bf16.msra.mxu0 %v2705
    %3591 = vmatmul.bf16.gmra.mxu0 %v3257
    %v3592 = vpop.f32.mrf.mxu0
    %v3593 = vadd.f32 %v3580, %v3592
    %v3594 = vpop.f32.mrf.mxu0
    %3595 = vdwg.mxu0
    %3596 = vmatpush.bf16.msra.mxu0 %v2314
    %3597 = vmatpush.bf16.msra.mxu0 %v2306
    %3598 = vmatpush.bf16.msra.mxu0 %v2298
    %3599 = vmatpush.bf16.msra.mxu0 %v2290
    %3600 = vmatpush.bf16.msra.mxu0 %v2282
    %3601 = vmatpush.bf16.msra.mxu0 %v2274
    %3602 = vmatpush.bf16.msra.mxu0 %v2266
    %3603 = vmatpush.bf16.msra.mxu0 %v2258
    %3604 = vmatmul.bf16.gmra.mxu0 %v229
    %v3605 = vpop.f32.mrf.mxu0
    %v3606 = vadd.f32 %v742, %v3605
    %v3607 = vpop.f32.mrf.mxu0
    %3608 = vdwg.mxu0
    %3609 = vmatpush.bf16.msra.mxu0 %v2378
    %3610 = vmatpush.bf16.msra.mxu0 %v2370
    %3611 = vmatpush.bf16.msra.mxu0 %v2362
    %3612 = vmatpush.bf16.msra.mxu0 %v2354
    %3613 = vmatpush.bf16.msra.mxu0 %v2346
    %3614 = vmatpush.bf16.msra.mxu0 %v2338
    %3615 = vmatpush.bf16.msra.mxu0 %v2330
    %3616 = vmatpush.bf16.msra.mxu0 %v2322
    %3617 = vmatmul.bf16.gmra.mxu0 %v230
    %v3618 = vpop.f32.mrf.mxu0
    %v3619 = vadd.f32 %v3606, %v3618
    %v3620 = vpop.f32.mrf.mxu0
    %3621 = vdwg.mxu0
    %3622 = vmatpush.bf16.msra.mxu0 %v2442
    %3623 = vmatpush.bf16.msra.mxu0 %v2434
    %3624 = vmatpush.bf16.msra.mxu0 %v2426
    %3625 = vmatpush.bf16.msra.mxu0 %v2418
    %3626 = vmatpush.bf16.msra.mxu0 %v2410
    %3627 = vmatpush.bf16.msra.mxu0 %v2402
    %3628 = vmatpush.bf16.msra.mxu0 %v2394
    %3629 = vmatpush.bf16.msra.mxu0 %v2386
    %3630 = vmatmul.bf16.gmra.mxu0 %v231
    %v3631 = vpop.f32.mrf.mxu0
    %v3632 = vadd.f32 %v3619, %v3631
    %v3633 = vpop.f32.mrf.mxu0
    %3634 = vdwg.mxu0
    %3635 = vmatpush.bf16.msra.mxu0 %v2506
    %3636 = vmatpush.bf16.msra.mxu0 %v2498
    %3637 = vmatpush.bf16.msra.mxu0 %v2490
    %3638 = vmatpush.bf16.msra.mxu0 %v2482
    %3639 = vmatpush.bf16.msra.mxu0 %v2474
    %3640 = vmatpush.bf16.msra.mxu0 %v2466
    %3641 = vmatpush.bf16.msra.mxu0 %v2458
    %3642 = vmatpush.bf16.msra.mxu0 %v2450
    %3643 = vmatmul.bf16.gmra.mxu0 %v232
    %v3644 = vpop.f32.mrf.mxu0
    %v3645 = vadd.f32 %v3632, %v3644
    %v3646 = vpop.f32.mrf.mxu0
    %3647 = vdwg.mxu0
    %3648 = vmatpush.bf16.msra.mxu0 %v2570
    %3649 = vmatpush.bf16.msra.mxu0 %v2562
    %3650 = vmatpush.bf16.msra.mxu0 %v2554
    %3651 = vmatpush.bf16.msra.mxu0 %v2546
    %3652 = vmatpush.bf16.msra.mxu0 %v2538
    %3653 = vmatpush.bf16.msra.mxu0 %v2530
    %3654 = vmatpush.bf16.msra.mxu0 %v2522
    %3655 = vmatpush.bf16.msra.mxu0 %v2514
    %3656 = vmatmul.bf16.gmra.mxu0 %v233
    %v3657 = vpop.f32.mrf.mxu0
    %v3658 = vadd.f32 %v3645, %v3657
    %v3659 = vpop.f32.mrf.mxu0
    %3660 = vdwg.mxu0
    %3661 = vmatpush.bf16.msra.mxu0 %v2634
    %3662 = vmatpush.bf16.msra.mxu0 %v2626
    %3663 = vmatpush.bf16.msra.mxu0 %v2618
    %3664 = vmatpush.bf16.msra.mxu0 %v2610
    %3665 = vmatpush.bf16.msra.mxu0 %v2602
    %3666 = vmatpush.bf16.msra.mxu0 %v2594
    %3667 = vmatpush.bf16.msra.mxu0 %v2586
    %3668 = vmatpush.bf16.msra.mxu0 %v2578
    %3669 = vmatmul.bf16.gmra.mxu0 %v234
    %v3670 = vpop.f32.mrf.mxu0
    %v3671 = vadd.f32 %v3658, %v3670
    %v3672 = vpop.f32.mrf.mxu0
    %3673 = vdwg.mxu0
    %3674 = vmatpush.bf16.msra.mxu0 %v2698
    %3675 = vmatpush.bf16.msra.mxu0 %v2690
    %3676 = vmatpush.bf16.msra.mxu0 %v2682
    %3677 = vmatpush.bf16.msra.mxu0 %v2674
    %3678 = vmatpush.bf16.msra.mxu0 %v2666
    %3679 = vmatpush.bf16.msra.mxu0 %v2658
    %3680 = vmatpush.bf16.msra.mxu0 %v2650
    %3681 = vmatpush.bf16.msra.mxu0 %v2642
    %3682 = vmatmul.bf16.gmra.mxu0 %v235
    %v3683 = vpop.f32.mrf.mxu0
    %v3684 = vadd.f32 %v3671, %v3683
    %v3685 = vpop.f32.mrf.mxu0
    %3686 = vdwg.mxu0
    %3687 = vmatpush.bf16.msra.mxu0 0
    %3688 = vmatpush.bf16.msra.mxu0 %v3270
    %3689 = vmatpush.bf16.msra.mxu0 %v2746
    %3690 = vmatpush.bf16.msra.mxu0 %v2738
    %3691 = vmatpush.bf16.msra.mxu0 %v2730
    %3692 = vmatpush.bf16.msra.mxu0 %v2722
    %3693 = vmatpush.bf16.msra.mxu0 %v2714
    %3694 = vmatpush.bf16.msra.mxu0 %v2706
    %3695 = vmatmul.bf16.gmra.mxu0 %v3257
    %v3696 = vpop.f32.mrf.mxu0
    %v3697 = vadd.f32 %v3684, %v3696
    %v3698 = vpop.f32.mrf.mxu0
    %3699 = vdwg.mxu0
    %3700 = vmatpush.bf16.msra.mxu0 %v2315
    %3701 = vmatpush.bf16.msra.mxu0 %v2307
    %3702 = vmatpush.bf16.msra.mxu0 %v2299
    %3703 = vmatpush.bf16.msra.mxu0 %v2291
    %3704 = vmatpush.bf16.msra.mxu0 %v2283
    %3705 = vmatpush.bf16.msra.mxu0 %v2275
    %3706 = vmatpush.bf16.msra.mxu0 %v2267
    %3707 = vmatpush.bf16.msra.mxu0 %v2259
    %3708 = vmatmul.bf16.gmra.mxu0 %v229
    %v3709 = vpop.f32.mrf.mxu0
    %v3710 = vadd.f32 %v743, %v3709
    %v3711 = vpop.f32.mrf.mxu0
    %3712 = vdwg.mxu0
    %3713 = vmatpush.bf16.msra.mxu0 %v2379
    %3714 = vmatpush.bf16.msra.mxu0 %v2371
    %3715 = vmatpush.bf16.msra.mxu0 %v2363
    %3716 = vmatpush.bf16.msra.mxu0 %v2355
    %3717 = vmatpush.bf16.msra.mxu0 %v2347
    %3718 = vmatpush.bf16.msra.mxu0 %v2339
    %3719 = vmatpush.bf16.msra.mxu0 %v2331
    %3720 = vmatpush.bf16.msra.mxu0 %v2323
    %3721 = vmatmul.bf16.gmra.mxu0 %v230
    %v3722 = vpop.f32.mrf.mxu0
    %v3723 = vadd.f32 %v3710, %v3722
    %v3724 = vpop.f32.mrf.mxu0
    %3725 = vdwg.mxu0
    %3726 = vmatpush.bf16.msra.mxu0 %v2443
    %3727 = vmatpush.bf16.msra.mxu0 %v2435
    %3728 = vmatpush.bf16.msra.mxu0 %v2427
    %3729 = vmatpush.bf16.msra.mxu0 %v2419
    %3730 = vmatpush.bf16.msra.mxu0 %v2411
    %3731 = vmatpush.bf16.msra.mxu0 %v2403
    %3732 = vmatpush.bf16.msra.mxu0 %v2395
    %3733 = vmatpush.bf16.msra.mxu0 %v2387
    %3734 = vmatmul.bf16.gmra.mxu0 %v231
    %v3735 = vpop.f32.mrf.mxu0
    %v3736 = vadd.f32 %v3723, %v3735
    %v3737 = vpop.f32.mrf.mxu0
    %3738 = vdwg.mxu0
    %3739 = vmatpush.bf16.msra.mxu0 %v2507
    %3740 = vmatpush.bf16.msra.mxu0 %v2499
    %3741 = vmatpush.bf16.msra.mxu0 %v2491
    %3742 = vmatpush.bf16.msra.mxu0 %v2483
    %3743 = vmatpush.bf16.msra.mxu0 %v2475
    %3744 = vmatpush.bf16.msra.mxu0 %v2467
    %3745 = vmatpush.bf16.msra.mxu0 %v2459
    %3746 = vmatpush.bf16.msra.mxu0 %v2451
    %3747 = vmatmul.bf16.gmra.mxu0 %v232
    %v3748 = vpop.f32.mrf.mxu0
    %v3749 = vadd.f32 %v3736, %v3748
    %v3750 = vpop.f32.mrf.mxu0
    %3751 = vdwg.mxu0
    %3752 = vmatpush.bf16.msra.mxu0 %v2571
    %3753 = vmatpush.bf16.msra.mxu0 %v2563
    %3754 = vmatpush.bf16.msra.mxu0 %v2555
    %3755 = vmatpush.bf16.msra.mxu0 %v2547
    %3756 = vmatpush.bf16.msra.mxu0 %v2539
    %3757 = vmatpush.bf16.msra.mxu0 %v2531
    %3758 = vmatpush.bf16.msra.mxu0 %v2523
    %3759 = vmatpush.bf16.msra.mxu0 %v2515
    %3760 = vmatmul.bf16.gmra.mxu0 %v233
    %v3761 = vpop.f32.mrf.mxu0
    %v3762 = vadd.f32 %v3749, %v3761
    %v3763 = vpop.f32.mrf.mxu0
    %3764 = vdwg.mxu0
    %3765 = vmatpush.bf16.msra.mxu0 %v2635
    %3766 = vmatpush.bf16.msra.mxu0 %v2627
    %3767 = vmatpush.bf16.msra.mxu0 %v2619
    %3768 = vmatpush.bf16.msra.mxu0 %v2611
    %3769 = vmatpush.bf16.msra.mxu0 %v2603
    %3770 = vmatpush.bf16.msra.mxu0 %v2595
    %3771 = vmatpush.bf16.msra.mxu0 %v2587
    %3772 = vmatpush.bf16.msra.mxu0 %v2579
    %3773 = vmatmul.bf16.gmra.mxu0 %v234
    %v3774 = vpop.f32.mrf.mxu0
    %v3775 = vadd.f32 %v3762, %v3774
    %v3776 = vpop.f32.mrf.mxu0
    %3777 = vdwg.mxu0
    %3778 = vmatpush.bf16.msra.mxu0 %v2699
    %3779 = vmatpush.bf16.msra.mxu0 %v2691
    %3780 = vmatpush.bf16.msra.mxu0 %v2683
    %3781 = vmatpush.bf16.msra.mxu0 %v2675
    %3782 = vmatpush.bf16.msra.mxu0 %v2667
    %3783 = vmatpush.bf16.msra.mxu0 %v2659
    %3784 = vmatpush.bf16.msra.mxu0 %v2651
    %3785 = vmatpush.bf16.msra.mxu0 %v2643
    %3786 = vmatmul.bf16.gmra.mxu0 %v235
    %v3787 = vpop.f32.mrf.mxu0
    %v3788 = vadd.f32 %v3775, %v3787
    %v3789 = vpop.f32.mrf.mxu0
    %3790 = vdwg.mxu0
    %3791 = vmatpush.bf16.msra.mxu0 0
    %3792 = vmatpush.bf16.msra.mxu0 %v3273
    %3793 = vmatpush.bf16.msra.mxu0 %v2747
    %3794 = vmatpush.bf16.msra.mxu0 %v2739
    %3795 = vmatpush.bf16.msra.mxu0 %v2731
    %3796 = vmatpush.bf16.msra.mxu0 %v2723
    %3797 = vmatpush.bf16.msra.mxu0 %v2715
    %3798 = vmatpush.bf16.msra.mxu0 %v2707
    %3799 = vmatmul.bf16.gmra.mxu0 %v3257
    %v3800 = vpop.f32.mrf.mxu0
    %v3801 = vadd.f32 %v3788, %v3800
    %v3802 = vpop.f32.mrf.mxu0
    %3803 = vdwg.mxu0
    %3804 = vmatpush.bf16.msra.mxu0 %v2316
    %3805 = vmatpush.bf16.msra.mxu0 %v2308
    %3806 = vmatpush.bf16.msra.mxu0 %v2300
    %3807 = vmatpush.bf16.msra.mxu0 %v2292
    %3808 = vmatpush.bf16.msra.mxu0 %v2284
    %3809 = vmatpush.bf16.msra.mxu0 %v2276
    %3810 = vmatpush.bf16.msra.mxu0 %v2268
    %3811 = vmatpush.bf16.msra.mxu0 %v2260
    %3812 = vmatmul.bf16.gmra.mxu0 %v229
    %v3813 = vpop.f32.mrf.mxu0
    %v3814 = vadd.f32 %v744, %v3813
    %v3815 = vpop.f32.mrf.mxu0
    %3816 = vdwg.mxu0
    %3817 = vmatpush.bf16.msra.mxu0 %v2380
    %3818 = vmatpush.bf16.msra.mxu0 %v2372
    %3819 = vmatpush.bf16.msra.mxu0 %v2364
    %3820 = vmatpush.bf16.msra.mxu0 %v2356
    %3821 = vmatpush.bf16.msra.mxu0 %v2348
    %3822 = vmatpush.bf16.msra.mxu0 %v2340
    %3823 = vmatpush.bf16.msra.mxu0 %v2332
    %3824 = vmatpush.bf16.msra.mxu0 %v2324
    %3825 = vmatmul.bf16.gmra.mxu0 %v230
    %v3826 = vpop.f32.mrf.mxu0
    %v3827 = vadd.f32 %v3814, %v3826
    %v3828 = vpop.f32.mrf.mxu0
    %3829 = vdwg.mxu0
    %3830 = vmatpush.bf16.msra.mxu0 %v2444
    %3831 = vmatpush.bf16.msra.mxu0 %v2436
    %3832 = vmatpush.bf16.msra.mxu0 %v2428
    %3833 = vmatpush.bf16.msra.mxu0 %v2420
    %3834 = vmatpush.bf16.msra.mxu0 %v2412
    %3835 = vmatpush.bf16.msra.mxu0 %v2404
    %3836 = vmatpush.bf16.msra.mxu0 %v2396
    %3837 = vmatpush.bf16.msra.mxu0 %v2388
    %3838 = vmatmul.bf16.gmra.mxu0 %v231
    %v3839 = vpop.f32.mrf.mxu0
    %v3840 = vadd.f32 %v3827, %v3839
    %v3841 = vpop.f32.mrf.mxu0
    %3842 = vdwg.mxu0
    %3843 = vmatpush.bf16.msra.mxu0 %v2508
    %3844 = vmatpush.bf16.msra.mxu0 %v2500
    %3845 = vmatpush.bf16.msra.mxu0 %v2492
    %3846 = vmatpush.bf16.msra.mxu0 %v2484
    %3847 = vmatpush.bf16.msra.mxu0 %v2476
    %3848 = vmatpush.bf16.msra.mxu0 %v2468
    %3849 = vmatpush.bf16.msra.mxu0 %v2460
    %3850 = vmatpush.bf16.msra.mxu0 %v2452
    %3851 = vmatmul.bf16.gmra.mxu0 %v232
    %v3852 = vpop.f32.mrf.mxu0
    %v3853 = vadd.f32 %v3840, %v3852
    %v3854 = vpop.f32.mrf.mxu0
    %3855 = vdwg.mxu0
    %3856 = vmatpush.bf16.msra.mxu0 %v2572
    %3857 = vmatpush.bf16.msra.mxu0 %v2564
    %3858 = vmatpush.bf16.msra.mxu0 %v2556
    %3859 = vmatpush.bf16.msra.mxu0 %v2548
    %3860 = vmatpush.bf16.msra.mxu0 %v2540
    %3861 = vmatpush.bf16.msra.mxu0 %v2532
    %3862 = vmatpush.bf16.msra.mxu0 %v2524
    %3863 = vmatpush.bf16.msra.mxu0 %v2516
    %3864 = vmatmul.bf16.gmra.mxu0 %v233
    %v3865 = vpop.f32.mrf.mxu0
    %v3866 = vadd.f32 %v3853, %v3865
    %v3867 = vpop.f32.mrf.mxu0
    %3868 = vdwg.mxu0
    %3869 = vmatpush.bf16.msra.mxu0 %v2636
    %3870 = vmatpush.bf16.msra.mxu0 %v2628
    %3871 = vmatpush.bf16.msra.mxu0 %v2620
    %3872 = vmatpush.bf16.msra.mxu0 %v2612
    %3873 = vmatpush.bf16.msra.mxu0 %v2604
    %3874 = vmatpush.bf16.msra.mxu0 %v2596
    %3875 = vmatpush.bf16.msra.mxu0 %v2588
    %3876 = vmatpush.bf16.msra.mxu0 %v2580
    %3877 = vmatmul.bf16.gmra.mxu0 %v234
    %v3878 = vpop.f32.mrf.mxu0
    %v3879 = vadd.f32 %v3866, %v3878
    %v3880 = vpop.f32.mrf.mxu0
    %3881 = vdwg.mxu0
    %3882 = vmatpush.bf16.msra.mxu0 %v2700
    %3883 = vmatpush.bf16.msra.mxu0 %v2692
    %3884 = vmatpush.bf16.msra.mxu0 %v2684
    %3885 = vmatpush.bf16.msra.mxu0 %v2676
    %3886 = vmatpush.bf16.msra.mxu0 %v2668
    %3887 = vmatpush.bf16.msra.mxu0 %v2660
    %3888 = vmatpush.bf16.msra.mxu0 %v2652
    %3889 = vmatpush.bf16.msra.mxu0 %v2644
    %3890 = vmatmul.bf16.gmra.mxu0 %v235
    %v3891 = vpop.f32.mrf.mxu0
    %v3892 = vadd.f32 %v3879, %v3891
    %v3893 = vpop.f32.mrf.mxu0
    %3894 = vdwg.mxu0
    %3895 = vmatpush.bf16.msra.mxu0 0
    %3896 = vmatpush.bf16.msra.mxu0 %v3276
    %3897 = vmatpush.bf16.msra.mxu0 %v2748
    %3898 = vmatpush.bf16.msra.mxu0 %v2740
    %3899 = vmatpush.bf16.msra.mxu0 %v2732
    %3900 = vmatpush.bf16.msra.mxu0 %v2724
    %3901 = vmatpush.bf16.msra.mxu0 %v2716
    %3902 = vmatpush.bf16.msra.mxu0 %v2708
    %3903 = vmatmul.bf16.gmra.mxu0 %v3257
    %v3904 = vpop.f32.mrf.mxu0
    %v3905 = vadd.f32 %v3892, %v3904
    %v3906 = vpop.f32.mrf.mxu0
    %3907 = vdwg.mxu0
    %3908 = vmatpush.bf16.msra.mxu0 %v2317
    %3909 = vmatpush.bf16.msra.mxu0 %v2309
    %3910 = vmatpush.bf16.msra.mxu0 %v2301
    %3911 = vmatpush.bf16.msra.mxu0 %v2293
    %3912 = vmatpush.bf16.msra.mxu0 %v2285
    %3913 = vmatpush.bf16.msra.mxu0 %v2277
    %3914 = vmatpush.bf16.msra.mxu0 %v2269
    %3915 = vmatpush.bf16.msra.mxu0 %v2261
    %3916 = vmatmul.bf16.gmra.mxu0 %v229
    %v3917 = vpop.f32.mrf.mxu0
    %v3918 = vadd.f32 %v745, %v3917
    %v3919 = vpop.f32.mrf.mxu0
    %3920 = vdwg.mxu0
    %3921 = vmatpush.bf16.msra.mxu0 %v2381
    %3922 = vmatpush.bf16.msra.mxu0 %v2373
    %3923 = vmatpush.bf16.msra.mxu0 %v2365
    %3924 = vmatpush.bf16.msra.mxu0 %v2357
    %3925 = vmatpush.bf16.msra.mxu0 %v2349
    %3926 = vmatpush.bf16.msra.mxu0 %v2341
    %3927 = vmatpush.bf16.msra.mxu0 %v2333
    %3928 = vmatpush.bf16.msra.mxu0 %v2325
    %3929 = vmatmul.bf16.gmra.mxu0 %v230
    %v3930 = vpop.f32.mrf.mxu0
    %v3931 = vadd.f32 %v3918, %v3930
    %v3932 = vpop.f32.mrf.mxu0
    %3933 = vdwg.mxu0
    %3934 = vmatpush.bf16.msra.mxu0 %v2445
    %3935 = vmatpush.bf16.msra.mxu0 %v2437
    %3936 = vmatpush.bf16.msra.mxu0 %v2429
    %3937 = vmatpush.bf16.msra.mxu0 %v2421
    %3938 = vmatpush.bf16.msra.mxu0 %v2413
    %3939 = vmatpush.bf16.msra.mxu0 %v2405
    %3940 = vmatpush.bf16.msra.mxu0 %v2397
    %3941 = vmatpush.bf16.msra.mxu0 %v2389
    %3942 = vmatmul.bf16.gmra.mxu0 %v231
    %v3943 = vpop.f32.mrf.mxu0
    %v3944 = vadd.f32 %v3931, %v3943
    %v3945 = vpop.f32.mrf.mxu0
    %3946 = vdwg.mxu0
    %3947 = vmatpush.bf16.msra.mxu0 %v2509
    %3948 = vmatpush.bf16.msra.mxu0 %v2501
    %3949 = vmatpush.bf16.msra.mxu0 %v2493
    %3950 = vmatpush.bf16.msra.mxu0 %v2485
    %3951 = vmatpush.bf16.msra.mxu0 %v2477
    %3952 = vmatpush.bf16.msra.mxu0 %v2469
    %3953 = vmatpush.bf16.msra.mxu0 %v2461
    %3954 = vmatpush.bf16.msra.mxu0 %v2453
    %3955 = vmatmul.bf16.gmra.mxu0 %v232
    %v3956 = vpop.f32.mrf.mxu0
    %v3957 = vadd.f32 %v3944, %v3956
    %v3958 = vpop.f32.mrf.mxu0
    %3959 = vdwg.mxu0
    %3960 = vmatpush.bf16.msra.mxu0 %v2573
    %3961 = vmatpush.bf16.msra.mxu0 %v2565
    %3962 = vmatpush.bf16.msra.mxu0 %v2557
    %3963 = vmatpush.bf16.msra.mxu0 %v2549
    %3964 = vmatpush.bf16.msra.mxu0 %v2541
    %3965 = vmatpush.bf16.msra.mxu0 %v2533
    %3966 = vmatpush.bf16.msra.mxu0 %v2525
    %3967 = vmatpush.bf16.msra.mxu0 %v2517
    %3968 = vmatmul.bf16.gmra.mxu0 %v233
    %v3969 = vpop.f32.mrf.mxu0
    %v3970 = vadd.f32 %v3957, %v3969
    %v3971 = vpop.f32.mrf.mxu0
    %3972 = vdwg.mxu0
    %3973 = vmatpush.bf16.msra.mxu0 %v2637
    %3974 = vmatpush.bf16.msra.mxu0 %v2629
    %3975 = vmatpush.bf16.msra.mxu0 %v2621
    %3976 = vmatpush.bf16.msra.mxu0 %v2613
    %3977 = vmatpush.bf16.msra.mxu0 %v2605
    %3978 = vmatpush.bf16.msra.mxu0 %v2597
    %3979 = vmatpush.bf16.msra.mxu0 %v2589
    %3980 = vmatpush.bf16.msra.mxu0 %v2581
    %3981 = vmatmul.bf16.gmra.mxu0 %v234
    %v3982 = vpop.f32.mrf.mxu0
    %v3983 = vadd.f32 %v3970, %v3982
    %v3984 = vpop.f32.mrf.mxu0
    %3985 = vdwg.mxu0
    %3986 = vmatpush.bf16.msra.mxu0 %v2701
    %3987 = vmatpush.bf16.msra.mxu0 %v2693
    %3988 = vmatpush.bf16.msra.mxu0 %v2685
    %3989 = vmatpush.bf16.msra.mxu0 %v2677
    %3990 = vmatpush.bf16.msra.mxu0 %v2669
    %3991 = vmatpush.bf16.msra.mxu0 %v2661
    %3992 = vmatpush.bf16.msra.mxu0 %v2653
    %3993 = vmatpush.bf16.msra.mxu0 %v2645
    %3994 = vmatmul.bf16.gmra.mxu0 %v235
    %v3995 = vpop.f32.mrf.mxu0
    %v3996 = vadd.f32 %v3983, %v3995
    %v3997 = vpop.f32.mrf.mxu0
    %3998 = vdwg.mxu0
    %3999 = vmatpush.bf16.msra.mxu0 0
    %4000 = vmatpush.bf16.msra.mxu0 %v3279
    %4001 = vmatpush.bf16.msra.mxu0 %v2749
    %4002 = vmatpush.bf16.msra.mxu0 %v2741
    %4003 = vmatpush.bf16.msra.mxu0 %v2733
    %4004 = vmatpush.bf16.msra.mxu0 %v2725
    %4005 = vmatpush.bf16.msra.mxu0 %v2717
    %4006 = vmatpush.bf16.msra.mxu0 %v2709
    %4007 = vmatmul.bf16.gmra.mxu0 %v3257
    %v4008 = vpop.f32.mrf.mxu0
    %v4009 = vadd.f32 %v3996, %v4008
    %v4010 = vpop.f32.mrf.mxu0
    %4011 = vdwg.mxu0
    %4012 = vmatpush.bf16.msra.mxu0 %v2318
    %4013 = vmatpush.bf16.msra.mxu0 %v2310
    %4014 = vmatpush.bf16.msra.mxu0 %v2302
    %4015 = vmatpush.bf16.msra.mxu0 %v2294
    %4016 = vmatpush.bf16.msra.mxu0 %v2286
    %4017 = vmatpush.bf16.msra.mxu0 %v2278
    %4018 = vmatpush.bf16.msra.mxu0 %v2270
    %4019 = vmatpush.bf16.msra.mxu0 %v2262
    %4020 = vmatmul.bf16.gmra.mxu0 %v229
    %v4021 = vpop.f32.mrf.mxu0
    %v4022 = vadd.f32 %v746, %v4021
    %v4023 = vpop.f32.mrf.mxu0
    %4024 = vdwg.mxu0
    %4025 = vmatpush.bf16.msra.mxu0 %v2382
    %4026 = vmatpush.bf16.msra.mxu0 %v2374
    %4027 = vmatpush.bf16.msra.mxu0 %v2366
    %4028 = vmatpush.bf16.msra.mxu0 %v2358
    %4029 = vmatpush.bf16.msra.mxu0 %v2350
    %4030 = vmatpush.bf16.msra.mxu0 %v2342
    %4031 = vmatpush.bf16.msra.mxu0 %v2334
    %4032 = vmatpush.bf16.msra.mxu0 %v2326
    %4033 = vmatmul.bf16.gmra.mxu0 %v230
    %v4034 = vpop.f32.mrf.mxu0
    %v4035 = vadd.f32 %v4022, %v4034
    %v4036 = vpop.f32.mrf.mxu0
    %4037 = vdwg.mxu0
    %4038 = vmatpush.bf16.msra.mxu0 %v2446
    %4039 = vmatpush.bf16.msra.mxu0 %v2438
    %4040 = vmatpush.bf16.msra.mxu0 %v2430
    %4041 = vmatpush.bf16.msra.mxu0 %v2422
    %4042 = vmatpush.bf16.msra.mxu0 %v2414
    %4043 = vmatpush.bf16.msra.mxu0 %v2406
    %4044 = vmatpush.bf16.msra.mxu0 %v2398
    %4045 = vmatpush.bf16.msra.mxu0 %v2390
    %4046 = vmatmul.bf16.gmra.mxu0 %v231
    %v4047 = vpop.f32.mrf.mxu0
    %v4048 = vadd.f32 %v4035, %v4047
    %v4049 = vpop.f32.mrf.mxu0
    %4050 = vdwg.mxu0
    %4051 = vmatpush.bf16.msra.mxu0 %v2510
    %4052 = vmatpush.bf16.msra.mxu0 %v2502
    %4053 = vmatpush.bf16.msra.mxu0 %v2494
    %4054 = vmatpush.bf16.msra.mxu0 %v2486
    %4055 = vmatpush.bf16.msra.mxu0 %v2478
    %4056 = vmatpush.bf16.msra.mxu0 %v2470
    %4057 = vmatpush.bf16.msra.mxu0 %v2462
    %4058 = vmatpush.bf16.msra.mxu0 %v2454
    %4059 = vmatmul.bf16.gmra.mxu0 %v232
    %v4060 = vpop.f32.mrf.mxu0
    %v4061 = vadd.f32 %v4048, %v4060
    %v4062 = vpop.f32.mrf.mxu0
    %4063 = vdwg.mxu0
    %4064 = vmatpush.bf16.msra.mxu0 %v2574
    %4065 = vmatpush.bf16.msra.mxu0 %v2566
    %4066 = vmatpush.bf16.msra.mxu0 %v2558
    %4067 = vmatpush.bf16.msra.mxu0 %v2550
    %4068 = vmatpush.bf16.msra.mxu0 %v2542
    %4069 = vmatpush.bf16.msra.mxu0 %v2534
    %4070 = vmatpush.bf16.msra.mxu0 %v2526
    %4071 = vmatpush.bf16.msra.mxu0 %v2518
    %4072 = vmatmul.bf16.gmra.mxu0 %v233
    %v4073 = vpop.f32.mrf.mxu0
    %v4074 = vadd.f32 %v4061, %v4073
    %v4075 = vpop.f32.mrf.mxu0
    %4076 = vdwg.mxu0
    %4077 = vmatpush.bf16.msra.mxu0 %v2638
    %4078 = vmatpush.bf16.msra.mxu0 %v2630
    %4079 = vmatpush.bf16.msra.mxu0 %v2622
    %4080 = vmatpush.bf16.msra.mxu0 %v2614
    %4081 = vmatpush.bf16.msra.mxu0 %v2606
    %4082 = vmatpush.bf16.msra.mxu0 %v2598
    %4083 = vmatpush.bf16.msra.mxu0 %v2590
    %4084 = vmatpush.bf16.msra.mxu0 %v2582
    %4085 = vmatmul.bf16.gmra.mxu0 %v234
    %v4086 = vpop.f32.mrf.mxu0
    %v4087 = vadd.f32 %v4074, %v4086
    %v4088 = vpop.f32.mrf.mxu0
    %4089 = vdwg.mxu0
    %4090 = vmatpush.bf16.msra.mxu0 %v2702
    %4091 = vmatpush.bf16.msra.mxu0 %v2694
    %4092 = vmatpush.bf16.msra.mxu0 %v2686
    %4093 = vmatpush.bf16.msra.mxu0 %v2678
    %4094 = vmatpush.bf16.msra.mxu0 %v2670
    %4095 = vmatpush.bf16.msra.mxu0 %v2662
    %4096 = vmatpush.bf16.msra.mxu0 %v2654
    %4097 = vmatpush.bf16.msra.mxu0 %v2646
    %4098 = vmatmul.bf16.gmra.mxu0 %v235
    %v4099 = vpop.f32.mrf.mxu0
    %v4100 = vadd.f32 %v4087, %v4099
    %v4101 = vpop.f32.mrf.mxu0
    %4102 = vdwg.mxu0
    %4103 = vmatpush.bf16.msra.mxu0 0
    %4104 = vmatpush.bf16.msra.mxu0 %v3282
    %4105 = vmatpush.bf16.msra.mxu0 %v2750
    %4106 = vmatpush.bf16.msra.mxu0 %v2742
    %4107 = vmatpush.bf16.msra.mxu0 %v2734
    %4108 = vmatpush.bf16.msra.mxu0 %v2726
    %4109 = vmatpush.bf16.msra.mxu0 %v2718
    %4110 = vmatpush.bf16.msra.mxu0 %v2710
    %4111 = vmatmul.bf16.gmra.mxu0 %v3257
    %v4112 = vpop.f32.mrf.mxu0
    %v4113 = vadd.f32 %v4100, %v4112
    %v4114 = vpop.f32.mrf.mxu0
    %4115 = vdwg.mxu0
    %v4116 = vpack.c.bf16 %v3385, %v3385
    %v4117 = vpack.c.bf16 %v3489, %v3489
    %v4118 = vpack.c.bf16 %v3593, %v3593
    %v4119 = vpack.c.bf16 %v3697, %v3697
    %v4120 = vpack.c.bf16 %v3801, %v3801
    %v4121 = vpack.c.bf16 %v3905, %v3905
    %v4122 = vpack.c.bf16 %v4009, %v4009
    %v4123 = vpack.c.bf16 %v4113, %v4113
    %v4124 = vld [vmem:[%s5] sm:$0xff]
    %v4125 = vld [vmem:[%s5 + $0x8] sm:$0xff]
    %v4126 = vld [vmem:[%s5 + $0x10] sm:$0xff]
    %v4127 = vld [vmem:[%s5 + $0x18] sm:$0xf]
    %v4128 = vld [vmem:[%s5 + $0x1c] sm:$0xff]
    %v4129 = vld [vmem:[%s5 + $0x24] sm:$0xff]
    %v4130 = vld [vmem:[%s5 + $0x2c] sm:$0xff]
    %v4131 = vld [vmem:[%s5 + $0x34] sm:$0xf]
    %v4132 = vld [vmem:[%s5 + $0x38] sm:$0xff]
    %v4133 = vld [vmem:[%s5 + $0x40] sm:$0xff]
    %v4134 = vld [vmem:[%s5 + $0x48] sm:$0xff]
    %v4135 = vld [vmem:[%s5 + $0x50] sm:$0xf]
    %v4136 = vld [vmem:[%s5 + $0x54] sm:$0xff]
    %v4137 = vld [vmem:[%s5 + $0x5c] sm:$0xff]
    %v4138 = vld [vmem:[%s5 + $0x64] sm:$0xff]
    %v4139 = vld [vmem:[%s5 + $0x6c] sm:$0xf]
    %v4140 = vld [vmem:[%s5 + $0x70] sm:$0xff]
    %v4141 = vld [vmem:[%s5 + $0x78] sm:$0xff]
    %v4142 = vld [vmem:[%s5 + $0x80] sm:$0xff]
    %v4143 = vld [vmem:[%s5 + $0x88] sm:$0xf]
    %v4144 = vld [vmem:[%s5 + $0x8c] sm:$0xff]
    %v4145 = vld [vmem:[%s5 + $0x94] sm:$0xff]
    %v4146 = vld [vmem:[%s5 + $0x9c] sm:$0xff]
    %v4147 = vld [vmem:[%s5 + $0xa4] sm:$0xf]
    %v4148 = vld [vmem:[%s5 + $0xa8] sm:$0xff]
    %v4149 = vld [vmem:[%s5 + $0xb0] sm:$0xff]
    %v4150 = vld [vmem:[%s5 + $0xb8] sm:$0xff]
    %v4151 = vld [vmem:[%s5 + $0xc0] sm:$0xf]
    %v4152 = vld [vmem:[%s5 + $0xc4] sm:$0xff]
    %v4153 = vld [vmem:[%s5 + $0xcc] sm:$0xff]
    %v4154 = vld [vmem:[%s5 + $0xd4] sm:$0xff]
    %v4155 = vld [vmem:[%s5 + $0xdc] sm:$0xf]
    %v4156 = vld [vmem:[%s5 + $0xe0] sm:$0xff]
    %v4157 = vld [vmem:[%s5 + $0xe8] sm:$0xff]
    %v4158 = vld [vmem:[%s5 + $0xf0] sm:$0xff]
    %v4159 = vld [vmem:[%s5 + $0xf8] sm:$0xf]
    %v4160 = vld [vmem:[%s5 + $0xfc] sm:$0xff]
    %v4161 = vld [vmem:[%s5 + $0x104] sm:$0xff]
    %v4162 = vld [vmem:[%s5 + $0x10c] sm:$0xff]
    %v4163 = vld [vmem:[%s5 + $0x114] sm:$0xf]
    %v4164 = vld [vmem:[%s5 + $0x118] sm:$0xff]
    %v4165 = vld [vmem:[%s5 + $0x120] sm:$0xff]
    %v4166 = vld [vmem:[%s5 + $0x128] sm:$0xff]
    %v4167 = vld [vmem:[%s5 + $0x130] sm:$0xf]
    %v4168 = vld [vmem:[%s5 + $0x134] sm:$0xff]
    %v4169 = vld [vmem:[%s5 + $0x13c] sm:$0xff]
    %v4170 = vld [vmem:[%s5 + $0x144] sm:$0xff]
    %v4171 = vld [vmem:[%s5 + $0x14c] sm:$0xf]
    %v4172 = vld [vmem:[%s5 + $0x150] sm:$0xff]
    %v4173 = vld [vmem:[%s5 + $0x158] sm:$0xff]
    %v4174 = vld [vmem:[%s5 + $0x160] sm:$0xff]
    %v4175 = vld [vmem:[%s5 + $0x168] sm:$0xf]
    %v4176 = vld [vmem:[%s5 + $0x16c] sm:$0xff]
    %v4177 = vld [vmem:[%s5 + $0x174] sm:$0xff]
    %v4178 = vld [vmem:[%s5 + $0x17c] sm:$0xff]
    %v4179 = vld [vmem:[%s5 + $0x184] sm:$0xf]
    %v4180 = vld [vmem:[%s5 + $0x188] sm:$0xff]
    %v4181 = vld [vmem:[%s5 + $0x190] sm:$0xff]
    %v4182 = vld [vmem:[%s5 + $0x198] sm:$0xff]
    %v4183 = vld [vmem:[%s5 + $0x1a0] sm:$0xf]
    %v4184 = vld [vmem:[%s5 + $0x1a4] sm:$0xff]
    %v4185 = vld [vmem:[%s5 + $0x1ac] sm:$0xff]
    %v4186 = vld [vmem:[%s5 + $0x1b4] sm:$0xff]
    %v4187 = vld [vmem:[%s5 + $0x1bc] sm:$0xf]
    %v4188 = vld [vmem:[%s5 + $0x1c0] sm:$0xff]
    %v4189 = vld [vmem:[%s5 + $0x1c8] sm:$0xff]
    %v4190 = vld [vmem:[%s5 + $0x1d0] sm:$0xff]
    %v4191 = vld [vmem:[%s5 + $0x1d8] sm:$0xf]
    %v4192 = vld [vmem:[%s5 + $0x1dc] sm:$0xff]
    %v4193 = vld [vmem:[%s5 + $0x1e4] sm:$0xff]
    %v4194 = vld [vmem:[%s5 + $0x1ec] sm:$0xff]
    %v4195 = vld [vmem:[%s5 + $0x1f4] sm:$0xf]
    %v4196 = vld [vmem:[%s5 + $0x1f8] sm:$0xff]
    %v4197 = vld [vmem:[%s5 + $0x200] sm:$0xff]
    %v4198 = vld [vmem:[%s5 + $0x208] sm:$0xff]
    %v4199 = vld [vmem:[%s5 + $0x210] sm:$0xf]
    %v4200 = vld [vmem:[%s5 + $0x214] sm:$0xff]
    %v4201 = vld [vmem:[%s5 + $0x21c] sm:$0xff]
    %v4202 = vld [vmem:[%s5 + $0x224] sm:$0xff]
    %v4203 = vld [vmem:[%s5 + $0x22c] sm:$0xf]
    %v4204 = vld [vmem:[%s5 + $0x230] sm:$0xff]
    %v4205 = vld [vmem:[%s5 + $0x238] sm:$0xff]
    %v4206 = vld [vmem:[%s5 + $0x240] sm:$0xff]
    %v4207 = vld [vmem:[%s5 + $0x248] sm:$0xf]
    %v4208 = vld [vmem:[%s5 + $0x24c] sm:$0xff]
    %v4209 = vld [vmem:[%s5 + $0x254] sm:$0xff]
    %v4210 = vld [vmem:[%s5 + $0x25c] sm:$0xff]
    %v4211 = vld [vmem:[%s5 + $0x264] sm:$0xf]
    %v4212 = vld [vmem:[%s5 + $0x268] sm:$0xff]
    %v4213 = vld [vmem:[%s5 + $0x270] sm:$0xff]
    %v4214 = vld [vmem:[%s5 + $0x278] sm:$0xff]
    %v4215 = vld [vmem:[%s5 + $0x280] sm:$0xf]
    %v4216 = vld [vmem:[%s5 + $0x284] sm:$0xff]
    %v4217 = vld [vmem:[%s5 + $0x28c] sm:$0xff]
    %v4218 = vld [vmem:[%s5 + $0x294] sm:$0xff]
    %v4219 = vld [vmem:[%s5 + $0x29c] sm:$0xf]
    %v4220 = vld [vmem:[%s5 + $0x2a0] sm:$0xff]
    %v4221 = vld [vmem:[%s5 + $0x2a8] sm:$0xff]
    %v4222 = vld [vmem:[%s5 + $0x2b0] sm:$0xff]
    %v4223 = vld [vmem:[%s5 + $0x2b8] sm:$0xf]
    %v4224 = vld [vmem:[%s5 + $0x2bc] sm:$0xff]
    %v4225 = vld [vmem:[%s5 + $0x2c4] sm:$0xff]
    %v4226 = vld [vmem:[%s5 + $0x2cc] sm:$0xff]
    %v4227 = vld [vmem:[%s5 + $0x2d4] sm:$0xf]
    %v4228 = vld [vmem:[%s5 + $0x2d8] sm:$0xff]
    %v4229 = vld [vmem:[%s5 + $0x2e0] sm:$0xff]
    %v4230 = vld [vmem:[%s5 + $0x2e8] sm:$0xff]
    %v4231 = vld [vmem:[%s5 + $0x2f0] sm:$0xf]
    %v4232 = vld [vmem:[%s5 + $0x2f4] sm:$0xff]
    %v4233 = vld [vmem:[%s5 + $0x2fc] sm:$0xff]
    %v4234 = vld [vmem:[%s5 + $0x304] sm:$0xff]
    %v4235 = vld [vmem:[%s5 + $0x30c] sm:$0xf]
    %v4236 = vld [vmem:[%s5 + $0x310] sm:$0xff]
    %v4237 = vld [vmem:[%s5 + $0x318] sm:$0xff]
    %v4238 = vld [vmem:[%s5 + $0x320] sm:$0xff]
    %v4239 = vld [vmem:[%s5 + $0x328] sm:$0xf]
    %v4240 = vld [vmem:[%s5 + $0x32c] sm:$0xff]
    %v4241 = vld [vmem:[%s5 + $0x334] sm:$0xff]
    %v4242 = vld [vmem:[%s5 + $0x33c] sm:$0xff]
    %v4243 = vld [vmem:[%s5 + $0x344] sm:$0xf]
    %v4244 = vld [vmem:[%s5 + $0x348] sm:$0xff]
    %v4245 = vld [vmem:[%s5 + $0x350] sm:$0xff]
    %v4246 = vld [vmem:[%s5 + $0x358] sm:$0xff]
    %v4247 = vld [vmem:[%s5 + $0x360] sm:$0xf]
    %v4248 = vld [vmem:[%s5 + $0x364] sm:$0xff]
    %v4249 = vld [vmem:[%s5 + $0x36c] sm:$0xff]
    %v4250 = vld [vmem:[%s5 + $0x374] sm:$0xff]
    %v4251 = vld [vmem:[%s5 + $0x37c] sm:$0xf]
    %v4252 = vld [vmem:[%s5 + $0x380] sm:$0xff]
    %v4253 = vld [vmem:[%s5 + $0x388] sm:$0xff]
    %v4254 = vld [vmem:[%s5 + $0x390] sm:$0xff]
    %v4255 = vld [vmem:[%s5 + $0x398] sm:$0xf]
    %v4256 = vld [vmem:[%s5 + $0x39c] sm:$0xff]
    %v4257 = vld [vmem:[%s5 + $0x3a4] sm:$0xff]
    %v4258 = vld [vmem:[%s5 + $0x3ac] sm:$0xff]
    %v4259 = vld [vmem:[%s5 + $0x3b4] sm:$0xf]
    %v4260 = vld [vmem:[%s5 + $0x3b8] sm:$0xff]
    %v4261 = vld [vmem:[%s5 + $0x3c0] sm:$0xff]
    %v4262 = vld [vmem:[%s5 + $0x3c8] sm:$0xff]
    %v4263 = vld [vmem:[%s5 + $0x3d0] sm:$0xf]
    %v4264 = vld [vmem:[%s5 + $0x3d4] sm:$0xff]
    %v4265 = vld [vmem:[%s5 + $0x3dc] sm:$0xff]
    %v4266 = vld [vmem:[%s5 + $0x3e4] sm:$0xff]
    %v4267 = vld [vmem:[%s5 + $0x3ec] sm:$0xf]
    %v4268 = vld [vmem:[%s5 + $0x3f0] sm:$0xff]
    %v4269 = vld [vmem:[%s5 + $0x3f8] sm:$0xff]
    %v4270 = vld [vmem:[%s5 + $0x400] sm:$0xff]
    %v4271 = vld [vmem:[%s5 + $0x408] sm:$0xf]
    %v4272 = vld [vmem:[%s5 + $0x40c] sm:$0xff]
    %v4273 = vld [vmem:[%s5 + $0x414] sm:$0xff]
    %v4274 = vld [vmem:[%s5 + $0x41c] sm:$0xff]
    %v4275 = vld [vmem:[%s5 + $0x424] sm:$0xf]
    %v4276 = vld [vmem:[%s5 + $0x428] sm:$0xff]
    %v4277 = vld [vmem:[%s5 + $0x430] sm:$0xff]
    %v4278 = vld [vmem:[%s5 + $0x438] sm:$0xff]
    %v4279 = vld [vmem:[%s5 + $0x440] sm:$0xf]
    %v4280 = vld [vmem:[%s5 + $0x444] sm:$0xff]
    %v4281 = vld [vmem:[%s5 + $0x44c] sm:$0xff]
    %v4282 = vld [vmem:[%s5 + $0x454] sm:$0xff]
    %v4283 = vld [vmem:[%s5 + $0x45c] sm:$0xf]
    %v4284 = vld [vmem:[%s5 + $0x460] sm:$0xff]
    %v4285 = vld [vmem:[%s5 + $0x468] sm:$0xff]
    %v4286 = vld [vmem:[%s5 + $0x470] sm:$0xff]
    %v4287 = vld [vmem:[%s5 + $0x478] sm:$0xf]
    %v4288 = vld [vmem:[%s5 + $0x47c] sm:$0xff]
    %v4289 = vld [vmem:[%s5 + $0x484] sm:$0xff]
    %v4290 = vld [vmem:[%s5 + $0x48c] sm:$0xff]
    %v4291 = vld [vmem:[%s5 + $0x494] sm:$0xf]
    %v4292 = vld [vmem:[%s5 + $0x498] sm:$0xff]
    %v4293 = vld [vmem:[%s5 + $0x4a0] sm:$0xff]
    %v4294 = vld [vmem:[%s5 + $0x4a8] sm:$0xff]
    %v4295 = vld [vmem:[%s5 + $0x4b0] sm:$0xf]
    %v4296 = vld [vmem:[%s5 + $0x4b4] sm:$0xff]
    %v4297 = vld [vmem:[%s5 + $0x4bc] sm:$0xff]
    %v4298 = vld [vmem:[%s5 + $0x4c4] sm:$0xff]
    %v4299 = vld [vmem:[%s5 + $0x4cc] sm:$0xf]
    %v4300 = vld [vmem:[%s5 + $0x4d0] sm:$0xff]
    %v4301 = vld [vmem:[%s5 + $0x4d8] sm:$0xff]
    %v4302 = vld [vmem:[%s5 + $0x4e0] sm:$0xff]
    %v4303 = vld [vmem:[%s5 + $0x4e8] sm:$0xf]
    %v4304 = vld [vmem:[%s5 + $0x4ec] sm:$0xff]
    %v4305 = vld [vmem:[%s5 + $0x4f4] sm:$0xff]
    %v4306 = vld [vmem:[%s5 + $0x4fc] sm:$0xff]
    %v4307 = vld [vmem:[%s5 + $0x504] sm:$0xf]
    %v4308 = vld [vmem:[%s5 + $0x508] sm:$0xff]
    %v4309 = vld [vmem:[%s5 + $0x510] sm:$0xff]
    %v4310 = vld [vmem:[%s5 + $0x518] sm:$0xff]
    %v4311 = vld [vmem:[%s5 + $0x520] sm:$0xf]
    %v4312 = vld [vmem:[%s5 + $0x524] sm:$0xff]
    %v4313 = vld [vmem:[%s5 + $0x52c] sm:$0xff]
    %v4314 = vld [vmem:[%s5 + $0x534] sm:$0xff]
    %v4315 = vld [vmem:[%s5 + $0x53c] sm:$0xf]
    %v4316 = vld [vmem:[%s5 + $0x540] sm:$0xff]
    %v4317 = vld [vmem:[%s5 + $0x548] sm:$0xff]
    %v4318 = vld [vmem:[%s5 + $0x550] sm:$0xff]
    %v4319 = vld [vmem:[%s5 + $0x558] sm:$0xf]
    %v4320 = vld [vmem:[%s5 + $0x55c] sm:$0xff]
    %v4321 = vld [vmem:[%s5 + $0x564] sm:$0xff]
    %v4322 = vld [vmem:[%s5 + $0x56c] sm:$0xff]
    %v4323 = vld [vmem:[%s5 + $0x574] sm:$0xf]
    %v4324 = vld [vmem:[%s5 + $0x578] sm:$0xff]
    %v4325 = vld [vmem:[%s5 + $0x580] sm:$0xff]
    %v4326 = vld [vmem:[%s5 + $0x588] sm:$0xff]
    %v4327 = vld [vmem:[%s5 + $0x590] sm:$0xf]
    %v4328 = vld [vmem:[%s5 + $0x594] sm:$0xff]
    %v4329 = vld [vmem:[%s5 + $0x59c] sm:$0xff]
    %v4330 = vld [vmem:[%s5 + $0x5a4] sm:$0xff]
    %v4331 = vld [vmem:[%s5 + $0x5ac] sm:$0xf]
    %v4332 = vld [vmem:[%s5 + $0x5b0] sm:$0xff]
    %v4333 = vld [vmem:[%s5 + $0x5b8] sm:$0xff]
    %v4334 = vld [vmem:[%s5 + $0x5c0] sm:$0xff]
    %v4335 = vld [vmem:[%s5 + $0x5c8] sm:$0xf]
    %v4336 = vld [vmem:[%s5 + $0x5cc] sm:$0xff]
    %v4337 = vld [vmem:[%s5 + $0x5d4] sm:$0xff]
    %v4338 = vld [vmem:[%s5 + $0x5dc] sm:$0xff]
    %v4339 = vld [vmem:[%s5 + $0x5e4] sm:$0xf]
    %v4340 = vld [vmem:[%s5 + $0x5e8] sm:$0xff]
    %v4341 = vld [vmem:[%s5 + $0x5f0] sm:$0xff]
    %v4342 = vld [vmem:[%s5 + $0x5f8] sm:$0xff]
    %v4343 = vld [vmem:[%s5 + $0x600] sm:$0xf]
    %v4344 = vld [vmem:[%s5 + $0x604] sm:$0xff]
    %v4345 = vld [vmem:[%s5 + $0x60c] sm:$0xff]
    %v4346 = vld [vmem:[%s5 + $0x614] sm:$0xff]
    %v4347 = vld [vmem:[%s5 + $0x61c] sm:$0xf]
    %v4348 = vld [vmem:[%s5 + $0x620] sm:$0xff]
    %v4349 = vld [vmem:[%s5 + $0x628] sm:$0xff]
    %v4350 = vld [vmem:[%s5 + $0x630] sm:$0xff]
    %v4351 = vld [vmem:[%s5 + $0x638] sm:$0xf]
    %v4352 = vld [vmem:[%s5 + $0x63c] sm:$0xff]
    %v4353 = vld [vmem:[%s5 + $0x644] sm:$0xff]
    %v4354 = vld [vmem:[%s5 + $0x64c] sm:$0xff]
    %v4355 = vld [vmem:[%s5 + $0x654] sm:$0xf]
    %v4356 = vld [vmem:[%s5 + $0x658] sm:$0xff]
    %v4357 = vld [vmem:[%s5 + $0x660] sm:$0xff]
    %v4358 = vld [vmem:[%s5 + $0x668] sm:$0xff]
    %v4359 = vld [vmem:[%s5 + $0x670] sm:$0xf]
    %v4360 = vld [vmem:[%s5 + $0x674] sm:$0xff]
    %v4361 = vld [vmem:[%s5 + $0x67c] sm:$0xff]
    %v4362 = vld [vmem:[%s5 + $0x684] sm:$0xff]
    %v4363 = vld [vmem:[%s5 + $0x68c] sm:$0xf]
    %v4364 = vld [vmem:[%s5 + $0x690] sm:$0xff]
    %v4365 = vld [vmem:[%s5 + $0x698] sm:$0xff]
    %v4366 = vld [vmem:[%s5 + $0x6a0] sm:$0xff]
    %v4367 = vld [vmem:[%s5 + $0x6a8] sm:$0xf]
    %v4368 = vld [vmem:[%s5 + $0x6ac] sm:$0xff]
    %v4369 = vld [vmem:[%s5 + $0x6b4] sm:$0xff]
    %v4370 = vld [vmem:[%s5 + $0x6bc] sm:$0xff]
    %v4371 = vld [vmem:[%s5 + $0x6c4] sm:$0xf]
    %v4372 = vld [vmem:[%s5 + $0x6c8] sm:$0xff]
    %v4373 = vld [vmem:[%s5 + $0x6d0] sm:$0xff]
    %v4374 = vld [vmem:[%s5 + $0x6d8] sm:$0xff]
    %v4375 = vld [vmem:[%s5 + $0x6e0] sm:$0xf]
    %v4376 = vld [vmem:[%s5 + $0x6e4] sm:$0xff]
    %v4377 = vld [vmem:[%s5 + $0x6ec] sm:$0xff]
    %v4378 = vld [vmem:[%s5 + $0x6f4] sm:$0xff]
    %v4379 = vld [vmem:[%s5 + $0x6fc] sm:$0xf]
    %v4380 = vld [vmem:[%s5 + $0x700] sm:$0xff]
    %v4381 = vld [vmem:[%s5 + $0x708] sm:$0xff]
    %v4382 = vld [vmem:[%s5 + $0x710] sm:$0xff]
    %v4383 = vld [vmem:[%s5 + $0x718] sm:$0xf]
    %v4384 = vld [vmem:[%s5 + $0x71c] sm:$0xff]
    %v4385 = vld [vmem:[%s5 + $0x724] sm:$0xff]
    %v4386 = vld [vmem:[%s5 + $0x72c] sm:$0xff]
    %v4387 = vld [vmem:[%s5 + $0x734] sm:$0xf]
    %v4388 = vld [vmem:[%s5 + $0x738] sm:$0xff]
    %v4389 = vld [vmem:[%s5 + $0x740] sm:$0xff]
    %v4390 = vld [vmem:[%s5 + $0x748] sm:$0xff]
    %v4391 = vld [vmem:[%s5 + $0x750] sm:$0xf]
    %v4392 = vld [vmem:[%s5 + $0x754] sm:$0xff]
    %v4393 = vld [vmem:[%s5 + $0x75c] sm:$0xff]
    %v4394 = vld [vmem:[%s5 + $0x764] sm:$0xff]
    %v4395 = vld [vmem:[%s5 + $0x76c] sm:$0xf]
    %v4396 = vld [vmem:[%s5 + $0x770] sm:$0xff]
    %v4397 = vld [vmem:[%s5 + $0x778] sm:$0xff]
    %v4398 = vld [vmem:[%s5 + $0x780] sm:$0xff]
    %v4399 = vld [vmem:[%s5 + $0x788] sm:$0xf]
    %v4400 = vld [vmem:[%s5 + $0x78c] sm:$0xff]
    %v4401 = vld [vmem:[%s5 + $0x794] sm:$0xff]
    %v4402 = vld [vmem:[%s5 + $0x79c] sm:$0xff]
    %v4403 = vld [vmem:[%s5 + $0x7a4] sm:$0xf]
    %v4404 = vld [vmem:[%s5 + $0x7a8] sm:$0xff]
    %v4405 = vld [vmem:[%s5 + $0x7b0] sm:$0xff]
    %v4406 = vld [vmem:[%s5 + $0x7b8] sm:$0xff]
    %v4407 = vld [vmem:[%s5 + $0x7c0] sm:$0xf]
    %v4408 = vld [vmem:[%s5 + $0x7c4] sm:$0xff]
    %v4409 = vld [vmem:[%s5 + $0x7cc] sm:$0xff]
    %v4410 = vld [vmem:[%s5 + $0x7d4] sm:$0xff]
    %v4411 = vld [vmem:[%s5 + $0x7dc] sm:$0xf]
    %v4412 = vld [vmem:[%s5 + $0x7e0] sm:$0xff]
    %v4413 = vld [vmem:[%s5 + $0x7e8] sm:$0xff]
    %v4414 = vld [vmem:[%s5 + $0x7f0] sm:$0xff]
    %v4415 = vld [vmem:[%s5 + $0x7f8] sm:$0xf]
    %v4416 = vld [vmem:[%s5 + $0x7fc] sm:$0xff]
    %v4417 = vld [vmem:[%s5 + $0x804] sm:$0xff]
    %v4418 = vld [vmem:[%s5 + $0x80c] sm:$0xff]
    %v4419 = vld [vmem:[%s5 + $0x814] sm:$0xf]
    %v4420 = vld [vmem:[%s5 + $0x818] sm:$0xff]
    %v4421 = vld [vmem:[%s5 + $0x820] sm:$0xff]
    %v4422 = vld [vmem:[%s5 + $0x828] sm:$0xff]
    %v4423 = vld [vmem:[%s5 + $0x830] sm:$0xf]
    %v4424 = vld [vmem:[%s5 + $0x834] sm:$0xff]
    %v4425 = vld [vmem:[%s5 + $0x83c] sm:$0xff]
    %v4426 = vld [vmem:[%s5 + $0x844] sm:$0xff]
    %v4427 = vld [vmem:[%s5 + $0x84c] sm:$0xf]
    %v4428 = vld [vmem:[%s5 + $0x850] sm:$0xff]
    %v4429 = vld [vmem:[%s5 + $0x858] sm:$0xff]
    %v4430 = vld [vmem:[%s5 + $0x860] sm:$0xff]
    %v4431 = vld [vmem:[%s5 + $0x868] sm:$0xf]
    %v4432 = vld [vmem:[%s5 + $0x86c] sm:$0xff]
    %v4433 = vld [vmem:[%s5 + $0x874] sm:$0xff]
    %v4434 = vld [vmem:[%s5 + $0x87c] sm:$0xff]
    %v4435 = vld [vmem:[%s5 + $0x884] sm:$0xf]
    %v4436 = vld [vmem:[%s5 + $0x888] sm:$0xff]
    %v4437 = vld [vmem:[%s5 + $0x890] sm:$0xff]
    %v4438 = vld [vmem:[%s5 + $0x898] sm:$0xff]
    %v4439 = vld [vmem:[%s5 + $0x8a0] sm:$0xf]
    %v4440 = vld [vmem:[%s5 + $0x8a4] sm:$0xff]
    %v4441 = vld [vmem:[%s5 + $0x8ac] sm:$0xff]
    %v4442 = vld [vmem:[%s5 + $0x8b4] sm:$0xff]
    %v4443 = vld [vmem:[%s5 + $0x8bc] sm:$0xf]
    %v4444 = vld [vmem:[%s5 + $0x8c0] sm:$0xff]
    %v4445 = vld [vmem:[%s5 + $0x8c8] sm:$0xff]
    %v4446 = vld [vmem:[%s5 + $0x8d0] sm:$0xff]
    %v4447 = vld [vmem:[%s5 + $0x8d8] sm:$0xf]
    %v4448 = vld [vmem:[%s5 + $0x8dc] sm:$0xff]
    %v4449 = vld [vmem:[%s5 + $0x8e4] sm:$0xff]
    %v4450 = vld [vmem:[%s5 + $0x8ec] sm:$0xff]
    %v4451 = vld [vmem:[%s5 + $0x8f4] sm:$0xf]
    %v4452 = vld [vmem:[%s5 + $0x8f8] sm:$0xff]
    %v4453 = vld [vmem:[%s5 + $0x900] sm:$0xff]
    %v4454 = vld [vmem:[%s5 + $0x908] sm:$0xff]
    %v4455 = vld [vmem:[%s5 + $0x910] sm:$0xf]
    %v4456 = vld [vmem:[%s5 + $0x914] sm:$0xff]
    %v4457 = vld [vmem:[%s5 + $0x91c] sm:$0xff]
    %v4458 = vld [vmem:[%s5 + $0x924] sm:$0xff]
    %v4459 = vld [vmem:[%s5 + $0x92c] sm:$0xf]
    %v4460 = vld [vmem:[%s5 + $0x930] sm:$0xff]
    %v4461 = vld [vmem:[%s5 + $0x938] sm:$0xff]
    %v4462 = vld [vmem:[%s5 + $0x940] sm:$0xff]
    %v4463 = vld [vmem:[%s5 + $0x948] sm:$0xf]
    %v4464 = vld [vmem:[%s5 + $0x94c] sm:$0xff]
    %v4465 = vld [vmem:[%s5 + $0x954] sm:$0xff]
    %v4466 = vld [vmem:[%s5 + $0x95c] sm:$0xff]
    %v4467 = vld [vmem:[%s5 + $0x964] sm:$0xf]
    %v4468 = vld [vmem:[%s5 + $0x968] sm:$0xff]
    %v4469 = vld [vmem:[%s5 + $0x970] sm:$0xff]
    %v4470 = vld [vmem:[%s5 + $0x978] sm:$0xff]
    %v4471 = vld [vmem:[%s5 + $0x980] sm:$0xf]
    %v4472 = vld [vmem:[%s5 + $0x984] sm:$0xff]
    %v4473 = vld [vmem:[%s5 + $0x98c] sm:$0xff]
    %v4474 = vld [vmem:[%s5 + $0x994] sm:$0xff]
    %v4475 = vld [vmem:[%s5 + $0x99c] sm:$0xf]
    %v4476 = vld [vmem:[%s5 + $0x9a0] sm:$0xff]
    %v4477 = vld [vmem:[%s5 + $0x9a8] sm:$0xff]
    %v4478 = vld [vmem:[%s5 + $0x9b0] sm:$0xff]
    %v4479 = vld [vmem:[%s5 + $0x9b8] sm:$0xf]
    %v4480 = vld [vmem:[%s5 + $0x9bc] sm:$0xff]
    %v4481 = vld [vmem:[%s5 + $0x9c4] sm:$0xff]
    %v4482 = vld [vmem:[%s5 + $0x9cc] sm:$0xff]
    %v4483 = vld [vmem:[%s5 + $0x9d4] sm:$0xf]
    %v4484 = vld [vmem:[%s5 + $0x9d8] sm:$0xff]
    %v4485 = vld [vmem:[%s5 + $0x9e0] sm:$0xff]
    %v4486 = vld [vmem:[%s5 + $0x9e8] sm:$0xff]
    %v4487 = vld [vmem:[%s5 + $0x9f0] sm:$0xf]
    %v4488 = vld [vmem:[%s5 + $0x9f4] sm:$0xff]
    %v4489 = vld [vmem:[%s5 + $0x9fc] sm:$0xff]
    %v4490 = vld [vmem:[%s5 + $0xa04] sm:$0xff]
    %v4491 = vld [vmem:[%s5 + $0xa0c] sm:$0xf]
    %v4492 = vld [vmem:[%s5 + $0xa10] sm:$0xff]
    %v4493 = vld [vmem:[%s5 + $0xa18] sm:$0xff]
    %v4494 = vld [vmem:[%s5 + $0xa20] sm:$0xff]
    %v4495 = vld [vmem:[%s5 + $0xa28] sm:$0xf]
    %v4496 = vld [vmem:[%s5 + $0xa2c] sm:$0xff]
    %v4497 = vld [vmem:[%s5 + $0xa34] sm:$0xff]
    %v4498 = vld [vmem:[%s5 + $0xa3c] sm:$0xff]
    %v4499 = vld [vmem:[%s5 + $0xa44] sm:$0xf]
    %v4500 = vld [vmem:[%s5 + $0xa48] sm:$0xff]
    %v4501 = vld [vmem:[%s5 + $0xa50] sm:$0xff]
    %v4502 = vld [vmem:[%s5 + $0xa58] sm:$0xff]
    %v4503 = vld [vmem:[%s5 + $0xa60] sm:$0xf]
    %v4504 = vld [vmem:[%s5 + $0xa64] sm:$0xff]
    %v4505 = vld [vmem:[%s5 + $0xa6c] sm:$0xff]
    %v4506 = vld [vmem:[%s5 + $0xa74] sm:$0xff]
    %v4507 = vld [vmem:[%s5 + $0xa7c] sm:$0xf]
    %v4508 = vld [vmem:[%s5 + $0xa80] sm:$0xff]
    %v4509 = vld [vmem:[%s5 + $0xa88] sm:$0xff]
    %v4510 = vld [vmem:[%s5 + $0xa90] sm:$0xff]
    %v4511 = vld [vmem:[%s5 + $0xa98] sm:$0xf]
    %v4512 = vld [vmem:[%s5 + $0xa9c] sm:$0xff]
    %v4513 = vld [vmem:[%s5 + $0xaa4] sm:$0xff]
    %v4514 = vld [vmem:[%s5 + $0xaac] sm:$0xff]
    %v4515 = vld [vmem:[%s5 + $0xab4] sm:$0xf]
    %v4516 = vld [vmem:[%s5 + $0xab8] sm:$0xff]
    %v4517 = vld [vmem:[%s5 + $0xac0] sm:$0xff]
    %v4518 = vld [vmem:[%s5 + $0xac8] sm:$0xff]
    %v4519 = vld [vmem:[%s5 + $0xad0] sm:$0xf]
    %v4520 = vld [vmem:[%s5 + $0xad4] sm:$0xff]
    %v4521 = vld [vmem:[%s5 + $0xadc] sm:$0xff]
    %v4522 = vld [vmem:[%s5 + $0xae4] sm:$0xff]
    %v4523 = vld [vmem:[%s5 + $0xaec] sm:$0xf]
    %v4524 = vld [vmem:[%s5 + $0xaf0] sm:$0xff]
    %v4525 = vld [vmem:[%s5 + $0xaf8] sm:$0xff]
    %v4526 = vld [vmem:[%s5 + $0xb00] sm:$0xff]
    %v4527 = vld [vmem:[%s5 + $0xb08] sm:$0xf]
    %v4528 = vld [vmem:[%s5 + $0xb0c] sm:$0xff]
    %v4529 = vld [vmem:[%s5 + $0xb14] sm:$0xff]
    %v4530 = vld [vmem:[%s5 + $0xb1c] sm:$0xff]
    %v4531 = vld [vmem:[%s5 + $0xb24] sm:$0xf]
    %v4532 = vld [vmem:[%s5 + $0xb28] sm:$0xff]
    %v4533 = vld [vmem:[%s5 + $0xb30] sm:$0xff]
    %v4534 = vld [vmem:[%s5 + $0xb38] sm:$0xff]
    %v4535 = vld [vmem:[%s5 + $0xb40] sm:$0xf]
    %v4536 = vld [vmem:[%s5 + $0xb44] sm:$0xff]
    %v4537 = vld [vmem:[%s5 + $0xb4c] sm:$0xff]
    %v4538 = vld [vmem:[%s5 + $0xb54] sm:$0xff]
    %v4539 = vld [vmem:[%s5 + $0xb5c] sm:$0xf]
    %v4540 = vld [vmem:[%s5 + $0xb60] sm:$0xff]
    %v4541 = vld [vmem:[%s5 + $0xb68] sm:$0xff]
    %v4542 = vld [vmem:[%s5 + $0xb70] sm:$0xff]
    %v4543 = vld [vmem:[%s5 + $0xb78] sm:$0xf]
    %v4544 = vld [vmem:[%s5 + $0xb7c] sm:$0xff]
    %v4545 = vld [vmem:[%s5 + $0xb84] sm:$0xff]
    %v4546 = vld [vmem:[%s5 + $0xb8c] sm:$0xff]
    %v4547 = vld [vmem:[%s5 + $0xb94] sm:$0xf]
    %v4548 = vld [vmem:[%s5 + $0xb98] sm:$0xff]
    %v4549 = vld [vmem:[%s5 + $0xba0] sm:$0xff]
    %v4550 = vld [vmem:[%s5 + $0xba8] sm:$0xff]
    %v4551 = vld [vmem:[%s5 + $0xbb0] sm:$0xf]
    %v4552 = vld [vmem:[%s5 + $0xbb4] sm:$0xff]
    %v4553 = vld [vmem:[%s5 + $0xbbc] sm:$0xff]
    %v4554 = vld [vmem:[%s5 + $0xbc4] sm:$0xff]
    %v4555 = vld [vmem:[%s5 + $0xbcc] sm:$0xf]
    %v4556 = vld [vmem:[%s5 + $0xbd0] sm:$0xff]
    %v4557 = vld [vmem:[%s5 + $0xbd8] sm:$0xff]
    %v4558 = vld [vmem:[%s5 + $0xbe0] sm:$0xff]
    %v4559 = vld [vmem:[%s5 + $0xbe8] sm:$0xf]
    %v4560 = vld [vmem:[%s5 + $0xbec] sm:$0xff]
    %v4561 = vld [vmem:[%s5 + $0xbf4] sm:$0xff]
    %v4562 = vld [vmem:[%s5 + $0xbfc] sm:$0xff]
    %v4563 = vld [vmem:[%s5 + $0xc04] sm:$0xf]
    %v4564 = vld [vmem:[%s5 + $0xc08] sm:$0xff]
    %v4565 = vld [vmem:[%s5 + $0xc10] sm:$0xff]
    %v4566 = vld [vmem:[%s5 + $0xc18] sm:$0xff]
    %v4567 = vld [vmem:[%s5 + $0xc20] sm:$0xf]
    %v4568 = vld [vmem:[%s5 + $0xc24] sm:$0xff]
    %v4569 = vld [vmem:[%s5 + $0xc2c] sm:$0xff]
    %v4570 = vld [vmem:[%s5 + $0xc34] sm:$0xff]
    %v4571 = vld [vmem:[%s5 + $0xc3c] sm:$0xf]
    %v4572 = vld [vmem:[%s5 + $0xc40] sm:$0xff]
    %v4573 = vld [vmem:[%s5 + $0xc48] sm:$0xff]
    %v4574 = vld [vmem:[%s5 + $0xc50] sm:$0xff]
    %v4575 = vld [vmem:[%s5 + $0xc58] sm:$0xf]
    %v4576 = vld [vmem:[%s5 + $0xc5c] sm:$0xff]
    %v4577 = vld [vmem:[%s5 + $0xc64] sm:$0xff]
    %v4578 = vld [vmem:[%s5 + $0xc6c] sm:$0xff]
    %v4579 = vld [vmem:[%s5 + $0xc74] sm:$0xf]
    %v4580 = vld [vmem:[%s5 + $0xc78] sm:$0xff]
    %v4581 = vld [vmem:[%s5 + $0xc80] sm:$0xff]
    %v4582 = vld [vmem:[%s5 + $0xc88] sm:$0xff]
    %v4583 = vld [vmem:[%s5 + $0xc90] sm:$0xf]
    %v4584 = vld [vmem:[%s5 + $0xc94] sm:$0xff]
    %v4585 = vld [vmem:[%s5 + $0xc9c] sm:$0xff]
    %v4586 = vld [vmem:[%s5 + $0xca4] sm:$0xff]
    %v4587 = vld [vmem:[%s5 + $0xcac] sm:$0xf]
    %v4588 = vld [vmem:[%s5 + $0xcb0] sm:$0xff]
    %v4589 = vld [vmem:[%s5 + $0xcb8] sm:$0xff]
    %v4590 = vld [vmem:[%s5 + $0xcc0] sm:$0xff]
    %v4591 = vld [vmem:[%s5 + $0xcc8] sm:$0xf]
    %v4592 = vld [vmem:[%s5 + $0xccc] sm:$0xff]
    %v4593 = vld [vmem:[%s5 + $0xcd4] sm:$0xff]
    %v4594 = vld [vmem:[%s5 + $0xcdc] sm:$0xff]
    %v4595 = vld [vmem:[%s5 + $0xce4] sm:$0xf]
    %v4596 = vld [vmem:[%s5 + $0xce8] sm:$0xff]
    %v4597 = vld [vmem:[%s5 + $0xcf0] sm:$0xff]
    %v4598 = vld [vmem:[%s5 + $0xcf8] sm:$0xff]
    %v4599 = vld [vmem:[%s5 + $0xd00] sm:$0xf]
    %v4600 = vld [vmem:[%s5 + $0xd04] sm:$0xff]
    %v4601 = vld [vmem:[%s5 + $0xd0c] sm:$0xff]
    %v4602 = vld [vmem:[%s5 + $0xd14] sm:$0xff]
    %v4603 = vld [vmem:[%s5 + $0xd1c] sm:$0xf]
    %v4604 = vld [vmem:[%s5 + $0xd20] sm:$0xff]
    %v4605 = vld [vmem:[%s5 + $0xd28] sm:$0xff]
    %v4606 = vld [vmem:[%s5 + $0xd30] sm:$0xff]
    %v4607 = vld [vmem:[%s5 + $0xd38] sm:$0xf]
    %v4608 = vld [vmem:[%s5 + $0xd3c] sm:$0xff]
    %v4609 = vld [vmem:[%s5 + $0xd44] sm:$0xff]
    %v4610 = vld [vmem:[%s5 + $0xd4c] sm:$0xff]
    %v4611 = vld [vmem:[%s5 + $0xd54] sm:$0xf]
    %v4612 = vld [vmem:[%s5 + $0xd58] sm:$0xff]
    %v4613 = vld [vmem:[%s5 + $0xd60] sm:$0xff]
    %v4614 = vld [vmem:[%s5 + $0xd68] sm:$0xff]
    %v4615 = vld [vmem:[%s5 + $0xd70] sm:$0xf]
    %v4616 = vld [vmem:[%s5 + $0xd74] sm:$0xff]
    %v4617 = vld [vmem:[%s5 + $0xd7c] sm:$0xff]
    %v4618 = vld [vmem:[%s5 + $0xd84] sm:$0xff]
    %v4619 = vld [vmem:[%s5 + $0xd8c] sm:$0xf]
    %v4620 = vld [vmem:[%s5 + $0xd90] sm:$0xff]
    %v4621 = vld [vmem:[%s5 + $0xd98] sm:$0xff]
    %v4622 = vld [vmem:[%s5 + $0xda0] sm:$0xff]
    %v4623 = vld [vmem:[%s5 + $0xda8] sm:$0xf]
    %v4624 = vld [vmem:[%s6] sm:$0x7f]
    %v4626 = vperm.slane %v4624, 0
    %v4627 = vperm.slane %v4624, 1
    %v4628 = vperm.slane %v4624, 2
    %v4629 = vperm.slane %v4624, 3
    %v4630 = vperm.slane %v4624, 4
    %v4631 = vperm.slane %v4624, 5
    %v4632 = vperm.slane %v4624, 6
    %v5140 = vunpack.c.l.b16 %v4124
    %v5141 = vunpack.c.h.b16 %v4124
    %v5142 = vunpack.c.l.b16 %v4125
    %v5143 = vunpack.c.h.b16 %v4125
    %v5144 = vunpack.c.l.b16 %v4126
    %v5145 = vunpack.c.h.b16 %v4126
    %v5146 = vunpack.c.l.b16 %v4127
    %v5147 = vunpack.c.l.b16 %v4128
    %v5148 = vunpack.c.h.b16 %v4128
    %v5149 = vunpack.c.l.b16 %v4129
    %v5150 = vunpack.c.h.b16 %v4129
    %v5151 = vunpack.c.l.b16 %v4130
    %v5152 = vunpack.c.h.b16 %v4130
    %v5153 = vunpack.c.l.b16 %v4131
    %v5154 = vunpack.c.l.b16 %v4132
    %v5155 = vunpack.c.h.b16 %v4132
    %v5156 = vunpack.c.l.b16 %v4133
    %v5157 = vunpack.c.h.b16 %v4133
    %v5158 = vunpack.c.l.b16 %v4134
    %v5159 = vunpack.c.h.b16 %v4134
    %v5160 = vunpack.c.l.b16 %v4135
    %v5161 = vunpack.c.l.b16 %v4136
    %v5162 = vunpack.c.h.b16 %v4136
    %v5163 = vunpack.c.l.b16 %v4137
    %v5164 = vunpack.c.h.b16 %v4137
    %v5165 = vunpack.c.l.b16 %v4138
    %v5166 = vunpack.c.h.b16 %v4138
    %v5167 = vunpack.c.l.b16 %v4139
    %v5168 = vunpack.c.l.b16 %v4140
    %v5169 = vunpack.c.h.b16 %v4140
    %v5170 = vunpack.c.l.b16 %v4141
    %v5171 = vunpack.c.h.b16 %v4141
    %v5172 = vunpack.c.l.b16 %v4142
    %v5173 = vunpack.c.h.b16 %v4142
    %v5174 = vunpack.c.l.b16 %v4143
    %v5175 = vunpack.c.l.b16 %v4144
    %v5176 = vunpack.c.h.b16 %v4144
    %v5177 = vunpack.c.l.b16 %v4145
    %v5178 = vunpack.c.h.b16 %v4145
    %v5179 = vunpack.c.l.b16 %v4146
    %v5180 = vunpack.c.h.b16 %v4146
    %v5181 = vunpack.c.l.b16 %v4147
    %v5182 = vunpack.c.l.b16 %v4148
    %v5183 = vunpack.c.h.b16 %v4148
    %v5184 = vunpack.c.l.b16 %v4149
    %v5185 = vunpack.c.h.b16 %v4149
    %v5186 = vunpack.c.l.b16 %v4150
    %v5187 = vunpack.c.h.b16 %v4150
    %v5188 = vunpack.c.l.b16 %v4151
    %v5189 = vunpack.c.l.b16 %v4152
    %v5190 = vunpack.c.h.b16 %v4152
    %v5191 = vunpack.c.l.b16 %v4153
    %v5192 = vunpack.c.h.b16 %v4153
    %v5193 = vunpack.c.l.b16 %v4154
    %v5194 = vunpack.c.h.b16 %v4154
    %v5195 = vunpack.c.l.b16 %v4155
    %v5196 = vunpack.c.l.b16 %v4156
    %v5197 = vunpack.c.h.b16 %v4156
    %v5198 = vunpack.c.l.b16 %v4157
    %v5199 = vunpack.c.h.b16 %v4157
    %v5200 = vunpack.c.l.b16 %v4158
    %v5201 = vunpack.c.h.b16 %v4158
    %v5202 = vunpack.c.l.b16 %v4159
    %v5203 = vunpack.c.l.b16 %v4160
    %v5204 = vunpack.c.h.b16 %v4160
    %v5205 = vunpack.c.l.b16 %v4161
    %v5206 = vunpack.c.h.b16 %v4161
    %v5207 = vunpack.c.l.b16 %v4162
    %v5208 = vunpack.c.h.b16 %v4162
    %v5209 = vunpack.c.l.b16 %v4163
    %v5210 = vunpack.c.l.b16 %v4164
    %v5211 = vunpack.c.h.b16 %v4164
    %v5212 = vunpack.c.l.b16 %v4165
    %v5213 = vunpack.c.h.b16 %v4165
    %v5214 = vunpack.c.l.b16 %v4166
    %v5215 = vunpack.c.h.b16 %v4166
    %v5216 = vunpack.c.l.b16 %v4167
    %v5217 = vunpack.c.l.b16 %v4168
    %v5218 = vunpack.c.h.b16 %v4168
    %v5219 = vunpack.c.l.b16 %v4169
    %v5220 = vunpack.c.h.b16 %v4169
    %v5221 = vunpack.c.l.b16 %v4170
    %v5222 = vunpack.c.h.b16 %v4170
    %v5223 = vunpack.c.l.b16 %v4171
    %v5224 = vunpack.c.l.b16 %v4172
    %v5225 = vunpack.c.h.b16 %v4172
    %v5226 = vunpack.c.l.b16 %v4173
    %v5227 = vunpack.c.h.b16 %v4173
    %v5228 = vunpack.c.l.b16 %v4174
    %v5229 = vunpack.c.h.b16 %v4174
    %v5230 = vunpack.c.l.b16 %v4175
    %v5231 = vunpack.c.l.b16 %v4176
    %v5232 = vunpack.c.h.b16 %v4176
    %v5233 = vunpack.c.l.b16 %v4177
    %v5234 = vunpack.c.h.b16 %v4177
    %v5235 = vunpack.c.l.b16 %v4178
    %v5236 = vunpack.c.h.b16 %v4178
    %v5237 = vunpack.c.l.b16 %v4179
    %v5238 = vunpack.c.l.b16 %v4180
    %v5239 = vunpack.c.h.b16 %v4180
    %v5240 = vunpack.c.l.b16 %v4181
    %v5241 = vunpack.c.h.b16 %v4181
    %v5242 = vunpack.c.l.b16 %v4182
    %v5243 = vunpack.c.h.b16 %v4182
    %v5244 = vunpack.c.l.b16 %v4183
    %v5245 = vunpack.c.l.b16 %v4184
    %v5246 = vunpack.c.h.b16 %v4184
    %v5247 = vunpack.c.l.b16 %v4185
    %v5248 = vunpack.c.h.b16 %v4185
    %v5249 = vunpack.c.l.b16 %v4186
    %v5250 = vunpack.c.h.b16 %v4186
    %v5251 = vunpack.c.l.b16 %v4187
    %v5252 = vunpack.c.l.b16 %v4188
    %v5253 = vunpack.c.h.b16 %v4188
    %v5254 = vunpack.c.l.b16 %v4189
    %v5255 = vunpack.c.h.b16 %v4189
    %v5256 = vunpack.c.l.b16 %v4190
    %v5257 = vunpack.c.h.b16 %v4190
    %v5258 = vunpack.c.l.b16 %v4191
    %v5259 = vunpack.c.l.b16 %v4192
    %v5260 = vunpack.c.h.b16 %v4192
    %v5261 = vunpack.c.l.b16 %v4193
    %v5262 = vunpack.c.h.b16 %v4193
    %v5263 = vunpack.c.l.b16 %v4194
    %v5264 = vunpack.c.h.b16 %v4194
    %v5265 = vunpack.c.l.b16 %v4195
    %v5266 = vunpack.c.l.b16 %v4196
    %v5267 = vunpack.c.h.b16 %v4196
    %v5268 = vunpack.c.l.b16 %v4197
    %v5269 = vunpack.c.h.b16 %v4197
    %v5270 = vunpack.c.l.b16 %v4198
    %v5271 = vunpack.c.h.b16 %v4198
    %v5272 = vunpack.c.l.b16 %v4199
    %v5273 = vunpack.c.l.b16 %v4200
    %v5274 = vunpack.c.h.b16 %v4200
    %v5275 = vunpack.c.l.b16 %v4201
    %v5276 = vunpack.c.h.b16 %v4201
    %v5277 = vunpack.c.l.b16 %v4202
    %v5278 = vunpack.c.h.b16 %v4202
    %v5279 = vunpack.c.l.b16 %v4203
    %v5280 = vunpack.c.l.b16 %v4204
    %v5281 = vunpack.c.h.b16 %v4204
    %v5282 = vunpack.c.l.b16 %v4205
    %v5283 = vunpack.c.h.b16 %v4205
    %v5284 = vunpack.c.l.b16 %v4206
    %v5285 = vunpack.c.h.b16 %v4206
    %v5286 = vunpack.c.l.b16 %v4207
    %v5287 = vunpack.c.l.b16 %v4208
    %v5288 = vunpack.c.h.b16 %v4208
    %v5289 = vunpack.c.l.b16 %v4209
    %v5290 = vunpack.c.h.b16 %v4209
    %v5291 = vunpack.c.l.b16 %v4210
    %v5292 = vunpack.c.h.b16 %v4210
    %v5293 = vunpack.c.l.b16 %v4211
    %v5294 = vunpack.c.l.b16 %v4212
    %v5295 = vunpack.c.h.b16 %v4212
    %v5296 = vunpack.c.l.b16 %v4213
    %v5297 = vunpack.c.h.b16 %v4213
    %v5298 = vunpack.c.l.b16 %v4214
    %v5299 = vunpack.c.h.b16 %v4214
    %v5300 = vunpack.c.l.b16 %v4215
    %v5301 = vunpack.c.l.b16 %v4216
    %v5302 = vunpack.c.h.b16 %v4216
    %v5303 = vunpack.c.l.b16 %v4217
    %v5304 = vunpack.c.h.b16 %v4217
    %v5305 = vunpack.c.l.b16 %v4218
    %v5306 = vunpack.c.h.b16 %v4218
    %v5307 = vunpack.c.l.b16 %v4219
    %v5308 = vunpack.c.l.b16 %v4220
    %v5309 = vunpack.c.h.b16 %v4220
    %v5310 = vunpack.c.l.b16 %v4221
    %v5311 = vunpack.c.h.b16 %v4221
    %v5312 = vunpack.c.l.b16 %v4222
    %v5313 = vunpack.c.h.b16 %v4222
    %v5314 = vunpack.c.l.b16 %v4223
    %v5315 = vunpack.c.l.b16 %v4224
    %v5316 = vunpack.c.h.b16 %v4224
    %v5317 = vunpack.c.l.b16 %v4225
    %v5318 = vunpack.c.h.b16 %v4225
    %v5319 = vunpack.c.l.b16 %v4226
    %v5320 = vunpack.c.h.b16 %v4226
    %v5321 = vunpack.c.l.b16 %v4227
    %v5322 = vunpack.c.l.b16 %v4228
    %v5323 = vunpack.c.h.b16 %v4228
    %v5324 = vunpack.c.l.b16 %v4229
    %v5325 = vunpack.c.h.b16 %v4229
    %v5326 = vunpack.c.l.b16 %v4230
    %v5327 = vunpack.c.h.b16 %v4230
    %v5328 = vunpack.c.l.b16 %v4231
    %v5329 = vunpack.c.l.b16 %v4232
    %v5330 = vunpack.c.h.b16 %v4232
    %v5331 = vunpack.c.l.b16 %v4233
    %v5332 = vunpack.c.h.b16 %v4233
    %v5333 = vunpack.c.l.b16 %v4234
    %v5334 = vunpack.c.h.b16 %v4234
    %v5335 = vunpack.c.l.b16 %v4235
    %v5336 = vunpack.c.l.b16 %v4236
    %v5337 = vunpack.c.h.b16 %v4236
    %v5338 = vunpack.c.l.b16 %v4237
    %v5339 = vunpack.c.h.b16 %v4237
    %v5340 = vunpack.c.l.b16 %v4238
    %v5341 = vunpack.c.h.b16 %v4238
    %v5342 = vunpack.c.l.b16 %v4239
    %v5343 = vunpack.c.l.b16 %v4240
    %v5344 = vunpack.c.h.b16 %v4240
    %v5345 = vunpack.c.l.b16 %v4241
    %v5346 = vunpack.c.h.b16 %v4241
    %v5347 = vunpack.c.l.b16 %v4242
    %v5348 = vunpack.c.h.b16 %v4242
    %v5349 = vunpack.c.l.b16 %v4243
    %v5350 = vunpack.c.l.b16 %v4244
    %v5351 = vunpack.c.h.b16 %v4244
    %v5352 = vunpack.c.l.b16 %v4245
    %v5353 = vunpack.c.h.b16 %v4245
    %v5354 = vunpack.c.l.b16 %v4246
    %v5355 = vunpack.c.h.b16 %v4246
    %v5356 = vunpack.c.l.b16 %v4247
    %v5357 = vunpack.c.l.b16 %v4248
    %v5358 = vunpack.c.h.b16 %v4248
    %v5359 = vunpack.c.l.b16 %v4249
    %v5360 = vunpack.c.h.b16 %v4249
    %v5361 = vunpack.c.l.b16 %v4250
    %v5362 = vunpack.c.h.b16 %v4250
    %v5363 = vunpack.c.l.b16 %v4251
    %v5364 = vunpack.c.l.b16 %v4252
    %v5365 = vunpack.c.h.b16 %v4252
    %v5366 = vunpack.c.l.b16 %v4253
    %v5367 = vunpack.c.h.b16 %v4253
    %v5368 = vunpack.c.l.b16 %v4254
    %v5369 = vunpack.c.h.b16 %v4254
    %v5370 = vunpack.c.l.b16 %v4255
    %v5371 = vunpack.c.l.b16 %v4256
    %v5372 = vunpack.c.h.b16 %v4256
    %v5373 = vunpack.c.l.b16 %v4257
    %v5374 = vunpack.c.h.b16 %v4257
    %v5375 = vunpack.c.l.b16 %v4258
    %v5376 = vunpack.c.h.b16 %v4258
    %v5377 = vunpack.c.l.b16 %v4259
    %v5378 = vunpack.c.l.b16 %v4260
    %v5379 = vunpack.c.h.b16 %v4260
    %v5380 = vunpack.c.l.b16 %v4261
    %v5381 = vunpack.c.h.b16 %v4261
    %v5382 = vunpack.c.l.b16 %v4262
    %v5383 = vunpack.c.h.b16 %v4262
    %v5384 = vunpack.c.l.b16 %v4263
    %v5385 = vunpack.c.l.b16 %v4264
    %v5386 = vunpack.c.h.b16 %v4264
    %v5387 = vunpack.c.l.b16 %v4265
    %v5388 = vunpack.c.h.b16 %v4265
    %v5389 = vunpack.c.l.b16 %v4266
    %v5390 = vunpack.c.h.b16 %v4266
    %v5391 = vunpack.c.l.b16 %v4267
    %v5392 = vunpack.c.l.b16 %v4268
    %v5393 = vunpack.c.h.b16 %v4268
    %v5394 = vunpack.c.l.b16 %v4269
    %v5395 = vunpack.c.h.b16 %v4269
    %v5396 = vunpack.c.l.b16 %v4270
    %v5397 = vunpack.c.h.b16 %v4270
    %v5398 = vunpack.c.l.b16 %v4271
    %v5399 = vunpack.c.l.b16 %v4272
    %v5400 = vunpack.c.h.b16 %v4272
    %v5401 = vunpack.c.l.b16 %v4273
    %v5402 = vunpack.c.h.b16 %v4273
    %v5403 = vunpack.c.l.b16 %v4274
    %v5404 = vunpack.c.h.b16 %v4274
    %v5405 = vunpack.c.l.b16 %v4275
    %v5406 = vunpack.c.l.b16 %v4276
    %v5407 = vunpack.c.h.b16 %v4276
    %v5408 = vunpack.c.l.b16 %v4277
    %v5409 = vunpack.c.h.b16 %v4277
    %v5410 = vunpack.c.l.b16 %v4278
    %v5411 = vunpack.c.h.b16 %v4278
    %v5412 = vunpack.c.l.b16 %v4279
    %v5413 = vunpack.c.l.b16 %v4280
    %v5414 = vunpack.c.h.b16 %v4280
    %v5415 = vunpack.c.l.b16 %v4281
    %v5416 = vunpack.c.h.b16 %v4281
    %v5417 = vunpack.c.l.b16 %v4282
    %v5418 = vunpack.c.h.b16 %v4282
    %v5419 = vunpack.c.l.b16 %v4283
    %v5420 = vunpack.c.l.b16 %v4284
    %v5421 = vunpack.c.h.b16 %v4284
    %v5422 = vunpack.c.l.b16 %v4285
    %v5423 = vunpack.c.h.b16 %v4285
    %v5424 = vunpack.c.l.b16 %v4286
    %v5425 = vunpack.c.h.b16 %v4286
    %v5426 = vunpack.c.l.b16 %v4287
    %v5427 = vunpack.c.l.b16 %v4288
    %v5428 = vunpack.c.h.b16 %v4288
    %v5429 = vunpack.c.l.b16 %v4289
    %v5430 = vunpack.c.h.b16 %v4289
    %v5431 = vunpack.c.l.b16 %v4290
    %v5432 = vunpack.c.h.b16 %v4290
    %v5433 = vunpack.c.l.b16 %v4291
    %v5434 = vunpack.c.l.b16 %v4292
    %v5435 = vunpack.c.h.b16 %v4292
    %v5436 = vunpack.c.l.b16 %v4293
    %v5437 = vunpack.c.h.b16 %v4293
    %v5438 = vunpack.c.l.b16 %v4294
    %v5439 = vunpack.c.h.b16 %v4294
    %v5440 = vunpack.c.l.b16 %v4295
    %v5441 = vunpack.c.l.b16 %v4296
    %v5442 = vunpack.c.h.b16 %v4296
    %v5443 = vunpack.c.l.b16 %v4297
    %v5444 = vunpack.c.h.b16 %v4297
    %v5445 = vunpack.c.l.b16 %v4298
    %v5446 = vunpack.c.h.b16 %v4298
    %v5447 = vunpack.c.l.b16 %v4299
    %v5448 = vunpack.c.l.b16 %v4300
    %v5449 = vunpack.c.h.b16 %v4300
    %v5450 = vunpack.c.l.b16 %v4301
    %v5451 = vunpack.c.h.b16 %v4301
    %v5452 = vunpack.c.l.b16 %v4302
    %v5453 = vunpack.c.h.b16 %v4302
    %v5454 = vunpack.c.l.b16 %v4303
    %v5455 = vunpack.c.l.b16 %v4304
    %v5456 = vunpack.c.h.b16 %v4304
    %v5457 = vunpack.c.l.b16 %v4305
    %v5458 = vunpack.c.h.b16 %v4305
    %v5459 = vunpack.c.l.b16 %v4306
    %v5460 = vunpack.c.h.b16 %v4306
    %v5461 = vunpack.c.l.b16 %v4307
    %v5462 = vunpack.c.l.b16 %v4308
    %v5463 = vunpack.c.h.b16 %v4308
    %v5464 = vunpack.c.l.b16 %v4309
    %v5465 = vunpack.c.h.b16 %v4309
    %v5466 = vunpack.c.l.b16 %v4310
    %v5467 = vunpack.c.h.b16 %v4310
    %v5468 = vunpack.c.l.b16 %v4311
    %v5469 = vunpack.c.l.b16 %v4312
    %v5470 = vunpack.c.h.b16 %v4312
    %v5471 = vunpack.c.l.b16 %v4313
    %v5472 = vunpack.c.h.b16 %v4313
    %v5473 = vunpack.c.l.b16 %v4314
    %v5474 = vunpack.c.h.b16 %v4314
    %v5475 = vunpack.c.l.b16 %v4315
    %v5476 = vunpack.c.l.b16 %v4316
    %v5477 = vunpack.c.h.b16 %v4316
    %v5478 = vunpack.c.l.b16 %v4317
    %v5479 = vunpack.c.h.b16 %v4317
    %v5480 = vunpack.c.l.b16 %v4318
    %v5481 = vunpack.c.h.b16 %v4318
    %v5482 = vunpack.c.l.b16 %v4319
    %v5483 = vunpack.c.l.b16 %v4320
    %v5484 = vunpack.c.h.b16 %v4320
    %v5485 = vunpack.c.l.b16 %v4321
    %v5486 = vunpack.c.h.b16 %v4321
    %v5487 = vunpack.c.l.b16 %v4322
    %v5488 = vunpack.c.h.b16 %v4322
    %v5489 = vunpack.c.l.b16 %v4323
    %v5490 = vunpack.c.l.b16 %v4324
    %v5491 = vunpack.c.h.b16 %v4324
    %v5492 = vunpack.c.l.b16 %v4325
    %v5493 = vunpack.c.h.b16 %v4325
    %v5494 = vunpack.c.l.b16 %v4326
    %v5495 = vunpack.c.h.b16 %v4326
    %v5496 = vunpack.c.l.b16 %v4327
    %v5497 = vunpack.c.l.b16 %v4328
    %v5498 = vunpack.c.h.b16 %v4328
    %v5499 = vunpack.c.l.b16 %v4329
    %v5500 = vunpack.c.h.b16 %v4329
    %v5501 = vunpack.c.l.b16 %v4330
    %v5502 = vunpack.c.h.b16 %v4330
    %v5503 = vunpack.c.l.b16 %v4331
    %v5504 = vunpack.c.l.b16 %v4332
    %v5505 = vunpack.c.h.b16 %v4332
    %v5506 = vunpack.c.l.b16 %v4333
    %v5507 = vunpack.c.h.b16 %v4333
    %v5508 = vunpack.c.l.b16 %v4334
    %v5509 = vunpack.c.h.b16 %v4334
    %v5510 = vunpack.c.l.b16 %v4335
    %v5511 = vunpack.c.l.b16 %v4336
    %v5512 = vunpack.c.h.b16 %v4336
    %v5513 = vunpack.c.l.b16 %v4337
    %v5514 = vunpack.c.h.b16 %v4337
    %v5515 = vunpack.c.l.b16 %v4338
    %v5516 = vunpack.c.h.b16 %v4338
    %v5517 = vunpack.c.l.b16 %v4339
    %v5518 = vunpack.c.l.b16 %v4340
    %v5519 = vunpack.c.h.b16 %v4340
    %v5520 = vunpack.c.l.b16 %v4341
    %v5521 = vunpack.c.h.b16 %v4341
    %v5522 = vunpack.c.l.b16 %v4342
    %v5523 = vunpack.c.h.b16 %v4342
    %v5524 = vunpack.c.l.b16 %v4343
    %v5525 = vunpack.c.l.b16 %v4344
    %v5526 = vunpack.c.h.b16 %v4344
    %v5527 = vunpack.c.l.b16 %v4345
    %v5528 = vunpack.c.h.b16 %v4345
    %v5529 = vunpack.c.l.b16 %v4346
    %v5530 = vunpack.c.h.b16 %v4346
    %v5531 = vunpack.c.l.b16 %v4347
    %v5532 = vunpack.c.l.b16 %v4348
    %v5533 = vunpack.c.h.b16 %v4348
    %v5534 = vunpack.c.l.b16 %v4349
    %v5535 = vunpack.c.h.b16 %v4349
    %v5536 = vunpack.c.l.b16 %v4350
    %v5537 = vunpack.c.h.b16 %v4350
    %v5538 = vunpack.c.l.b16 %v4351
    %v5539 = vunpack.c.l.b16 %v4352
    %v5540 = vunpack.c.h.b16 %v4352
    %v5541 = vunpack.c.l.b16 %v4353
    %v5542 = vunpack.c.h.b16 %v4353
    %v5543 = vunpack.c.l.b16 %v4354
    %v5544 = vunpack.c.h.b16 %v4354
    %v5545 = vunpack.c.l.b16 %v4355
    %v5546 = vunpack.c.l.b16 %v4356
    %v5547 = vunpack.c.h.b16 %v4356
    %v5548 = vunpack.c.l.b16 %v4357
    %v5549 = vunpack.c.h.b16 %v4357
    %v5550 = vunpack.c.l.b16 %v4358
    %v5551 = vunpack.c.h.b16 %v4358
    %v5552 = vunpack.c.l.b16 %v4359
    %v5553 = vunpack.c.l.b16 %v4360
    %v5554 = vunpack.c.h.b16 %v4360
    %v5555 = vunpack.c.l.b16 %v4361
    %v5556 = vunpack.c.h.b16 %v4361
    %v5557 = vunpack.c.l.b16 %v4362
    %v5558 = vunpack.c.h.b16 %v4362
    %v5559 = vunpack.c.l.b16 %v4363
    %v5560 = vunpack.c.l.b16 %v4364
    %v5561 = vunpack.c.h.b16 %v4364
    %v5562 = vunpack.c.l.b16 %v4365
    %v5563 = vunpack.c.h.b16 %v4365
    %v5564 = vunpack.c.l.b16 %v4366
    %v5565 = vunpack.c.h.b16 %v4366
    %v5566 = vunpack.c.l.b16 %v4367
    %v5567 = vunpack.c.l.b16 %v4368
    %v5568 = vunpack.c.h.b16 %v4368
    %v5569 = vunpack.c.l.b16 %v4369
    %v5570 = vunpack.c.h.b16 %v4369
    %v5571 = vunpack.c.l.b16 %v4370
    %v5572 = vunpack.c.h.b16 %v4370
    %v5573 = vunpack.c.l.b16 %v4371
    %v5574 = vunpack.c.l.b16 %v4372
    %v5575 = vunpack.c.h.b16 %v4372
    %v5576 = vunpack.c.l.b16 %v4373
    %v5577 = vunpack.c.h.b16 %v4373
    %v5578 = vunpack.c.l.b16 %v4374
    %v5579 = vunpack.c.h.b16 %v4374
    %v5580 = vunpack.c.l.b16 %v4375
    %v5581 = vunpack.c.l.b16 %v4376
    %v5582 = vunpack.c.h.b16 %v4376
    %v5583 = vunpack.c.l.b16 %v4377
    %v5584 = vunpack.c.h.b16 %v4377
    %v5585 = vunpack.c.l.b16 %v4378
    %v5586 = vunpack.c.h.b16 %v4378
    %v5587 = vunpack.c.l.b16 %v4379
    %v5588 = vunpack.c.l.b16 %v4380
    %v5589 = vunpack.c.h.b16 %v4380
    %v5590 = vunpack.c.l.b16 %v4381
    %v5591 = vunpack.c.h.b16 %v4381
    %v5592 = vunpack.c.l.b16 %v4382
    %v5593 = vunpack.c.h.b16 %v4382
    %v5594 = vunpack.c.l.b16 %v4383
    %v5595 = vunpack.c.l.b16 %v4384
    %v5596 = vunpack.c.h.b16 %v4384
    %v5597 = vunpack.c.l.b16 %v4385
    %v5598 = vunpack.c.h.b16 %v4385
    %v5599 = vunpack.c.l.b16 %v4386
    %v5600 = vunpack.c.h.b16 %v4386
    %v5601 = vunpack.c.l.b16 %v4387
    %v5602 = vunpack.c.l.b16 %v4388
    %v5603 = vunpack.c.h.b16 %v4388
    %v5604 = vunpack.c.l.b16 %v4389
    %v5605 = vunpack.c.h.b16 %v4389
    %v5606 = vunpack.c.l.b16 %v4390
    %v5607 = vunpack.c.h.b16 %v4390
    %v5608 = vunpack.c.l.b16 %v4391
    %v5609 = vunpack.c.l.b16 %v4392
    %v5610 = vunpack.c.h.b16 %v4392
    %v5611 = vunpack.c.l.b16 %v4393
    %v5612 = vunpack.c.h.b16 %v4393
    %v5613 = vunpack.c.l.b16 %v4394
    %v5614 = vunpack.c.h.b16 %v4394
    %v5615 = vunpack.c.l.b16 %v4395
    %v5616 = vunpack.c.l.b16 %v4396
    %v5617 = vunpack.c.h.b16 %v4396
    %v5618 = vunpack.c.l.b16 %v4397
    %v5619 = vunpack.c.h.b16 %v4397
    %v5620 = vunpack.c.l.b16 %v4398
    %v5621 = vunpack.c.h.b16 %v4398
    %v5622 = vunpack.c.l.b16 %v4399
    %v5623 = vunpack.c.l.b16 %v4400
    %v5624 = vunpack.c.h.b16 %v4400
    %v5625 = vunpack.c.l.b16 %v4401
    %v5626 = vunpack.c.h.b16 %v4401
    %v5627 = vunpack.c.l.b16 %v4402
    %v5628 = vunpack.c.h.b16 %v4402
    %v5629 = vunpack.c.l.b16 %v4403
    %v5630 = vunpack.c.l.b16 %v4404
    %v5631 = vunpack.c.h.b16 %v4404
    %v5632 = vunpack.c.l.b16 %v4405
    %v5633 = vunpack.c.h.b16 %v4405
    %v5634 = vunpack.c.l.b16 %v4406
    %v5635 = vunpack.c.h.b16 %v4406
    %v5636 = vunpack.c.l.b16 %v4407
    %v5637 = vunpack.c.l.b16 %v4408
    %v5638 = vunpack.c.h.b16 %v4408
    %v5639 = vunpack.c.l.b16 %v4409
    %v5640 = vunpack.c.h.b16 %v4409
    %v5641 = vunpack.c.l.b16 %v4410
    %v5642 = vunpack.c.h.b16 %v4410
    %v5643 = vunpack.c.l.b16 %v4411
    %v5644 = vunpack.c.l.b16 %v4412
    %v5645 = vunpack.c.h.b16 %v4412
    %v5646 = vunpack.c.l.b16 %v4413
    %v5647 = vunpack.c.h.b16 %v4413
    %v5648 = vunpack.c.l.b16 %v4414
    %v5649 = vunpack.c.h.b16 %v4414
    %v5650 = vunpack.c.l.b16 %v4415
    %v5651 = vunpack.c.l.b16 %v4416
    %v5652 = vunpack.c.h.b16 %v4416
    %v5653 = vunpack.c.l.b16 %v4417
    %v5654 = vunpack.c.h.b16 %v4417
    %v5655 = vunpack.c.l.b16 %v4418
    %v5656 = vunpack.c.h.b16 %v4418
    %v5657 = vunpack.c.l.b16 %v4419
    %v5658 = vunpack.c.l.b16 %v4420
    %v5659 = vunpack.c.h.b16 %v4420
    %v5660 = vunpack.c.l.b16 %v4421
    %v5661 = vunpack.c.h.b16 %v4421
    %v5662 = vunpack.c.l.b16 %v4422
    %v5663 = vunpack.c.h.b16 %v4422
    %v5664 = vunpack.c.l.b16 %v4423
    %v5665 = vunpack.c.l.b16 %v4424
    %v5666 = vunpack.c.h.b16 %v4424
    %v5667 = vunpack.c.l.b16 %v4425
    %v5668 = vunpack.c.h.b16 %v4425
    %v5669 = vunpack.c.l.b16 %v4426
    %v5670 = vunpack.c.h.b16 %v4426
    %v5671 = vunpack.c.l.b16 %v4427
    %v5672 = vunpack.c.l.b16 %v4428
    %v5673 = vunpack.c.h.b16 %v4428
    %v5674 = vunpack.c.l.b16 %v4429
    %v5675 = vunpack.c.h.b16 %v4429
    %v5676 = vunpack.c.l.b16 %v4430
    %v5677 = vunpack.c.h.b16 %v4430
    %v5678 = vunpack.c.l.b16 %v4431
    %v5679 = vunpack.c.l.b16 %v4432
    %v5680 = vunpack.c.h.b16 %v4432
    %v5681 = vunpack.c.l.b16 %v4433
    %v5682 = vunpack.c.h.b16 %v4433
    %v5683 = vunpack.c.l.b16 %v4434
    %v5684 = vunpack.c.h.b16 %v4434
    %v5685 = vunpack.c.l.b16 %v4435
    %v5686 = vunpack.c.l.b16 %v4436
    %v5687 = vunpack.c.h.b16 %v4436
    %v5688 = vunpack.c.l.b16 %v4437
    %v5689 = vunpack.c.h.b16 %v4437
    %v5690 = vunpack.c.l.b16 %v4438
    %v5691 = vunpack.c.h.b16 %v4438
    %v5692 = vunpack.c.l.b16 %v4439
    %v5693 = vunpack.c.l.b16 %v4440
    %v5694 = vunpack.c.h.b16 %v4440
    %v5695 = vunpack.c.l.b16 %v4441
    %v5696 = vunpack.c.h.b16 %v4441
    %v5697 = vunpack.c.l.b16 %v4442
    %v5698 = vunpack.c.h.b16 %v4442
    %v5699 = vunpack.c.l.b16 %v4443
    %v5700 = vunpack.c.l.b16 %v4444
    %v5701 = vunpack.c.h.b16 %v4444
    %v5702 = vunpack.c.l.b16 %v4445
    %v5703 = vunpack.c.h.b16 %v4445
    %v5704 = vunpack.c.l.b16 %v4446
    %v5705 = vunpack.c.h.b16 %v4446
    %v5706 = vunpack.c.l.b16 %v4447
    %v5707 = vunpack.c.l.b16 %v4448
    %v5708 = vunpack.c.h.b16 %v4448
    %v5709 = vunpack.c.l.b16 %v4449
    %v5710 = vunpack.c.h.b16 %v4449
    %v5711 = vunpack.c.l.b16 %v4450
    %v5712 = vunpack.c.h.b16 %v4450
    %v5713 = vunpack.c.l.b16 %v4451
    %v5714 = vunpack.c.l.b16 %v4452
    %v5715 = vunpack.c.h.b16 %v4452
    %v5716 = vunpack.c.l.b16 %v4453
    %v5717 = vunpack.c.h.b16 %v4453
    %v5718 = vunpack.c.l.b16 %v4454
    %v5719 = vunpack.c.h.b16 %v4454
    %v5720 = vunpack.c.l.b16 %v4455
    %v5721 = vunpack.c.l.b16 %v4456
    %v5722 = vunpack.c.h.b16 %v4456
    %v5723 = vunpack.c.l.b16 %v4457
    %v5724 = vunpack.c.h.b16 %v4457
    %v5725 = vunpack.c.l.b16 %v4458
    %v5726 = vunpack.c.h.b16 %v4458
    %v5727 = vunpack.c.l.b16 %v4459
    %v5728 = vunpack.c.l.b16 %v4460
    %v5729 = vunpack.c.h.b16 %v4460
    %v5730 = vunpack.c.l.b16 %v4461
    %v5731 = vunpack.c.h.b16 %v4461
    %v5732 = vunpack.c.l.b16 %v4462
    %v5733 = vunpack.c.h.b16 %v4462
    %v5734 = vunpack.c.l.b16 %v4463
    %v5735 = vunpack.c.l.b16 %v4464
    %v5736 = vunpack.c.h.b16 %v4464
    %v5737 = vunpack.c.l.b16 %v4465
    %v5738 = vunpack.c.h.b16 %v4465
    %v5739 = vunpack.c.l.b16 %v4466
    %v5740 = vunpack.c.h.b16 %v4466
    %v5741 = vunpack.c.l.b16 %v4467
    %v5742 = vunpack.c.l.b16 %v4468
    %v5743 = vunpack.c.h.b16 %v4468
    %v5744 = vunpack.c.l.b16 %v4469
    %v5745 = vunpack.c.h.b16 %v4469
    %v5746 = vunpack.c.l.b16 %v4470
    %v5747 = vunpack.c.h.b16 %v4470
    %v5748 = vunpack.c.l.b16 %v4471
    %v5749 = vunpack.c.l.b16 %v4472
    %v5750 = vunpack.c.h.b16 %v4472
    %v5751 = vunpack.c.l.b16 %v4473
    %v5752 = vunpack.c.h.b16 %v4473
    %v5753 = vunpack.c.l.b16 %v4474
    %v5754 = vunpack.c.h.b16 %v4474
    %v5755 = vunpack.c.l.b16 %v4475
    %v5756 = vunpack.c.l.b16 %v4476
    %v5757 = vunpack.c.h.b16 %v4476
    %v5758 = vunpack.c.l.b16 %v4477
    %v5759 = vunpack.c.h.b16 %v4477
    %v5760 = vunpack.c.l.b16 %v4478
    %v5761 = vunpack.c.h.b16 %v4478
    %v5762 = vunpack.c.l.b16 %v4479
    %v5763 = vunpack.c.l.b16 %v4480
    %v5764 = vunpack.c.h.b16 %v4480
    %v5765 = vunpack.c.l.b16 %v4481
    %v5766 = vunpack.c.h.b16 %v4481
    %v5767 = vunpack.c.l.b16 %v4482
    %v5768 = vunpack.c.h.b16 %v4482
    %v5769 = vunpack.c.l.b16 %v4483
    %v5770 = vunpack.c.l.b16 %v4484
    %v5771 = vunpack.c.h.b16 %v4484
    %v5772 = vunpack.c.l.b16 %v4485
    %v5773 = vunpack.c.h.b16 %v4485
    %v5774 = vunpack.c.l.b16 %v4486
    %v5775 = vunpack.c.h.b16 %v4486
    %v5776 = vunpack.c.l.b16 %v4487
    %v5777 = vunpack.c.l.b16 %v4488
    %v5778 = vunpack.c.h.b16 %v4488
    %v5779 = vunpack.c.l.b16 %v4489
    %v5780 = vunpack.c.h.b16 %v4489
    %v5781 = vunpack.c.l.b16 %v4490
    %v5782 = vunpack.c.h.b16 %v4490
    %v5783 = vunpack.c.l.b16 %v4491
    %v5784 = vunpack.c.l.b16 %v4492
    %v5785 = vunpack.c.h.b16 %v4492
    %v5786 = vunpack.c.l.b16 %v4493
    %v5787 = vunpack.c.h.b16 %v4493
    %v5788 = vunpack.c.l.b16 %v4494
    %v5789 = vunpack.c.h.b16 %v4494
    %v5790 = vunpack.c.l.b16 %v4495
    %v5791 = vunpack.c.l.b16 %v4496
    %v5792 = vunpack.c.h.b16 %v4496
    %v5793 = vunpack.c.l.b16 %v4497
    %v5794 = vunpack.c.h.b16 %v4497
    %v5795 = vunpack.c.l.b16 %v4498
    %v5796 = vunpack.c.h.b16 %v4498
    %v5797 = vunpack.c.l.b16 %v4499
    %v5798 = vunpack.c.l.b16 %v4500
    %v5799 = vunpack.c.h.b16 %v4500
    %v5800 = vunpack.c.l.b16 %v4501
    %v5801 = vunpack.c.h.b16 %v4501
    %v5802 = vunpack.c.l.b16 %v4502
    %v5803 = vunpack.c.h.b16 %v4502
    %v5804 = vunpack.c.l.b16 %v4503
    %v5805 = vunpack.c.l.b16 %v4504
    %v5806 = vunpack.c.h.b16 %v4504
    %v5807 = vunpack.c.l.b16 %v4505
    %v5808 = vunpack.c.h.b16 %v4505
    %v5809 = vunpack.c.l.b16 %v4506
    %v5810 = vunpack.c.h.b16 %v4506
    %v5811 = vunpack.c.l.b16 %v4507
    %v5812 = vunpack.c.l.b16 %v4508
    %v5813 = vunpack.c.h.b16 %v4508
    %v5814 = vunpack.c.l.b16 %v4509
    %v5815 = vunpack.c.h.b16 %v4509
    %v5816 = vunpack.c.l.b16 %v4510
    %v5817 = vunpack.c.h.b16 %v4510
    %v5818 = vunpack.c.l.b16 %v4511
    %v5819 = vunpack.c.l.b16 %v4512
    %v5820 = vunpack.c.h.b16 %v4512
    %v5821 = vunpack.c.l.b16 %v4513
    %v5822 = vunpack.c.h.b16 %v4513
    %v5823 = vunpack.c.l.b16 %v4514
    %v5824 = vunpack.c.h.b16 %v4514
    %v5825 = vunpack.c.l.b16 %v4515
    %v5826 = vunpack.c.l.b16 %v4516
    %v5827 = vunpack.c.h.b16 %v4516
    %v5828 = vunpack.c.l.b16 %v4517
    %v5829 = vunpack.c.h.b16 %v4517
    %v5830 = vunpack.c.l.b16 %v4518
    %v5831 = vunpack.c.h.b16 %v4518
    %v5832 = vunpack.c.l.b16 %v4519
    %v5833 = vunpack.c.l.b16 %v4520
    %v5834 = vunpack.c.h.b16 %v4520
    %v5835 = vunpack.c.l.b16 %v4521
    %v5836 = vunpack.c.h.b16 %v4521
    %v5837 = vunpack.c.l.b16 %v4522
    %v5838 = vunpack.c.h.b16 %v4522
    %v5839 = vunpack.c.l.b16 %v4523
    %v5840 = vunpack.c.l.b16 %v4524
    %v5841 = vunpack.c.h.b16 %v4524
    %v5842 = vunpack.c.l.b16 %v4525
    %v5843 = vunpack.c.h.b16 %v4525
    %v5844 = vunpack.c.l.b16 %v4526
    %v5845 = vunpack.c.h.b16 %v4526
    %v5846 = vunpack.c.l.b16 %v4527
    %v5847 = vunpack.c.l.b16 %v4528
    %v5848 = vunpack.c.h.b16 %v4528
    %v5849 = vunpack.c.l.b16 %v4529
    %v5850 = vunpack.c.h.b16 %v4529
    %v5851 = vunpack.c.l.b16 %v4530
    %v5852 = vunpack.c.h.b16 %v4530
    %v5853 = vunpack.c.l.b16 %v4531
    %v5854 = vunpack.c.l.b16 %v4532
    %v5855 = vunpack.c.h.b16 %v4532
    %v5856 = vunpack.c.l.b16 %v4533
    %v5857 = vunpack.c.h.b16 %v4533
    %v5858 = vunpack.c.l.b16 %v4534
    %v5859 = vunpack.c.h.b16 %v4534
    %v5860 = vunpack.c.l.b16 %v4535
    %v5861 = vunpack.c.l.b16 %v4536
    %v5862 = vunpack.c.h.b16 %v4536
    %v5863 = vunpack.c.l.b16 %v4537
    %v5864 = vunpack.c.h.b16 %v4537
    %v5865 = vunpack.c.l.b16 %v4538
    %v5866 = vunpack.c.h.b16 %v4538
    %v5867 = vunpack.c.l.b16 %v4539
    %v5868 = vunpack.c.l.b16 %v4540
    %v5869 = vunpack.c.h.b16 %v4540
    %v5870 = vunpack.c.l.b16 %v4541
    %v5871 = vunpack.c.h.b16 %v4541
    %v5872 = vunpack.c.l.b16 %v4542
    %v5873 = vunpack.c.h.b16 %v4542
    %v5874 = vunpack.c.l.b16 %v4543
    %v5875 = vunpack.c.l.b16 %v4544
    %v5876 = vunpack.c.h.b16 %v4544
    %v5877 = vunpack.c.l.b16 %v4545
    %v5878 = vunpack.c.h.b16 %v4545
    %v5879 = vunpack.c.l.b16 %v4546
    %v5880 = vunpack.c.h.b16 %v4546
    %v5881 = vunpack.c.l.b16 %v4547
    %v5882 = vunpack.c.l.b16 %v4548
    %v5883 = vunpack.c.h.b16 %v4548
    %v5884 = vunpack.c.l.b16 %v4549
    %v5885 = vunpack.c.h.b16 %v4549
    %v5886 = vunpack.c.l.b16 %v4550
    %v5887 = vunpack.c.h.b16 %v4550
    %v5888 = vunpack.c.l.b16 %v4551
    %v5889 = vunpack.c.l.b16 %v4552
    %v5890 = vunpack.c.h.b16 %v4552
    %v5891 = vunpack.c.l.b16 %v4553
    %v5892 = vunpack.c.h.b16 %v4553
    %v5893 = vunpack.c.l.b16 %v4554
    %v5894 = vunpack.c.h.b16 %v4554
    %v5895 = vunpack.c.l.b16 %v4555
    %v5896 = vunpack.c.l.b16 %v4556
    %v5897 = vunpack.c.h.b16 %v4556
    %v5898 = vunpack.c.l.b16 %v4557
    %v5899 = vunpack.c.h.b16 %v4557
    %v5900 = vunpack.c.l.b16 %v4558
    %v5901 = vunpack.c.h.b16 %v4558
    %v5902 = vunpack.c.l.b16 %v4559
    %v5903 = vunpack.c.l.b16 %v4560
    %v5904 = vunpack.c.h.b16 %v4560
    %v5905 = vunpack.c.l.b16 %v4561
    %v5906 = vunpack.c.h.b16 %v4561
    %v5907 = vunpack.c.l.b16 %v4562
    %v5908 = vunpack.c.h.b16 %v4562
    %v5909 = vunpack.c.l.b16 %v4563
    %v5910 = vunpack.c.l.b16 %v4564
    %v5911 = vunpack.c.h.b16 %v4564
    %v5912 = vunpack.c.l.b16 %v4565
    %v5913 = vunpack.c.h.b16 %v4565
    %v5914 = vunpack.c.l.b16 %v4566
    %v5915 = vunpack.c.h.b16 %v4566
    %v5916 = vunpack.c.l.b16 %v4567
    %v5917 = vunpack.c.l.b16 %v4568
    %v5918 = vunpack.c.h.b16 %v4568
    %v5919 = vunpack.c.l.b16 %v4569
    %v5920 = vunpack.c.h.b16 %v4569
    %v5921 = vunpack.c.l.b16 %v4570
    %v5922 = vunpack.c.h.b16 %v4570
    %v5923 = vunpack.c.l.b16 %v4571
    %v5924 = vunpack.c.l.b16 %v4572
    %v5925 = vunpack.c.h.b16 %v4572
    %v5926 = vunpack.c.l.b16 %v4573
    %v5927 = vunpack.c.h.b16 %v4573
    %v5928 = vunpack.c.l.b16 %v4574
    %v5929 = vunpack.c.h.b16 %v4574
    %v5930 = vunpack.c.l.b16 %v4575
    %v5931 = vunpack.c.l.b16 %v4576
    %v5932 = vunpack.c.h.b16 %v4576
    %v5933 = vunpack.c.l.b16 %v4577
    %v5934 = vunpack.c.h.b16 %v4577
    %v5935 = vunpack.c.l.b16 %v4578
    %v5936 = vunpack.c.h.b16 %v4578
    %v5937 = vunpack.c.l.b16 %v4579
    %v5938 = vunpack.c.l.b16 %v4580
    %v5939 = vunpack.c.h.b16 %v4580
    %v5940 = vunpack.c.l.b16 %v4581
    %v5941 = vunpack.c.h.b16 %v4581
    %v5942 = vunpack.c.l.b16 %v4582
    %v5943 = vunpack.c.h.b16 %v4582
    %v5944 = vunpack.c.l.b16 %v4583
    %v5945 = vunpack.c.l.b16 %v4584
    %v5946 = vunpack.c.h.b16 %v4584
    %v5947 = vunpack.c.l.b16 %v4585
    %v5948 = vunpack.c.h.b16 %v4585
    %v5949 = vunpack.c.l.b16 %v4586
    %v5950 = vunpack.c.h.b16 %v4586
    %v5951 = vunpack.c.l.b16 %v4587
    %v5952 = vunpack.c.l.b16 %v4588
    %v5953 = vunpack.c.h.b16 %v4588
    %v5954 = vunpack.c.l.b16 %v4589
    %v5955 = vunpack.c.h.b16 %v4589
    %v5956 = vunpack.c.l.b16 %v4590
    %v5957 = vunpack.c.h.b16 %v4590
    %v5958 = vunpack.c.l.b16 %v4591
    %v5959 = vunpack.c.l.b16 %v4592
    %v5960 = vunpack.c.h.b16 %v4592
    %v5961 = vunpack.c.l.b16 %v4593
    %v5962 = vunpack.c.h.b16 %v4593
    %v5963 = vunpack.c.l.b16 %v4594
    %v5964 = vunpack.c.h.b16 %v4594
    %v5965 = vunpack.c.l.b16 %v4595
    %v5966 = vunpack.c.l.b16 %v4596
    %v5967 = vunpack.c.h.b16 %v4596
    %v5968 = vunpack.c.l.b16 %v4597
    %v5969 = vunpack.c.h.b16 %v4597
    %v5970 = vunpack.c.l.b16 %v4598
    %v5971 = vunpack.c.h.b16 %v4598
    %v5972 = vunpack.c.l.b16 %v4599
    %v5973 = vunpack.c.l.b16 %v4600
    %v5974 = vunpack.c.h.b16 %v4600
    %v5975 = vunpack.c.l.b16 %v4601
    %v5976 = vunpack.c.h.b16 %v4601
    %v5977 = vunpack.c.l.b16 %v4602
    %v5978 = vunpack.c.h.b16 %v4602
    %v5979 = vunpack.c.l.b16 %v4603
    %v5980 = vunpack.c.l.b16 %v4604
    %v5981 = vunpack.c.h.b16 %v4604
    %v5982 = vunpack.c.l.b16 %v4605
    %v5983 = vunpack.c.h.b16 %v4605
    %v5984 = vunpack.c.l.b16 %v4606
    %v5985 = vunpack.c.h.b16 %v4606
    %v5986 = vunpack.c.l.b16 %v4607
    %v5987 = vunpack.c.l.b16 %v4608
    %v5988 = vunpack.c.h.b16 %v4608
    %v5989 = vunpack.c.l.b16 %v4609
    %v5990 = vunpack.c.h.b16 %v4609
    %v5991 = vunpack.c.l.b16 %v4610
    %v5992 = vunpack.c.h.b16 %v4610
    %v5993 = vunpack.c.l.b16 %v4611
    %v5994 = vunpack.c.l.b16 %v4612
    %v5995 = vunpack.c.h.b16 %v4612
    %v5996 = vunpack.c.l.b16 %v4613
    %v5997 = vunpack.c.h.b16 %v4613
    %v5998 = vunpack.c.l.b16 %v4614
    %v5999 = vunpack.c.h.b16 %v4614
    %v6000 = vunpack.c.l.b16 %v4615
    %v6001 = vunpack.c.l.b16 %v4616
    %v6002 = vunpack.c.h.b16 %v4616
    %v6003 = vunpack.c.l.b16 %v4617
    %v6004 = vunpack.c.h.b16 %v4617
    %v6005 = vunpack.c.l.b16 %v4618
    %v6006 = vunpack.c.h.b16 %v4618
    %v6007 = vunpack.c.l.b16 %v4619
    %v6008 = vunpack.c.l.b16 %v4620
    %v6009 = vunpack.c.h.b16 %v4620
    %v6010 = vunpack.c.l.b16 %v4621
    %v6011 = vunpack.c.h.b16 %v4621
    %v6012 = vunpack.c.l.b16 %v4622
    %v6013 = vunpack.c.h.b16 %v4622
    %v6014 = vunpack.c.l.b16 %v4623
    %v6015 = vpack.c.b16 %v5147, %v5140
    %v6016 = vpack.c.b16 %v5148, %v5141
    %v6017 = vpack.c.b16 %v5149, %v5142
    %v6018 = vpack.c.b16 %v5150, %v5143
    %v6019 = vpack.c.b16 %v5151, %v5144
    %v6020 = vpack.c.b16 %v5152, %v5145
    %v6021 = vpack.c.b16 %v5153, %v5146
    %v6022 = vpack.c.b16 %v5161, %v5154
    %v6023 = vpack.c.b16 %v5162, %v5155
    %v6024 = vpack.c.b16 %v5163, %v5156
    %v6025 = vpack.c.b16 %v5164, %v5157
    %v6026 = vpack.c.b16 %v5165, %v5158
    %v6027 = vpack.c.b16 %v5166, %v5159
    %v6028 = vpack.c.b16 %v5167, %v5160
    %v6029 = vpack.c.b16 %v5175, %v5168
    %v6030 = vpack.c.b16 %v5176, %v5169
    %v6031 = vpack.c.b16 %v5177, %v5170
    %v6032 = vpack.c.b16 %v5178, %v5171
    %v6033 = vpack.c.b16 %v5179, %v5172
    %v6034 = vpack.c.b16 %v5180, %v5173
    %v6035 = vpack.c.b16 %v5181, %v5174
    %v6036 = vpack.c.b16 %v5189, %v5182
    %v6037 = vpack.c.b16 %v5190, %v5183
    %v6038 = vpack.c.b16 %v5191, %v5184
    %v6039 = vpack.c.b16 %v5192, %v5185
    %v6040 = vpack.c.b16 %v5193, %v5186
    %v6041 = vpack.c.b16 %v5194, %v5187
    %v6042 = vpack.c.b16 %v5195, %v5188
    %v6043 = vpack.c.b16 %v5203, %v5196
    %v6044 = vpack.c.b16 %v5204, %v5197
    %v6045 = vpack.c.b16 %v5205, %v5198
    %v6046 = vpack.c.b16 %v5206, %v5199
    %v6047 = vpack.c.b16 %v5207, %v5200
    %v6048 = vpack.c.b16 %v5208, %v5201
    %v6049 = vpack.c.b16 %v5209, %v5202
    %v6050 = vpack.c.b16 %v5217, %v5210
    %v6051 = vpack.c.b16 %v5218, %v5211
    %v6052 = vpack.c.b16 %v5219, %v5212
    %v6053 = vpack.c.b16 %v5220, %v5213
    %v6054 = vpack.c.b16 %v5221, %v5214
    %v6055 = vpack.c.b16 %v5222, %v5215
    %v6056 = vpack.c.b16 %v5223, %v5216
    %v6057 = vpack.c.b16 %v5231, %v5224
    %v6058 = vpack.c.b16 %v5232, %v5225
    %v6059 = vpack.c.b16 %v5233, %v5226
    %v6060 = vpack.c.b16 %v5234, %v5227
    %v6061 = vpack.c.b16 %v5235, %v5228
    %v6062 = vpack.c.b16 %v5236, %v5229
    %v6063 = vpack.c.b16 %v5237, %v5230
    %v6064 = vpack.c.b16 %v5245, %v5238
    %v6065 = vpack.c.b16 %v5246, %v5239
    %v6066 = vpack.c.b16 %v5247, %v5240
    %v6067 = vpack.c.b16 %v5248, %v5241
    %v6068 = vpack.c.b16 %v5249, %v5242
    %v6069 = vpack.c.b16 %v5250, %v5243
    %v6070 = vpack.c.b16 %v5251, %v5244
    %v6071 = vpack.c.b16 %v5259, %v5252
    %v6072 = vpack.c.b16 %v5260, %v5253
    %v6073 = vpack.c.b16 %v5261, %v5254
    %v6074 = vpack.c.b16 %v5262, %v5255
    %v6075 = vpack.c.b16 %v5263, %v5256
    %v6076 = vpack.c.b16 %v5264, %v5257
    %v6077 = vpack.c.b16 %v5265, %v5258
    %v6078 = vpack.c.b16 %v5273, %v5266
    %v6079 = vpack.c.b16 %v5274, %v5267
    %v6080 = vpack.c.b16 %v5275, %v5268
    %v6081 = vpack.c.b16 %v5276, %v5269
    %v6082 = vpack.c.b16 %v5277, %v5270
    %v6083 = vpack.c.b16 %v5278, %v5271
    %v6084 = vpack.c.b16 %v5279, %v5272
    %v6085 = vpack.c.b16 %v5287, %v5280
    %v6086 = vpack.c.b16 %v5288, %v5281
    %v6087 = vpack.c.b16 %v5289, %v5282
    %v6088 = vpack.c.b16 %v5290, %v5283
    %v6089 = vpack.c.b16 %v5291, %v5284
    %v6090 = vpack.c.b16 %v5292, %v5285
    %v6091 = vpack.c.b16 %v5293, %v5286
    %v6092 = vpack.c.b16 %v5301, %v5294
    %v6093 = vpack.c.b16 %v5302, %v5295
    %v6094 = vpack.c.b16 %v5303, %v5296
    %v6095 = vpack.c.b16 %v5304, %v5297
    %v6096 = vpack.c.b16 %v5305, %v5298
    %v6097 = vpack.c.b16 %v5306, %v5299
    %v6098 = vpack.c.b16 %v5307, %v5300
    %v6099 = vpack.c.b16 %v5315, %v5308
    %v6100 = vpack.c.b16 %v5316, %v5309
    %v6101 = vpack.c.b16 %v5317, %v5310
    %v6102 = vpack.c.b16 %v5318, %v5311
    %v6103 = vpack.c.b16 %v5319, %v5312
    %v6104 = vpack.c.b16 %v5320, %v5313
    %v6105 = vpack.c.b16 %v5321, %v5314
    %v6106 = vpack.c.b16 %v5329, %v5322
    %v6107 = vpack.c.b16 %v5330, %v5323
    %v6108 = vpack.c.b16 %v5331, %v5324
    %v6109 = vpack.c.b16 %v5332, %v5325
    %v6110 = vpack.c.b16 %v5333, %v5326
    %v6111 = vpack.c.b16 %v5334, %v5327
    %v6112 = vpack.c.b16 %v5335, %v5328
    %v6113 = vpack.c.b16 %v5343, %v5336
    %v6114 = vpack.c.b16 %v5344, %v5337
    %v6115 = vpack.c.b16 %v5345, %v5338
    %v6116 = vpack.c.b16 %v5346, %v5339
    %v6117 = vpack.c.b16 %v5347, %v5340
    %v6118 = vpack.c.b16 %v5348, %v5341
    %v6119 = vpack.c.b16 %v5349, %v5342
    %v6120 = vpack.c.b16 %v5357, %v5350
    %v6121 = vpack.c.b16 %v5358, %v5351
    %v6122 = vpack.c.b16 %v5359, %v5352
    %v6123 = vpack.c.b16 %v5360, %v5353
    %v6124 = vpack.c.b16 %v5361, %v5354
    %v6125 = vpack.c.b16 %v5362, %v5355
    %v6126 = vpack.c.b16 %v5363, %v5356
    %v6127 = vpack.c.b16 %v5371, %v5364
    %v6128 = vpack.c.b16 %v5372, %v5365
    %v6129 = vpack.c.b16 %v5373, %v5366
    %v6130 = vpack.c.b16 %v5374, %v5367
    %v6131 = vpack.c.b16 %v5375, %v5368
    %v6132 = vpack.c.b16 %v5376, %v5369
    %v6133 = vpack.c.b16 %v5377, %v5370
    %v6134 = vpack.c.b16 %v5385, %v5378
    %v6135 = vpack.c.b16 %v5386, %v5379
    %v6136 = vpack.c.b16 %v5387, %v5380
    %v6137 = vpack.c.b16 %v5388, %v5381
    %v6138 = vpack.c.b16 %v5389, %v5382
    %v6139 = vpack.c.b16 %v5390, %v5383
    %v6140 = vpack.c.b16 %v5391, %v5384
    %v6141 = vpack.c.b16 %v5399, %v5392
    %v6142 = vpack.c.b16 %v5400, %v5393
    %v6143 = vpack.c.b16 %v5401, %v5394
    %v6144 = vpack.c.b16 %v5402, %v5395
    %v6145 = vpack.c.b16 %v5403, %v5396
    %v6146 = vpack.c.b16 %v5404, %v5397
    %v6147 = vpack.c.b16 %v5405, %v5398
    %v6148 = vpack.c.b16 %v5413, %v5406
    %v6149 = vpack.c.b16 %v5414, %v5407
    %v6150 = vpack.c.b16 %v5415, %v5408
    %v6151 = vpack.c.b16 %v5416, %v5409
    %v6152 = vpack.c.b16 %v5417, %v5410
    %v6153 = vpack.c.b16 %v5418, %v5411
    %v6154 = vpack.c.b16 %v5419, %v5412
    %v6155 = vpack.c.b16 %v5427, %v5420
    %v6156 = vpack.c.b16 %v5428, %v5421
    %v6157 = vpack.c.b16 %v5429, %v5422
    %v6158 = vpack.c.b16 %v5430, %v5423
    %v6159 = vpack.c.b16 %v5431, %v5424
    %v6160 = vpack.c.b16 %v5432, %v5425
    %v6161 = vpack.c.b16 %v5433, %v5426
    %v6162 = vpack.c.b16 %v5441, %v5434
    %v6163 = vpack.c.b16 %v5442, %v5435
    %v6164 = vpack.c.b16 %v5443, %v5436
    %v6165 = vpack.c.b16 %v5444, %v5437
    %v6166 = vpack.c.b16 %v5445, %v5438
    %v6167 = vpack.c.b16 %v5446, %v5439
    %v6168 = vpack.c.b16 %v5447, %v5440
    %v6169 = vpack.c.b16 %v5455, %v5448
    %v6170 = vpack.c.b16 %v5456, %v5449
    %v6171 = vpack.c.b16 %v5457, %v5450
    %v6172 = vpack.c.b16 %v5458, %v5451
    %v6173 = vpack.c.b16 %v5459, %v5452
    %v6174 = vpack.c.b16 %v5460, %v5453
    %v6175 = vpack.c.b16 %v5461, %v5454
    %v6176 = vpack.c.b16 %v5469, %v5462
    %v6177 = vpack.c.b16 %v5470, %v5463
    %v6178 = vpack.c.b16 %v5471, %v5464
    %v6179 = vpack.c.b16 %v5472, %v5465
    %v6180 = vpack.c.b16 %v5473, %v5466
    %v6181 = vpack.c.b16 %v5474, %v5467
    %v6182 = vpack.c.b16 %v5475, %v5468
    %v6183 = vpack.c.b16 %v5483, %v5476
    %v6184 = vpack.c.b16 %v5484, %v5477
    %v6185 = vpack.c.b16 %v5485, %v5478
    %v6186 = vpack.c.b16 %v5486, %v5479
    %v6187 = vpack.c.b16 %v5487, %v5480
    %v6188 = vpack.c.b16 %v5488, %v5481
    %v6189 = vpack.c.b16 %v5489, %v5482
    %v6190 = vpack.c.b16 %v5497, %v5490
    %v6191 = vpack.c.b16 %v5498, %v5491
    %v6192 = vpack.c.b16 %v5499, %v5492
    %v6193 = vpack.c.b16 %v5500, %v5493
    %v6194 = vpack.c.b16 %v5501, %v5494
    %v6195 = vpack.c.b16 %v5502, %v5495
    %v6196 = vpack.c.b16 %v5503, %v5496
    %v6197 = vpack.c.b16 %v5511, %v5504
    %v6198 = vpack.c.b16 %v5512, %v5505
    %v6199 = vpack.c.b16 %v5513, %v5506
    %v6200 = vpack.c.b16 %v5514, %v5507
    %v6201 = vpack.c.b16 %v5515, %v5508
    %v6202 = vpack.c.b16 %v5516, %v5509
    %v6203 = vpack.c.b16 %v5517, %v5510
    %v6204 = vpack.c.b16 %v5525, %v5518
    %v6205 = vpack.c.b16 %v5526, %v5519
    %v6206 = vpack.c.b16 %v5527, %v5520
    %v6207 = vpack.c.b16 %v5528, %v5521
    %v6208 = vpack.c.b16 %v5529, %v5522
    %v6209 = vpack.c.b16 %v5530, %v5523
    %v6210 = vpack.c.b16 %v5531, %v5524
    %v6211 = vpack.c.b16 %v5539, %v5532
    %v6212 = vpack.c.b16 %v5540, %v5533
    %v6213 = vpack.c.b16 %v5541, %v5534
    %v6214 = vpack.c.b16 %v5542, %v5535
    %v6215 = vpack.c.b16 %v5543, %v5536
    %v6216 = vpack.c.b16 %v5544, %v5537
    %v6217 = vpack.c.b16 %v5545, %v5538
    %v6218 = vpack.c.b16 %v5553, %v5546
    %v6219 = vpack.c.b16 %v5554, %v5547
    %v6220 = vpack.c.b16 %v5555, %v5548
    %v6221 = vpack.c.b16 %v5556, %v5549
    %v6222 = vpack.c.b16 %v5557, %v5550
    %v6223 = vpack.c.b16 %v5558, %v5551
    %v6224 = vpack.c.b16 %v5559, %v5552
    %v6225 = vpack.c.b16 %v5567, %v5560
    %v6226 = vpack.c.b16 %v5568, %v5561
    %v6227 = vpack.c.b16 %v5569, %v5562
    %v6228 = vpack.c.b16 %v5570, %v5563
    %v6229 = vpack.c.b16 %v5571, %v5564
    %v6230 = vpack.c.b16 %v5572, %v5565
    %v6231 = vpack.c.b16 %v5573, %v5566
    %v6232 = vpack.c.b16 %v5581, %v5574
    %v6233 = vpack.c.b16 %v5582, %v5575
    %v6234 = vpack.c.b16 %v5583, %v5576
    %v6235 = vpack.c.b16 %v5584, %v5577
    %v6236 = vpack.c.b16 %v5585, %v5578
    %v6237 = vpack.c.b16 %v5586, %v5579
    %v6238 = vpack.c.b16 %v5587, %v5580
    %v6239 = vpack.c.b16 %v5595, %v5588
    %v6240 = vpack.c.b16 %v5596, %v5589
    %v6241 = vpack.c.b16 %v5597, %v5590
    %v6242 = vpack.c.b16 %v5598, %v5591
    %v6243 = vpack.c.b16 %v5599, %v5592
    %v6244 = vpack.c.b16 %v5600, %v5593
    %v6245 = vpack.c.b16 %v5601, %v5594
    %v6246 = vpack.c.b16 %v5609, %v5602
    %v6247 = vpack.c.b16 %v5610, %v5603
    %v6248 = vpack.c.b16 %v5611, %v5604
    %v6249 = vpack.c.b16 %v5612, %v5605
    %v6250 = vpack.c.b16 %v5613, %v5606
    %v6251 = vpack.c.b16 %v5614, %v5607
    %v6252 = vpack.c.b16 %v5615, %v5608
    %v6253 = vpack.c.b16 %v5623, %v5616
    %v6254 = vpack.c.b16 %v5624, %v5617
    %v6255 = vpack.c.b16 %v5625, %v5618
    %v6256 = vpack.c.b16 %v5626, %v5619
    %v6257 = vpack.c.b16 %v5627, %v5620
    %v6258 = vpack.c.b16 %v5628, %v5621
    %v6259 = vpack.c.b16 %v5629, %v5622
    %v6260 = vpack.c.b16 %v5637, %v5630
    %v6261 = vpack.c.b16 %v5638, %v5631
    %v6262 = vpack.c.b16 %v5639, %v5632
    %v6263 = vpack.c.b16 %v5640, %v5633
    %v6264 = vpack.c.b16 %v5641, %v5634
    %v6265 = vpack.c.b16 %v5642, %v5635
    %v6266 = vpack.c.b16 %v5643, %v5636
    %v6267 = vpack.c.b16 %v5651, %v5644
    %v6268 = vpack.c.b16 %v5652, %v5645
    %v6269 = vpack.c.b16 %v5653, %v5646
    %v6270 = vpack.c.b16 %v5654, %v5647
    %v6271 = vpack.c.b16 %v5655, %v5648
    %v6272 = vpack.c.b16 %v5656, %v5649
    %v6273 = vpack.c.b16 %v5657, %v5650
    %v6274 = vpack.c.b16 %v5665, %v5658
    %v6275 = vpack.c.b16 %v5666, %v5659
    %v6276 = vpack.c.b16 %v5667, %v5660
    %v6277 = vpack.c.b16 %v5668, %v5661
    %v6278 = vpack.c.b16 %v5669, %v5662
    %v6279 = vpack.c.b16 %v5670, %v5663
    %v6280 = vpack.c.b16 %v5671, %v5664
    %v6281 = vpack.c.b16 %v5679, %v5672
    %v6282 = vpack.c.b16 %v5680, %v5673
    %v6283 = vpack.c.b16 %v5681, %v5674
    %v6284 = vpack.c.b16 %v5682, %v5675
    %v6285 = vpack.c.b16 %v5683, %v5676
    %v6286 = vpack.c.b16 %v5684, %v5677
    %v6287 = vpack.c.b16 %v5685, %v5678
    %v6288 = vpack.c.b16 %v5693, %v5686
    %v6289 = vpack.c.b16 %v5694, %v5687
    %v6290 = vpack.c.b16 %v5695, %v5688
    %v6291 = vpack.c.b16 %v5696, %v5689
    %v6292 = vpack.c.b16 %v5697, %v5690
    %v6293 = vpack.c.b16 %v5698, %v5691
    %v6294 = vpack.c.b16 %v5699, %v5692
    %v6295 = vpack.c.b16 %v5707, %v5700
    %v6296 = vpack.c.b16 %v5708, %v5701
    %v6297 = vpack.c.b16 %v5709, %v5702
    %v6298 = vpack.c.b16 %v5710, %v5703
    %v6299 = vpack.c.b16 %v5711, %v5704
    %v6300 = vpack.c.b16 %v5712, %v5705
    %v6301 = vpack.c.b16 %v5713, %v5706
    %v6302 = vpack.c.b16 %v5721, %v5714
    %v6303 = vpack.c.b16 %v5722, %v5715
    %v6304 = vpack.c.b16 %v5723, %v5716
    %v6305 = vpack.c.b16 %v5724, %v5717
    %v6306 = vpack.c.b16 %v5725, %v5718
    %v6307 = vpack.c.b16 %v5726, %v5719
    %v6308 = vpack.c.b16 %v5727, %v5720
    %v6309 = vpack.c.b16 %v5735, %v5728
    %v6310 = vpack.c.b16 %v5736, %v5729
    %v6311 = vpack.c.b16 %v5737, %v5730
    %v6312 = vpack.c.b16 %v5738, %v5731
    %v6313 = vpack.c.b16 %v5739, %v5732
    %v6314 = vpack.c.b16 %v5740, %v5733
    %v6315 = vpack.c.b16 %v5741, %v5734
    %v6316 = vpack.c.b16 %v5749, %v5742
    %v6317 = vpack.c.b16 %v5750, %v5743
    %v6318 = vpack.c.b16 %v5751, %v5744
    %v6319 = vpack.c.b16 %v5752, %v5745
    %v6320 = vpack.c.b16 %v5753, %v5746
    %v6321 = vpack.c.b16 %v5754, %v5747
    %v6322 = vpack.c.b16 %v5755, %v5748
    %v6323 = vpack.c.b16 %v5763, %v5756
    %v6324 = vpack.c.b16 %v5764, %v5757
    %v6325 = vpack.c.b16 %v5765, %v5758
    %v6326 = vpack.c.b16 %v5766, %v5759
    %v6327 = vpack.c.b16 %v5767, %v5760
    %v6328 = vpack.c.b16 %v5768, %v5761
    %v6329 = vpack.c.b16 %v5769, %v5762
    %v6330 = vpack.c.b16 %v5777, %v5770
    %v6331 = vpack.c.b16 %v5778, %v5771
    %v6332 = vpack.c.b16 %v5779, %v5772
    %v6333 = vpack.c.b16 %v5780, %v5773
    %v6334 = vpack.c.b16 %v5781, %v5774
    %v6335 = vpack.c.b16 %v5782, %v5775
    %v6336 = vpack.c.b16 %v5783, %v5776
    %v6337 = vpack.c.b16 %v5791, %v5784
    %v6338 = vpack.c.b16 %v5792, %v5785
    %v6339 = vpack.c.b16 %v5793, %v5786
    %v6340 = vpack.c.b16 %v5794, %v5787
    %v6341 = vpack.c.b16 %v5795, %v5788
    %v6342 = vpack.c.b16 %v5796, %v5789
    %v6343 = vpack.c.b16 %v5797, %v5790
    %v6344 = vpack.c.b16 %v5805, %v5798
    %v6345 = vpack.c.b16 %v5806, %v5799
    %v6346 = vpack.c.b16 %v5807, %v5800
    %v6347 = vpack.c.b16 %v5808, %v5801
    %v6348 = vpack.c.b16 %v5809, %v5802
    %v6349 = vpack.c.b16 %v5810, %v5803
    %v6350 = vpack.c.b16 %v5811, %v5804
    %v6351 = vpack.c.b16 %v5819, %v5812
    %v6352 = vpack.c.b16 %v5820, %v5813
    %v6353 = vpack.c.b16 %v5821, %v5814
    %v6354 = vpack.c.b16 %v5822, %v5815
    %v6355 = vpack.c.b16 %v5823, %v5816
    %v6356 = vpack.c.b16 %v5824, %v5817
    %v6357 = vpack.c.b16 %v5825, %v5818
    %v6358 = vpack.c.b16 %v5833, %v5826
    %v6359 = vpack.c.b16 %v5834, %v5827
    %v6360 = vpack.c.b16 %v5835, %v5828
    %v6361 = vpack.c.b16 %v5836, %v5829
    %v6362 = vpack.c.b16 %v5837, %v5830
    %v6363 = vpack.c.b16 %v5838, %v5831
    %v6364 = vpack.c.b16 %v5839, %v5832
    %v6365 = vpack.c.b16 %v5847, %v5840
    %v6366 = vpack.c.b16 %v5848, %v5841
    %v6367 = vpack.c.b16 %v5849, %v5842
    %v6368 = vpack.c.b16 %v5850, %v5843
    %v6369 = vpack.c.b16 %v5851, %v5844
    %v6370 = vpack.c.b16 %v5852, %v5845
    %v6371 = vpack.c.b16 %v5853, %v5846
    %v6372 = vpack.c.b16 %v5861, %v5854
    %v6373 = vpack.c.b16 %v5862, %v5855
    %v6374 = vpack.c.b16 %v5863, %v5856
    %v6375 = vpack.c.b16 %v5864, %v5857
    %v6376 = vpack.c.b16 %v5865, %v5858
    %v6377 = vpack.c.b16 %v5866, %v5859
    %v6378 = vpack.c.b16 %v5867, %v5860
    %v6379 = vpack.c.b16 %v5875, %v5868
    %v6380 = vpack.c.b16 %v5876, %v5869
    %v6381 = vpack.c.b16 %v5877, %v5870
    %v6382 = vpack.c.b16 %v5878, %v5871
    %v6383 = vpack.c.b16 %v5879, %v5872
    %v6384 = vpack.c.b16 %v5880, %v5873
    %v6385 = vpack.c.b16 %v5881, %v5874
    %v6386 = vpack.c.b16 %v5889, %v5882
    %v6387 = vpack.c.b16 %v5890, %v5883
    %v6388 = vpack.c.b16 %v5891, %v5884
    %v6389 = vpack.c.b16 %v5892, %v5885
    %v6390 = vpack.c.b16 %v5893, %v5886
    %v6391 = vpack.c.b16 %v5894, %v5887
    %v6392 = vpack.c.b16 %v5895, %v5888
    %v6393 = vpack.c.b16 %v5903, %v5896
    %v6394 = vpack.c.b16 %v5904, %v5897
    %v6395 = vpack.c.b16 %v5905, %v5898
    %v6396 = vpack.c.b16 %v5906, %v5899
    %v6397 = vpack.c.b16 %v5907, %v5900
    %v6398 = vpack.c.b16 %v5908, %v5901
    %v6399 = vpack.c.b16 %v5909, %v5902
    %v6400 = vpack.c.b16 %v5917, %v5910
    %v6401 = vpack.c.b16 %v5918, %v5911
    %v6402 = vpack.c.b16 %v5919, %v5912
    %v6403 = vpack.c.b16 %v5920, %v5913
    %v6404 = vpack.c.b16 %v5921, %v5914
    %v6405 = vpack.c.b16 %v5922, %v5915
    %v6406 = vpack.c.b16 %v5923, %v5916
    %v6407 = vpack.c.b16 %v5931, %v5924
    %v6408 = vpack.c.b16 %v5932, %v5925
    %v6409 = vpack.c.b16 %v5933, %v5926
    %v6410 = vpack.c.b16 %v5934, %v5927
    %v6411 = vpack.c.b16 %v5935, %v5928
    %v6412 = vpack.c.b16 %v5936, %v5929
    %v6413 = vpack.c.b16 %v5937, %v5930
    %v6414 = vpack.c.b16 %v5945, %v5938
    %v6415 = vpack.c.b16 %v5946, %v5939
    %v6416 = vpack.c.b16 %v5947, %v5940
    %v6417 = vpack.c.b16 %v5948, %v5941
    %v6418 = vpack.c.b16 %v5949, %v5942
    %v6419 = vpack.c.b16 %v5950, %v5943
    %v6420 = vpack.c.b16 %v5951, %v5944
    %v6421 = vpack.c.b16 %v5959, %v5952
    %v6422 = vpack.c.b16 %v5960, %v5953
    %v6423 = vpack.c.b16 %v5961, %v5954
    %v6424 = vpack.c.b16 %v5962, %v5955
    %v6425 = vpack.c.b16 %v5963, %v5956
    %v6426 = vpack.c.b16 %v5964, %v5957
    %v6427 = vpack.c.b16 %v5965, %v5958
    %v6428 = vpack.c.b16 %v5973, %v5966
    %v6429 = vpack.c.b16 %v5974, %v5967
    %v6430 = vpack.c.b16 %v5975, %v5968
    %v6431 = vpack.c.b16 %v5976, %v5969
    %v6432 = vpack.c.b16 %v5977, %v5970
    %v6433 = vpack.c.b16 %v5978, %v5971
    %v6434 = vpack.c.b16 %v5979, %v5972
    %v6435 = vpack.c.b16 %v5987, %v5980
    %v6436 = vpack.c.b16 %v5988, %v5981
    %v6437 = vpack.c.b16 %v5989, %v5982
    %v6438 = vpack.c.b16 %v5990, %v5983
    %v6439 = vpack.c.b16 %v5991, %v5984
    %v6440 = vpack.c.b16 %v5992, %v5985
    %v6441 = vpack.c.b16 %v5993, %v5986
    %v6442 = vpack.c.b16 %v6001, %v5994
    %v6443 = vpack.c.b16 %v6002, %v5995
    %v6444 = vpack.c.b16 %v6003, %v5996
    %v6445 = vpack.c.b16 %v6004, %v5997
    %v6446 = vpack.c.b16 %v6005, %v5998
    %v6447 = vpack.c.b16 %v6006, %v5999
    %v6448 = vpack.c.b16 %v6007, %v6000
    %v6449 = vpack.c.b16 %v6008, %v6008
    %v6450 = vpack.c.b16 %v6009, %v6009
    %v6451 = vpack.c.b16 %v6010, %v6010
    %v6452 = vpack.c.b16 %v6011, %v6011
    %v6453 = vpack.c.b16 %v6012, %v6012
    %v6454 = vpack.c.b16 %v6013, %v6013
    %v6455 = vpack.c.b16 %v6014, %v6014
    %v6891 = vsel %vm3255, %v4123, 0
    %v6894 = vsel %vm3259, %v6449, 0
    %v6897 = vsel %vm3259, %v6450, 0
    %v6900 = vsel %vm3259, %v6451, 0
    %v6903 = vsel %vm3259, %v6452, 0
    %v6906 = vsel %vm3259, %v6453, 0
    %v6909 = vsel %vm3259, %v6454, 0
    %v6912 = vsel %vm3259, %v6455, 0
    %6914 = vmatpush.bf16.msra.mxu0 %v6064
    %6915 = vmatpush.bf16.msra.mxu0 %v6057
    %6916 = vmatpush.bf16.msra.mxu0 %v6050
    %6917 = vmatpush.bf16.msra.mxu0 %v6043
    %6918 = vmatpush.bf16.msra.mxu0 %v6036
    %6919 = vmatpush.bf16.msra.mxu0 %v6029
    %6920 = vmatpush.bf16.msra.mxu0 %v6022
    %6921 = vmatpush.bf16.msra.mxu0 %v6015
    %6922 = vmatmul.bf16.gmra.mxu0 %v4116
    %v6923 = vpop.f32.mrf.mxu0
    %v6924 = vadd.f32 %v4626, %v6923
    %v6925 = vpop.f32.mrf.mxu0
    %6926 = vdwg.mxu0
    %6927 = vmatpush.bf16.msra.mxu0 %v6120
    %6928 = vmatpush.bf16.msra.mxu0 %v6113
    %6929 = vmatpush.bf16.msra.mxu0 %v6106
    %6930 = vmatpush.bf16.msra.mxu0 %v6099
    %6931 = vmatpush.bf16.msra.mxu0 %v6092
    %6932 = vmatpush.bf16.msra.mxu0 %v6085
    %6933 = vmatpush.bf16.msra.mxu0 %v6078
    %6934 = vmatpush.bf16.msra.mxu0 %v6071
    %6935 = vmatmul.bf16.gmra.mxu0 %v4117
    %v6936 = vpop.f32.mrf.mxu0
    %v6937 = vadd.f32 %v6924, %v6936
    %v6938 = vpop.f32.mrf.mxu0
    %6939 = vdwg.mxu0
    %6940 = vmatpush.bf16.msra.mxu0 %v6176
    %6941 = vmatpush.bf16.msra.mxu0 %v6169
    %6942 = vmatpush.bf16.msra.mxu0 %v6162
    %6943 = vmatpush.bf16.msra.mxu0 %v6155
    %6944 = vmatpush.bf16.msra.mxu0 %v6148
    %6945 = vmatpush.bf16.msra.mxu0 %v6141
    %6946 = vmatpush.bf16.msra.mxu0 %v6134
    %6947 = vmatpush.bf16.msra.mxu0 %v6127
    %6948 = vmatmul.bf16.gmra.mxu0 %v4118
    %v6949 = vpop.f32.mrf.mxu0
    %v6950 = vadd.f32 %v6937, %v6949
    %v6951 = vpop.f32.mrf.mxu0
    %6952 = vdwg.mxu0
    %6953 = vmatpush.bf16.msra.mxu0 %v6232
    %6954 = vmatpush.bf16.msra.mxu0 %v6225
    %6955 = vmatpush.bf16.msra.mxu0 %v6218
    %6956 = vmatpush.bf16.msra.mxu0 %v6211
    %6957 = vmatpush.bf16.msra.mxu0 %v6204
    %6958 = vmatpush.bf16.msra.mxu0 %v6197
    %6959 = vmatpush.bf16.msra.mxu0 %v6190
    %6960 = vmatpush.bf16.msra.mxu0 %v6183
    %6961 = vmatmul.bf16.gmra.mxu0 %v4119
    %v6962 = vpop.f32.mrf.mxu0
    %v6963 = vadd.f32 %v6950, %v6962
    %v6964 = vpop.f32.mrf.mxu0
    %6965 = vdwg.mxu0
    %6966 = vmatpush.bf16.msra.mxu0 %v6288
    %6967 = vmatpush.bf16.msra.mxu0 %v6281
    %6968 = vmatpush.bf16.msra.mxu0 %v6274
    %6969 = vmatpush.bf16.msra.mxu0 %v6267
    %6970 = vmatpush.bf16.msra.mxu0 %v6260
    %6971 = vmatpush.bf16.msra.mxu0 %v6253
    %6972 = vmatpush.bf16.msra.mxu0 %v6246
    %6973 = vmatpush.bf16.msra.mxu0 %v6239
    %6974 = vmatmul.bf16.gmra.mxu0 %v4120
    %v6975 = vpop.f32.mrf.mxu0
    %v6976 = vadd.f32 %v6963, %v6975
    %v6977 = vpop.f32.mrf.mxu0
    %6978 = vdwg.mxu0
    %6979 = vmatpush.bf16.msra.mxu0 %v6344
    %6980 = vmatpush.bf16.msra.mxu0 %v6337
    %6981 = vmatpush.bf16.msra.mxu0 %v6330
    %6982 = vmatpush.bf16.msra.mxu0 %v6323
    %6983 = vmatpush.bf16.msra.mxu0 %v6316
    %6984 = vmatpush.bf16.msra.mxu0 %v6309
    %6985 = vmatpush.bf16.msra.mxu0 %v6302
    %6986 = vmatpush.bf16.msra.mxu0 %v6295
    %6987 = vmatmul.bf16.gmra.mxu0 %v4121
    %v6988 = vpop.f32.mrf.mxu0
    %v6989 = vadd.f32 %v6976, %v6988
    %v6990 = vpop.f32.mrf.mxu0
    %6991 = vdwg.mxu0
    %6992 = vmatpush.bf16.msra.mxu0 %v6400
    %6993 = vmatpush.bf16.msra.mxu0 %v6393
    %6994 = vmatpush.bf16.msra.mxu0 %v6386
    %6995 = vmatpush.bf16.msra.mxu0 %v6379
    %6996 = vmatpush.bf16.msra.mxu0 %v6372
    %6997 = vmatpush.bf16.msra.mxu0 %v6365
    %6998 = vmatpush.bf16.msra.mxu0 %v6358
    %6999 = vmatpush.bf16.msra.mxu0 %v6351
    %7000 = vmatmul.bf16.gmra.mxu0 %v4122
    %v7001 = vpop.f32.mrf.mxu0
    %v7002 = vadd.f32 %v6989, %v7001
    %v7003 = vpop.f32.mrf.mxu0
    %7004 = vdwg.mxu0
    %7005 = vmatpush.bf16.msra.mxu0 0
    %7006 = vmatpush.bf16.msra.mxu0 %v6894
    %7007 = vmatpush.bf16.msra.mxu0 %v6442
    %7008 = vmatpush.bf16.msra.mxu0 %v6435
    %7009 = vmatpush.bf16.msra.mxu0 %v6428
    %7010 = vmatpush.bf16.msra.mxu0 %v6421
    %7011 = vmatpush.bf16.msra.mxu0 %v6414
    %7012 = vmatpush.bf16.msra.mxu0 %v6407
    %7013 = vmatmul.bf16.gmra.mxu0 %v6891
    %v7014 = vpop.f32.mrf.mxu0
    %v7015 = vadd.f32 %v7002, %v7014
    %v7016 = vpop.f32.mrf.mxu0
    %7017 = vdwg.mxu0
    %7018 = vmatpush.bf16.msra.mxu0 %v6065
    %7019 = vmatpush.bf16.msra.mxu0 %v6058
    %7020 = vmatpush.bf16.msra.mxu0 %v6051
    %7021 = vmatpush.bf16.msra.mxu0 %v6044
    %7022 = vmatpush.bf16.msra.mxu0 %v6037
    %7023 = vmatpush.bf16.msra.mxu0 %v6030
    %7024 = vmatpush.bf16.msra.mxu0 %v6023
    %7025 = vmatpush.bf16.msra.mxu0 %v6016
    %7026 = vmatmul.bf16.gmra.mxu0 %v4116
    %v7027 = vpop.f32.mrf.mxu0
    %v7028 = vadd.f32 %v4627, %v7027
    %v7029 = vpop.f32.mrf.mxu0
    %7030 = vdwg.mxu0
    %7031 = vmatpush.bf16.msra.mxu0 %v6121
    %7032 = vmatpush.bf16.msra.mxu0 %v6114
    %7033 = vmatpush.bf16.msra.mxu0 %v6107
    %7034 = vmatpush.bf16.msra.mxu0 %v6100
    %7035 = vmatpush.bf16.msra.mxu0 %v6093
    %7036 = vmatpush.bf16.msra.mxu0 %v6086
    %7037 = vmatpush.bf16.msra.mxu0 %v6079
    %7038 = vmatpush.bf16.msra.mxu0 %v6072
    %7039 = vmatmul.bf16.gmra.mxu0 %v4117
    %v7040 = vpop.f32.mrf.mxu0
    %v7041 = vadd.f32 %v7028, %v7040
    %v7042 = vpop.f32.mrf.mxu0
    %7043 = vdwg.mxu0
    %7044 = vmatpush.bf16.msra.mxu0 %v6177
    %7045 = vmatpush.bf16.msra.mxu0 %v6170
    %7046 = vmatpush.bf16.msra.mxu0 %v6163
    %7047 = vmatpush.bf16.msra.mxu0 %v6156
    %7048 = vmatpush.bf16.msra.mxu0 %v6149
    %7049 = vmatpush.bf16.msra.mxu0 %v6142
    %7050 = vmatpush.bf16.msra.mxu0 %v6135
    %7051 = vmatpush.bf16.msra.mxu0 %v6128
    %7052 = vmatmul.bf16.gmra.mxu0 %v4118
    %v7053 = vpop.f32.mrf.mxu0
    %v7054 = vadd.f32 %v7041, %v7053
    %v7055 = vpop.f32.mrf.mxu0
    %7056 = vdwg.mxu0
    %7057 = vmatpush.bf16.msra.mxu0 %v6233
    %7058 = vmatpush.bf16.msra.mxu0 %v6226
    %7059 = vmatpush.bf16.msra.mxu0 %v6219
    %7060 = vmatpush.bf16.msra.mxu0 %v6212
    %7061 = vmatpush.bf16.msra.mxu0 %v6205
    %7062 = vmatpush.bf16.msra.mxu0 %v6198
    %7063 = vmatpush.bf16.msra.mxu0 %v6191
    %7064 = vmatpush.bf16.msra.mxu0 %v6184
    %7065 = vmatmul.bf16.gmra.mxu0 %v4119
    %v7066 = vpop.f32.mrf.mxu0
    %v7067 = vadd.f32 %v7054, %v7066
    %v7068 = vpop.f32.mrf.mxu0
    %7069 = vdwg.mxu0
    %7070 = vmatpush.bf16.msra.mxu0 %v6289
    %7071 = vmatpush.bf16.msra.mxu0 %v6282
    %7072 = vmatpush.bf16.msra.mxu0 %v6275
    %7073 = vmatpush.bf16.msra.mxu0 %v6268
    %7074 = vmatpush.bf16.msra.mxu0 %v6261
    %7075 = vmatpush.bf16.msra.mxu0 %v6254
    %7076 = vmatpush.bf16.msra.mxu0 %v6247
    %7077 = vmatpush.bf16.msra.mxu0 %v6240
    %7078 = vmatmul.bf16.gmra.mxu0 %v4120
    %v7079 = vpop.f32.mrf.mxu0
    %v7080 = vadd.f32 %v7067, %v7079
    %v7081 = vpop.f32.mrf.mxu0
    %7082 = vdwg.mxu0
    %7083 = vmatpush.bf16.msra.mxu0 %v6345
    %7084 = vmatpush.bf16.msra.mxu0 %v6338
    %7085 = vmatpush.bf16.msra.mxu0 %v6331
    %7086 = vmatpush.bf16.msra.mxu0 %v6324
    %7087 = vmatpush.bf16.msra.mxu0 %v6317
    %7088 = vmatpush.bf16.msra.mxu0 %v6310
    %7089 = vmatpush.bf16.msra.mxu0 %v6303
    %7090 = vmatpush.bf16.msra.mxu0 %v6296
    %7091 = vmatmul.bf16.gmra.mxu0 %v4121
    %v7092 = vpop.f32.mrf.mxu0
    %v7093 = vadd.f32 %v7080, %v7092
    %v7094 = vpop.f32.mrf.mxu0
    %7095 = vdwg.mxu0
    %7096 = vmatpush.bf16.msra.mxu0 %v6401
    %7097 = vmatpush.bf16.msra.mxu0 %v6394
    %7098 = vmatpush.bf16.msra.mxu0 %v6387
    %7099 = vmatpush.bf16.msra.mxu0 %v6380
    %7100 = vmatpush.bf16.msra.mxu0 %v6373
    %7101 = vmatpush.bf16.msra.mxu0 %v6366
    %7102 = vmatpush.bf16.msra.mxu0 %v6359
    %7103 = vmatpush.bf16.msra.mxu0 %v6352
    %7104 = vmatmul.bf16.gmra.mxu0 %v4122
    %v7105 = vpop.f32.mrf.mxu0
    %v7106 = vadd.f32 %v7093, %v7105
    %v7107 = vpop.f32.mrf.mxu0
    %7108 = vdwg.mxu0
    %7109 = vmatpush.bf16.msra.mxu0 0
    %7110 = vmatpush.bf16.msra.mxu0 %v6897
    %7111 = vmatpush.bf16.msra.mxu0 %v6443
    %7112 = vmatpush.bf16.msra.mxu0 %v6436
    %7113 = vmatpush.bf16.msra.mxu0 %v6429
    %7114 = vmatpush.bf16.msra.mxu0 %v6422
    %7115 = vmatpush.bf16.msra.mxu0 %v6415
    %7116 = vmatpush.bf16.msra.mxu0 %v6408
    %7117 = vmatmul.bf16.gmra.mxu0 %v6891
    %v7118 = vpop.f32.mrf.mxu0
    %v7119 = vadd.f32 %v7106, %v7118
    %v7120 = vpop.f32.mrf.mxu0
    %7121 = vdwg.mxu0
    %7122 = vmatpush.bf16.msra.mxu0 %v6066
    %7123 = vmatpush.bf16.msra.mxu0 %v6059
    %7124 = vmatpush.bf16.msra.mxu0 %v6052
    %7125 = vmatpush.bf16.msra.mxu0 %v6045
    %7126 = vmatpush.bf16.msra.mxu0 %v6038
    %7127 = vmatpush.bf16.msra.mxu0 %v6031
    %7128 = vmatpush.bf16.msra.mxu0 %v6024
    %7129 = vmatpush.bf16.msra.mxu0 %v6017
    %7130 = vmatmul.bf16.gmra.mxu0 %v4116
    %v7131 = vpop.f32.mrf.mxu0
    %v7132 = vadd.f32 %v4628, %v7131
    %v7133 = vpop.f32.mrf.mxu0
    %7134 = vdwg.mxu0
    %7135 = vmatpush.bf16.msra.mxu0 %v6122
    %7136 = vmatpush.bf16.msra.mxu0 %v6115
    %7137 = vmatpush.bf16.msra.mxu0 %v6108
    %7138 = vmatpush.bf16.msra.mxu0 %v6101
    %7139 = vmatpush.bf16.msra.mxu0 %v6094
    %7140 = vmatpush.bf16.msra.mxu0 %v6087
    %7141 = vmatpush.bf16.msra.mxu0 %v6080
    %7142 = vmatpush.bf16.msra.mxu0 %v6073
    %7143 = vmatmul.bf16.gmra.mxu0 %v4117
    %v7144 = vpop.f32.mrf.mxu0
    %v7145 = vadd.f32 %v7132, %v7144
    %v7146 = vpop.f32.mrf.mxu0
    %7147 = vdwg.mxu0
    %7148 = vmatpush.bf16.msra.mxu0 %v6178
    %7149 = vmatpush.bf16.msra.mxu0 %v6171
    %7150 = vmatpush.bf16.msra.mxu0 %v6164
    %7151 = vmatpush.bf16.msra.mxu0 %v6157
    %7152 = vmatpush.bf16.msra.mxu0 %v6150
    %7153 = vmatpush.bf16.msra.mxu0 %v6143
    %7154 = vmatpush.bf16.msra.mxu0 %v6136
    %7155 = vmatpush.bf16.msra.mxu0 %v6129
    %7156 = vmatmul.bf16.gmra.mxu0 %v4118
    %v7157 = vpop.f32.mrf.mxu0
    %v7158 = vadd.f32 %v7145, %v7157
    %v7159 = vpop.f32.mrf.mxu0
    %7160 = vdwg.mxu0
    %7161 = vmatpush.bf16.msra.mxu0 %v6234
    %7162 = vmatpush.bf16.msra.mxu0 %v6227
    %7163 = vmatpush.bf16.msra.mxu0 %v6220
    %7164 = vmatpush.bf16.msra.mxu0 %v6213
    %7165 = vmatpush.bf16.msra.mxu0 %v6206
    %7166 = vmatpush.bf16.msra.mxu0 %v6199
    %7167 = vmatpush.bf16.msra.mxu0 %v6192
    %7168 = vmatpush.bf16.msra.mxu0 %v6185
    %7169 = vmatmul.bf16.gmra.mxu0 %v4119
    %v7170 = vpop.f32.mrf.mxu0
    %v7171 = vadd.f32 %v7158, %v7170
    %v7172 = vpop.f32.mrf.mxu0
    %7173 = vdwg.mxu0
    %7174 = vmatpush.bf16.msra.mxu0 %v6290
    %7175 = vmatpush.bf16.msra.mxu0 %v6283
    %7176 = vmatpush.bf16.msra.mxu0 %v6276
    %7177 = vmatpush.bf16.msra.mxu0 %v6269
    %7178 = vmatpush.bf16.msra.mxu0 %v6262
    %7179 = vmatpush.bf16.msra.mxu0 %v6255
    %7180 = vmatpush.bf16.msra.mxu0 %v6248
    %7181 = vmatpush.bf16.msra.mxu0 %v6241
    %7182 = vmatmul.bf16.gmra.mxu0 %v4120
    %v7183 = vpop.f32.mrf.mxu0
    %v7184 = vadd.f32 %v7171, %v7183
    %v7185 = vpop.f32.mrf.mxu0
    %7186 = vdwg.mxu0
    %7187 = vmatpush.bf16.msra.mxu0 %v6346
    %7188 = vmatpush.bf16.msra.mxu0 %v6339
    %7189 = vmatpush.bf16.msra.mxu0 %v6332
    %7190 = vmatpush.bf16.msra.mxu0 %v6325
    %7191 = vmatpush.bf16.msra.mxu0 %v6318
    %7192 = vmatpush.bf16.msra.mxu0 %v6311
    %7193 = vmatpush.bf16.msra.mxu0 %v6304
    %7194 = vmatpush.bf16.msra.mxu0 %v6297
    %7195 = vmatmul.bf16.gmra.mxu0 %v4121
    %v7196 = vpop.f32.mrf.mxu0
    %v7197 = vadd.f32 %v7184, %v7196
    %v7198 = vpop.f32.mrf.mxu0
    %7199 = vdwg.mxu0
    %7200 = vmatpush.bf16.msra.mxu0 %v6402
    %7201 = vmatpush.bf16.msra.mxu0 %v6395
    %7202 = vmatpush.bf16.msra.mxu0 %v6388
    %7203 = vmatpush.bf16.msra.mxu0 %v6381
    %7204 = vmatpush.bf16.msra.mxu0 %v6374
    %7205 = vmatpush.bf16.msra.mxu0 %v6367
    %7206 = vmatpush.bf16.msra.mxu0 %v6360
    %7207 = vmatpush.bf16.msra.mxu0 %v6353
    %7208 = vmatmul.bf16.gmra.mxu0 %v4122
    %v7209 = vpop.f32.mrf.mxu0
    %v7210 = vadd.f32 %v7197, %v7209
    %v7211 = vpop.f32.mrf.mxu0
    %7212 = vdwg.mxu0
    %7213 = vmatpush.bf16.msra.mxu0 0
    %7214 = vmatpush.bf16.msra.mxu0 %v6900
    %7215 = vmatpush.bf16.msra.mxu0 %v6444
    %7216 = vmatpush.bf16.msra.mxu0 %v6437
    %7217 = vmatpush.bf16.msra.mxu0 %v6430
    %7218 = vmatpush.bf16.msra.mxu0 %v6423
    %7219 = vmatpush.bf16.msra.mxu0 %v6416
    %7220 = vmatpush.bf16.msra.mxu0 %v6409
    %7221 = vmatmul.bf16.gmra.mxu0 %v6891
    %v7222 = vpop.f32.mrf.mxu0
    %v7223 = vadd.f32 %v7210, %v7222
    %v7224 = vpop.f32.mrf.mxu0
    %7225 = vdwg.mxu0
    %7226 = vmatpush.bf16.msra.mxu0 %v6067
    %7227 = vmatpush.bf16.msra.mxu0 %v6060
    %7228 = vmatpush.bf16.msra.mxu0 %v6053
    %7229 = vmatpush.bf16.msra.mxu0 %v6046
    %7230 = vmatpush.bf16.msra.mxu0 %v6039
    %7231 = vmatpush.bf16.msra.mxu0 %v6032
    %7232 = vmatpush.bf16.msra.mxu0 %v6025
    %7233 = vmatpush.bf16.msra.mxu0 %v6018
    %7234 = vmatmul.bf16.gmra.mxu0 %v4116
    %v7235 = vpop.f32.mrf.mxu0
    %v7236 = vadd.f32 %v4629, %v7235
    %v7237 = vpop.f32.mrf.mxu0
    %7238 = vdwg.mxu0
    %7239 = vmatpush.bf16.msra.mxu0 %v6123
    %7240 = vmatpush.bf16.msra.mxu0 %v6116
    %7241 = vmatpush.bf16.msra.mxu0 %v6109
    %7242 = vmatpush.bf16.msra.mxu0 %v6102
    %7243 = vmatpush.bf16.msra.mxu0 %v6095
    %7244 = vmatpush.bf16.msra.mxu0 %v6088
    %7245 = vmatpush.bf16.msra.mxu0 %v6081
    %7246 = vmatpush.bf16.msra.mxu0 %v6074
    %7247 = vmatmul.bf16.gmra.mxu0 %v4117
    %v7248 = vpop.f32.mrf.mxu0
    %v7249 = vadd.f32 %v7236, %v7248
    %v7250 = vpop.f32.mrf.mxu0
    %7251 = vdwg.mxu0
    %7252 = vmatpush.bf16.msra.mxu0 %v6179
    %7253 = vmatpush.bf16.msra.mxu0 %v6172
    %7254 = vmatpush.bf16.msra.mxu0 %v6165
    %7255 = vmatpush.bf16.msra.mxu0 %v6158
    %7256 = vmatpush.bf16.msra.mxu0 %v6151
    %7257 = vmatpush.bf16.msra.mxu0 %v6144
    %7258 = vmatpush.bf16.msra.mxu0 %v6137
    %7259 = vmatpush.bf16.msra.mxu0 %v6130
    %7260 = vmatmul.bf16.gmra.mxu0 %v4118
    %v7261 = vpop.f32.mrf.mxu0
    %v7262 = vadd.f32 %v7249, %v7261
    %v7263 = vpop.f32.mrf.mxu0
    %7264 = vdwg.mxu0
    %7265 = vmatpush.bf16.msra.mxu0 %v6235
    %7266 = vmatpush.bf16.msra.mxu0 %v6228
    %7267 = vmatpush.bf16.msra.mxu0 %v6221
    %7268 = vmatpush.bf16.msra.mxu0 %v6214
    %7269 = vmatpush.bf16.msra.mxu0 %v6207
    %7270 = vmatpush.bf16.msra.mxu0 %v6200
    %7271 = vmatpush.bf16.msra.mxu0 %v6193
    %7272 = vmatpush.bf16.msra.mxu0 %v6186
    %7273 = vmatmul.bf16.gmra.mxu0 %v4119
    %v7274 = vpop.f32.mrf.mxu0
    %v7275 = vadd.f32 %v7262, %v7274
    %v7276 = vpop.f32.mrf.mxu0
    %7277 = vdwg.mxu0
    %7278 = vmatpush.bf16.msra.mxu0 %v6291
    %7279 = vmatpush.bf16.msra.mxu0 %v6284
    %7280 = vmatpush.bf16.msra.mxu0 %v6277
    %7281 = vmatpush.bf16.msra.mxu0 %v6270
    %7282 = vmatpush.bf16.msra.mxu0 %v6263
    %7283 = vmatpush.bf16.msra.mxu0 %v6256
    %7284 = vmatpush.bf16.msra.mxu0 %v6249
    %7285 = vmatpush.bf16.msra.mxu0 %v6242
    %7286 = vmatmul.bf16.gmra.mxu0 %v4120
    %v7287 = vpop.f32.mrf.mxu0
    %v7288 = vadd.f32 %v7275, %v7287
    %v7289 = vpop.f32.mrf.mxu0
    %7290 = vdwg.mxu0
    %7291 = vmatpush.bf16.msra.mxu0 %v6347
    %7292 = vmatpush.bf16.msra.mxu0 %v6340
    %7293 = vmatpush.bf16.msra.mxu0 %v6333
    %7294 = vmatpush.bf16.msra.mxu0 %v6326
    %7295 = vmatpush.bf16.msra.mxu0 %v6319
    %7296 = vmatpush.bf16.msra.mxu0 %v6312
    %7297 = vmatpush.bf16.msra.mxu0 %v6305
    %7298 = vmatpush.bf16.msra.mxu0 %v6298
    %7299 = vmatmul.bf16.gmra.mxu0 %v4121
    %v7300 = vpop.f32.mrf.mxu0
    %v7301 = vadd.f32 %v7288, %v7300
    %v7302 = vpop.f32.mrf.mxu0
    %7303 = vdwg.mxu0
    %7304 = vmatpush.bf16.msra.mxu0 %v6403
    %7305 = vmatpush.bf16.msra.mxu0 %v6396
    %7306 = vmatpush.bf16.msra.mxu0 %v6389
    %7307 = vmatpush.bf16.msra.mxu0 %v6382
    %7308 = vmatpush.bf16.msra.mxu0 %v6375
    %7309 = vmatpush.bf16.msra.mxu0 %v6368
    %7310 = vmatpush.bf16.msra.mxu0 %v6361
    %7311 = vmatpush.bf16.msra.mxu0 %v6354
    %7312 = vmatmul.bf16.gmra.mxu0 %v4122
    %v7313 = vpop.f32.mrf.mxu0
    %v7314 = vadd.f32 %v7301, %v7313
    %v7315 = vpop.f32.mrf.mxu0
    %7316 = vdwg.mxu0
    %7317 = vmatpush.bf16.msra.mxu0 0
    %7318 = vmatpush.bf16.msra.mxu0 %v6903
    %7319 = vmatpush.bf16.msra.mxu0 %v6445
    %7320 = vmatpush.bf16.msra.mxu0 %v6438
    %7321 = vmatpush.bf16.msra.mxu0 %v6431
    %7322 = vmatpush.bf16.msra.mxu0 %v6424
    %7323 = vmatpush.bf16.msra.mxu0 %v6417
    %7324 = vmatpush.bf16.msra.mxu0 %v6410
    %7325 = vmatmul.bf16.gmra.mxu0 %v6891
    %v7326 = vpop.f32.mrf.mxu0
    %v7327 = vadd.f32 %v7314, %v7326
    %v7328 = vpop.f32.mrf.mxu0
    %7329 = vdwg.mxu0
    %7330 = vmatpush.bf16.msra.mxu0 %v6068
    %7331 = vmatpush.bf16.msra.mxu0 %v6061
    %7332 = vmatpush.bf16.msra.mxu0 %v6054
    %7333 = vmatpush.bf16.msra.mxu0 %v6047
    %7334 = vmatpush.bf16.msra.mxu0 %v6040
    %7335 = vmatpush.bf16.msra.mxu0 %v6033
    %7336 = vmatpush.bf16.msra.mxu0 %v6026
    %7337 = vmatpush.bf16.msra.mxu0 %v6019
    %7338 = vmatmul.bf16.gmra.mxu0 %v4116
    %v7339 = vpop.f32.mrf.mxu0
    %v7340 = vadd.f32 %v4630, %v7339
    %v7341 = vpop.f32.mrf.mxu0
    %7342 = vdwg.mxu0
    %7343 = vmatpush.bf16.msra.mxu0 %v6124
    %7344 = vmatpush.bf16.msra.mxu0 %v6117
    %7345 = vmatpush.bf16.msra.mxu0 %v6110
    %7346 = vmatpush.bf16.msra.mxu0 %v6103
    %7347 = vmatpush.bf16.msra.mxu0 %v6096
    %7348 = vmatpush.bf16.msra.mxu0 %v6089
    %7349 = vmatpush.bf16.msra.mxu0 %v6082
    %7350 = vmatpush.bf16.msra.mxu0 %v6075
    %7351 = vmatmul.bf16.gmra.mxu0 %v4117
    %v7352 = vpop.f32.mrf.mxu0
    %v7353 = vadd.f32 %v7340, %v7352
    %v7354 = vpop.f32.mrf.mxu0
    %7355 = vdwg.mxu0
    %7356 = vmatpush.bf16.msra.mxu0 %v6180
    %7357 = vmatpush.bf16.msra.mxu0 %v6173
    %7358 = vmatpush.bf16.msra.mxu0 %v6166
    %7359 = vmatpush.bf16.msra.mxu0 %v6159
    %7360 = vmatpush.bf16.msra.mxu0 %v6152
    %7361 = vmatpush.bf16.msra.mxu0 %v6145
    %7362 = vmatpush.bf16.msra.mxu0 %v6138
    %7363 = vmatpush.bf16.msra.mxu0 %v6131
    %7364 = vmatmul.bf16.gmra.mxu0 %v4118
    %v7365 = vpop.f32.mrf.mxu0
    %v7366 = vadd.f32 %v7353, %v7365
    %v7367 = vpop.f32.mrf.mxu0
    %7368 = vdwg.mxu0
    %7369 = vmatpush.bf16.msra.mxu0 %v6236
    %7370 = vmatpush.bf16.msra.mxu0 %v6229
    %7371 = vmatpush.bf16.msra.mxu0 %v6222
    %7372 = vmatpush.bf16.msra.mxu0 %v6215
    %7373 = vmatpush.bf16.msra.mxu0 %v6208
    %7374 = vmatpush.bf16.msra.mxu0 %v6201
    %7375 = vmatpush.bf16.msra.mxu0 %v6194
    %7376 = vmatpush.bf16.msra.mxu0 %v6187
    %7377 = vmatmul.bf16.gmra.mxu0 %v4119
    %v7378 = vpop.f32.mrf.mxu0
    %v7379 = vadd.f32 %v7366, %v7378
    %v7380 = vpop.f32.mrf.mxu0
    %7381 = vdwg.mxu0
    %7382 = vmatpush.bf16.msra.mxu0 %v6292
    %7383 = vmatpush.bf16.msra.mxu0 %v6285
    %7384 = vmatpush.bf16.msra.mxu0 %v6278
    %7385 = vmatpush.bf16.msra.mxu0 %v6271
    %7386 = vmatpush.bf16.msra.mxu0 %v6264
    %7387 = vmatpush.bf16.msra.mxu0 %v6257
    %7388 = vmatpush.bf16.msra.mxu0 %v6250
    %7389 = vmatpush.bf16.msra.mxu0 %v6243
    %7390 = vmatmul.bf16.gmra.mxu0 %v4120
    %v7391 = vpop.f32.mrf.mxu0
    %v7392 = vadd.f32 %v7379, %v7391
    %v7393 = vpop.f32.mrf.mxu0
    %7394 = vdwg.mxu0
    %7395 = vmatpush.bf16.msra.mxu0 %v6348
    %7396 = vmatpush.bf16.msra.mxu0 %v6341
    %7397 = vmatpush.bf16.msra.mxu0 %v6334
    %7398 = vmatpush.bf16.msra.mxu0 %v6327
    %7399 = vmatpush.bf16.msra.mxu0 %v6320
    %7400 = vmatpush.bf16.msra.mxu0 %v6313
    %7401 = vmatpush.bf16.msra.mxu0 %v6306
    %7402 = vmatpush.bf16.msra.mxu0 %v6299
    %7403 = vmatmul.bf16.gmra.mxu0 %v4121
    %v7404 = vpop.f32.mrf.mxu0
    %v7405 = vadd.f32 %v7392, %v7404
    %v7406 = vpop.f32.mrf.mxu0
    %7407 = vdwg.mxu0
    %7408 = vmatpush.bf16.msra.mxu0 %v6404
    %7409 = vmatpush.bf16.msra.mxu0 %v6397
    %7410 = vmatpush.bf16.msra.mxu0 %v6390
    %7411 = vmatpush.bf16.msra.mxu0 %v6383
    %7412 = vmatpush.bf16.msra.mxu0 %v6376
    %7413 = vmatpush.bf16.msra.mxu0 %v6369
    %7414 = vmatpush.bf16.msra.mxu0 %v6362
    %7415 = vmatpush.bf16.msra.mxu0 %v6355
    %7416 = vmatmul.bf16.gmra.mxu0 %v4122
    %v7417 = vpop.f32.mrf.mxu0
    %v7418 = vadd.f32 %v7405, %v7417
    %v7419 = vpop.f32.mrf.mxu0
    %7420 = vdwg.mxu0
    %7421 = vmatpush.bf16.msra.mxu0 0
    %7422 = vmatpush.bf16.msra.mxu0 %v6906
    %7423 = vmatpush.bf16.msra.mxu0 %v6446
    %7424 = vmatpush.bf16.msra.mxu0 %v6439
    %7425 = vmatpush.bf16.msra.mxu0 %v6432
    %7426 = vmatpush.bf16.msra.mxu0 %v6425
    %7427 = vmatpush.bf16.msra.mxu0 %v6418
    %7428 = vmatpush.bf16.msra.mxu0 %v6411
    %7429 = vmatmul.bf16.gmra.mxu0 %v6891
    %v7430 = vpop.f32.mrf.mxu0
    %v7431 = vadd.f32 %v7418, %v7430
    %v7432 = vpop.f32.mrf.mxu0
    %7433 = vdwg.mxu0
    %7434 = vmatpush.bf16.msra.mxu0 %v6069
    %7435 = vmatpush.bf16.msra.mxu0 %v6062
    %7436 = vmatpush.bf16.msra.mxu0 %v6055
    %7437 = vmatpush.bf16.msra.mxu0 %v6048
    %7438 = vmatpush.bf16.msra.mxu0 %v6041
    %7439 = vmatpush.bf16.msra.mxu0 %v6034
    %7440 = vmatpush.bf16.msra.mxu0 %v6027
    %7441 = vmatpush.bf16.msra.mxu0 %v6020
    %7442 = vmatmul.bf16.gmra.mxu0 %v4116
    %v7443 = vpop.f32.mrf.mxu0
    %v7444 = vadd.f32 %v4631, %v7443
    %v7445 = vpop.f32.mrf.mxu0
    %7446 = vdwg.mxu0
    %7447 = vmatpush.bf16.msra.mxu0 %v6125
    %7448 = vmatpush.bf16.msra.mxu0 %v6118
    %7449 = vmatpush.bf16.msra.mxu0 %v6111
    %7450 = vmatpush.bf16.msra.mxu0 %v6104
    %7451 = vmatpush.bf16.msra.mxu0 %v6097
    %7452 = vmatpush.bf16.msra.mxu0 %v6090
    %7453 = vmatpush.bf16.msra.mxu0 %v6083
    %7454 = vmatpush.bf16.msra.mxu0 %v6076
    %7455 = vmatmul.bf16.gmra.mxu0 %v4117
    %v7456 = vpop.f32.mrf.mxu0
    %v7457 = vadd.f32 %v7444, %v7456
    %v7458 = vpop.f32.mrf.mxu0
    %7459 = vdwg.mxu0
    %7460 = vmatpush.bf16.msra.mxu0 %v6181
    %7461 = vmatpush.bf16.msra.mxu0 %v6174
    %7462 = vmatpush.bf16.msra.mxu0 %v6167
    %7463 = vmatpush.bf16.msra.mxu0 %v6160
    %7464 = vmatpush.bf16.msra.mxu0 %v6153
    %7465 = vmatpush.bf16.msra.mxu0 %v6146
    %7466 = vmatpush.bf16.msra.mxu0 %v6139
    %7467 = vmatpush.bf16.msra.mxu0 %v6132
    %7468 = vmatmul.bf16.gmra.mxu0 %v4118
    %v7469 = vpop.f32.mrf.mxu0
    %v7470 = vadd.f32 %v7457, %v7469
    %v7471 = vpop.f32.mrf.mxu0
    %7472 = vdwg.mxu0
    %7473 = vmatpush.bf16.msra.mxu0 %v6237
    %7474 = vmatpush.bf16.msra.mxu0 %v6230
    %7475 = vmatpush.bf16.msra.mxu0 %v6223
    %7476 = vmatpush.bf16.msra.mxu0 %v6216
    %7477 = vmatpush.bf16.msra.mxu0 %v6209
    %7478 = vmatpush.bf16.msra.mxu0 %v6202
    %7479 = vmatpush.bf16.msra.mxu0 %v6195
    %7480 = vmatpush.bf16.msra.mxu0 %v6188
    %7481 = vmatmul.bf16.gmra.mxu0 %v4119
    %v7482 = vpop.f32.mrf.mxu0
    %v7483 = vadd.f32 %v7470, %v7482
    %v7484 = vpop.f32.mrf.mxu0
    %7485 = vdwg.mxu0
    %7486 = vmatpush.bf16.msra.mxu0 %v6293
    %7487 = vmatpush.bf16.msra.mxu0 %v6286
    %7488 = vmatpush.bf16.msra.mxu0 %v6279
    %7489 = vmatpush.bf16.msra.mxu0 %v6272
    %7490 = vmatpush.bf16.msra.mxu0 %v6265
    %7491 = vmatpush.bf16.msra.mxu0 %v6258
    %7492 = vmatpush.bf16.msra.mxu0 %v6251
    %7493 = vmatpush.bf16.msra.mxu0 %v6244
    %7494 = vmatmul.bf16.gmra.mxu0 %v4120
    %v7495 = vpop.f32.mrf.mxu0
    %v7496 = vadd.f32 %v7483, %v7495
    %v7497 = vpop.f32.mrf.mxu0
    %7498 = vdwg.mxu0
    %7499 = vmatpush.bf16.msra.mxu0 %v6349
    %7500 = vmatpush.bf16.msra.mxu0 %v6342
    %7501 = vmatpush.bf16.msra.mxu0 %v6335
    %7502 = vmatpush.bf16.msra.mxu0 %v6328
    %7503 = vmatpush.bf16.msra.mxu0 %v6321
    %7504 = vmatpush.bf16.msra.mxu0 %v6314
    %7505 = vmatpush.bf16.msra.mxu0 %v6307
    %7506 = vmatpush.bf16.msra.mxu0 %v6300
    %7507 = vmatmul.bf16.gmra.mxu0 %v4121
    %v7508 = vpop.f32.mrf.mxu0
    %v7509 = vadd.f32 %v7496, %v7508
    %v7510 = vpop.f32.mrf.mxu0
    %7511 = vdwg.mxu0
    %7512 = vmatpush.bf16.msra.mxu0 %v6405
    %7513 = vmatpush.bf16.msra.mxu0 %v6398
    %7514 = vmatpush.bf16.msra.mxu0 %v6391
    %7515 = vmatpush.bf16.msra.mxu0 %v6384
    %7516 = vmatpush.bf16.msra.mxu0 %v6377
    %7517 = vmatpush.bf16.msra.mxu0 %v6370
    %7518 = vmatpush.bf16.msra.mxu0 %v6363
    %7519 = vmatpush.bf16.msra.mxu0 %v6356
    %7520 = vmatmul.bf16.gmra.mxu0 %v4122
    %v7521 = vpop.f32.mrf.mxu0
    %v7522 = vadd.f32 %v7509, %v7521
    %v7523 = vpop.f32.mrf.mxu0
    %7524 = vdwg.mxu0
    %7525 = vmatpush.bf16.msra.mxu0 0
    %7526 = vmatpush.bf16.msra.mxu0 %v6909
    %7527 = vmatpush.bf16.msra.mxu0 %v6447
    %7528 = vmatpush.bf16.msra.mxu0 %v6440
    %7529 = vmatpush.bf16.msra.mxu0 %v6433
    %7530 = vmatpush.bf16.msra.mxu0 %v6426
    %7531 = vmatpush.bf16.msra.mxu0 %v6419
    %7532 = vmatpush.bf16.msra.mxu0 %v6412
    %7533 = vmatmul.bf16.gmra.mxu0 %v6891
    %v7534 = vpop.f32.mrf.mxu0
    %v7535 = vadd.f32 %v7522, %v7534
    %v7536 = vpop.f32.mrf.mxu0
    %7537 = vdwg.mxu0
    %7538 = vmatpush.bf16.msra.mxu0 %v6070
    %7539 = vmatpush.bf16.msra.mxu0 %v6063
    %7540 = vmatpush.bf16.msra.mxu0 %v6056
    %7541 = vmatpush.bf16.msra.mxu0 %v6049
    %7542 = vmatpush.bf16.msra.mxu0 %v6042
    %7543 = vmatpush.bf16.msra.mxu0 %v6035
    %7544 = vmatpush.bf16.msra.mxu0 %v6028
    %7545 = vmatpush.bf16.msra.mxu0 %v6021
    %7546 = vmatmul.bf16.gmra.mxu0 %v4116
    %v7547 = vpop.f32.mrf.mxu0
    %v7548 = vadd.f32 %v4632, %v7547
    %v7549 = vpop.f32.mrf.mxu0
    %7550 = vdwg.mxu0
    %7551 = vmatpush.bf16.msra.mxu0 %v6126
    %7552 = vmatpush.bf16.msra.mxu0 %v6119
    %7553 = vmatpush.bf16.msra.mxu0 %v6112
    %7554 = vmatpush.bf16.msra.mxu0 %v6105
    %7555 = vmatpush.bf16.msra.mxu0 %v6098
    %7556 = vmatpush.bf16.msra.mxu0 %v6091
    %7557 = vmatpush.bf16.msra.mxu0 %v6084
    %7558 = vmatpush.bf16.msra.mxu0 %v6077
    %7559 = vmatmul.bf16.gmra.mxu0 %v4117
    %v7560 = vpop.f32.mrf.mxu0
    %v7561 = vadd.f32 %v7548, %v7560
    %v7562 = vpop.f32.mrf.mxu0
    %7563 = vdwg.mxu0
    %7564 = vmatpush.bf16.msra.mxu0 %v6182
    %7565 = vmatpush.bf16.msra.mxu0 %v6175
    %7566 = vmatpush.bf16.msra.mxu0 %v6168
    %7567 = vmatpush.bf16.msra.mxu0 %v6161
    %7568 = vmatpush.bf16.msra.mxu0 %v6154
    %7569 = vmatpush.bf16.msra.mxu0 %v6147
    %7570 = vmatpush.bf16.msra.mxu0 %v6140
    %7571 = vmatpush.bf16.msra.mxu0 %v6133
    %7572 = vmatmul.bf16.gmra.mxu0 %v4118
    %v7573 = vpop.f32.mrf.mxu0
    %v7574 = vadd.f32 %v7561, %v7573
    %v7575 = vpop.f32.mrf.mxu0
    %7576 = vdwg.mxu0
    %7577 = vmatpush.bf16.msra.mxu0 %v6238
    %7578 = vmatpush.bf16.msra.mxu0 %v6231
    %7579 = vmatpush.bf16.msra.mxu0 %v6224
    %7580 = vmatpush.bf16.msra.mxu0 %v6217
    %7581 = vmatpush.bf16.msra.mxu0 %v6210
    %7582 = vmatpush.bf16.msra.mxu0 %v6203
    %7583 = vmatpush.bf16.msra.mxu0 %v6196
    %7584 = vmatpush.bf16.msra.mxu0 %v6189
    %7585 = vmatmul.bf16.gmra.mxu0 %v4119
    %v7586 = vpop.f32.mrf.mxu0
    %v7587 = vadd.f32 %v7574, %v7586
    %v7588 = vpop.f32.mrf.mxu0
    %7589 = vdwg.mxu0
    %7590 = vmatpush.bf16.msra.mxu0 %v6294
    %7591 = vmatpush.bf16.msra.mxu0 %v6287
    %7592 = vmatpush.bf16.msra.mxu0 %v6280
    %7593 = vmatpush.bf16.msra.mxu0 %v6273
    %7594 = vmatpush.bf16.msra.mxu0 %v6266
    %7595 = vmatpush.bf16.msra.mxu0 %v6259
    %7596 = vmatpush.bf16.msra.mxu0 %v6252
    %7597 = vmatpush.bf16.msra.mxu0 %v6245
    %7598 = vmatmul.bf16.gmra.mxu0 %v4120
    %v7599 = vpop.f32.mrf.mxu0
    %v7600 = vadd.f32 %v7587, %v7599
    %v7601 = vpop.f32.mrf.mxu0
    %7602 = vdwg.mxu0
    %7603 = vmatpush.bf16.msra.mxu0 %v6350
    %7604 = vmatpush.bf16.msra.mxu0 %v6343
    %7605 = vmatpush.bf16.msra.mxu0 %v6336
    %7606 = vmatpush.bf16.msra.mxu0 %v6329
    %7607 = vmatpush.bf16.msra.mxu0 %v6322
    %7608 = vmatpush.bf16.msra.mxu0 %v6315
    %7609 = vmatpush.bf16.msra.mxu0 %v6308
    %7610 = vmatpush.bf16.msra.mxu0 %v6301
    %7611 = vmatmul.bf16.gmra.mxu0 %v4121
    %v7612 = vpop.f32.mrf.mxu0
    %v7613 = vadd.f32 %v7600, %v7612
    %v7614 = vpop.f32.mrf.mxu0
    %7615 = vdwg.mxu0
    %7616 = vmatpush.bf16.msra.mxu0 %v6406
    %7617 = vmatpush.bf16.msra.mxu0 %v6399
    %7618 = vmatpush.bf16.msra.mxu0 %v6392
    %7619 = vmatpush.bf16.msra.mxu0 %v6385
    %7620 = vmatpush.bf16.msra.mxu0 %v6378
    %7621 = vmatpush.bf16.msra.mxu0 %v6371
    %7622 = vmatpush.bf16.msra.mxu0 %v6364
    %7623 = vmatpush.bf16.msra.mxu0 %v6357
    %7624 = vmatmul.bf16.gmra.mxu0 %v4122
    %v7625 = vpop.f32.mrf.mxu0
    %v7626 = vadd.f32 %v7613, %v7625
    %v7627 = vpop.f32.mrf.mxu0
    %7628 = vdwg.mxu0
    %7629 = vmatpush.bf16.msra.mxu0 0
    %7630 = vmatpush.bf16.msra.mxu0 %v6912
    %7631 = vmatpush.bf16.msra.mxu0 %v6448
    %7632 = vmatpush.bf16.msra.mxu0 %v6441
    %7633 = vmatpush.bf16.msra.mxu0 %v6434
    %7634 = vmatpush.bf16.msra.mxu0 %v6427
    %7635 = vmatpush.bf16.msra.mxu0 %v6420
    %7636 = vmatpush.bf16.msra.mxu0 %v6413
    %7637 = vmatmul.bf16.gmra.mxu0 %v6891
    %v7638 = vpop.f32.mrf.mxu0
    %v7639 = vadd.f32 %v7626, %v7638
    %v7640 = vpop.f32.mrf.mxu0
    %7641 = vdwg.mxu0
    %v7642 = vxor.u32 %v7015, 2147483648
    %v7643 = vxor.u32 %v7119, 2147483648
    %v7644 = vxor.u32 %v7223, 2147483648
    %v7645 = vxor.u32 %v7327, 2147483648
    %v7646 = vxor.u32 %v7431, 2147483648
    %v7647 = vxor.u32 %v7535, 2147483648
    %v7648 = vxor.u32 %v7639, 2147483648
    %v7649 = vmul.f32 %v7642, 1.442695
    %v7650 = vpow.pop %v7649
    %v7651 = vmul.f32 %v7643, 1.442695
    %v7652 = vpow.pop %v7651
    %v7653 = vmul.f32 %v7644, 1.442695
    %v7654 = vpow.pop %v7653
    %v7655 = vmul.f32 %v7645, 1.442695
    %v7656 = vpow.pop %v7655
    %v7657 = vmul.f32 %v7646, 1.442695
    %v7658 = vpow.pop %v7657
    %v7659 = vmul.f32 %v7647, 1.442695
    %v7660 = vpow.pop %v7659
    %v7661 = vmul.f32 %v7648, 1.442695
    %v7662 = vpow.pop %v7661
    %v7663 = vadd.f32 %v7650, 1.0
    %v7664 = vadd.f32 %v7652, 1.0
    %v7665 = vadd.f32 %v7654, 1.0
    %v7666 = vadd.f32 %v7656, 1.0
    %v7667 = vadd.f32 %v7658, 1.0
    %v7668 = vadd.f32 %v7660, 1.0
    %v7669 = vadd.f32 %v7662, 1.0
    %v7670 = vrcp.pop %v7663
    %v7671 = vmul.f32 %v7663, %v7670
    %v7672 = vsub.f32 1.0, %v7671
    %v7673 = vmul.f32 %v7670, %v7672
    %v7674 = vadd.f32 %v7670, %v7673
    %vm7675 = vweird.f32 %v7663
    %vm7676 = vweird.f32 %v7670
    %vm7677 = vmor %vm7675, %vm7676
    %v7678 = vsel %vm7677, %v7670, %v7674
    %v7679 = vand.u32 2147483647, %v7663
    %vm7680 = vcmp.eq.f32.partialorder %v7679, 8.507059e+37
    %v7681 = vand.u32 %v7663, 2147483648
    %v7682 = vor.u32 1.1754944e-38, %v7681
    %v7683 = vsel %vm7680, %v7682, %v7678
    %v7684 = vmul.f32 1.0, %v7683
    %v7685 = vrcp.pop %v7664
    %v7686 = vmul.f32 %v7664, %v7685
    %v7687 = vsub.f32 1.0, %v7686
    %v7688 = vmul.f32 %v7685, %v7687
    %v7689 = vadd.f32 %v7685, %v7688
    %vm7690 = vweird.f32 %v7664
    %vm7691 = vweird.f32 %v7685
    %vm7692 = vmor %vm7690, %vm7691
    %v7693 = vsel %vm7692, %v7685, %v7689
    %v7694 = vand.u32 2147483647, %v7664
    %vm7695 = vcmp.eq.f32.partialorder %v7694, 8.507059e+37
    %v7696 = vand.u32 %v7664, 2147483648
    %v7697 = vor.u32 1.1754944e-38, %v7696
    %v7698 = vsel %vm7695, %v7697, %v7693
    %v7699 = vmul.f32 1.0, %v7698
    %v7700 = vrcp.pop %v7665
    %v7701 = vmul.f32 %v7665, %v7700
    %v7702 = vsub.f32 1.0, %v7701
    %v7703 = vmul.f32 %v7700, %v7702
    %v7704 = vadd.f32 %v7700, %v7703
    %vm7705 = vweird.f32 %v7665
    %vm7706 = vweird.f32 %v7700
    %vm7707 = vmor %vm7705, %vm7706
    %v7708 = vsel %vm7707, %v7700, %v7704
    %v7709 = vand.u32 2147483647, %v7665
    %vm7710 = vcmp.eq.f32.partialorder %v7709, 8.507059e+37
    %v7711 = vand.u32 %v7665, 2147483648
    %v7712 = vor.u32 1.1754944e-38, %v7711
    %v7713 = vsel %vm7710, %v7712, %v7708
    %v7714 = vmul.f32 1.0, %v7713
    %v7715 = vrcp.pop %v7666
    %v7716 = vmul.f32 %v7666, %v7715
    %v7717 = vsub.f32 1.0, %v7716
    %v7718 = vmul.f32 %v7715, %v7717
    %v7719 = vadd.f32 %v7715, %v7718
    %vm7720 = vweird.f32 %v7666
    %vm7721 = vweird.f32 %v7715
    %vm7722 = vmor %vm7720, %vm7721
    %v7723 = vsel %vm7722, %v7715, %v7719
    %v7724 = vand.u32 2147483647, %v7666
    %vm7725 = vcmp.eq.f32.partialorder %v7724, 8.507059e+37
    %v7726 = vand.u32 %v7666, 2147483648
    %v7727 = vor.u32 1.1754944e-38, %v7726
    %v7728 = vsel %vm7725, %v7727, %v7723
    %v7729 = vmul.f32 1.0, %v7728
    %v7730 = vrcp.pop %v7667
    %v7731 = vmul.f32 %v7667, %v7730
    %v7732 = vsub.f32 1.0, %v7731
    %v7733 = vmul.f32 %v7730, %v7732
    %v7734 = vadd.f32 %v7730, %v7733
    %vm7735 = vweird.f32 %v7667
    %vm7736 = vweird.f32 %v7730
    %vm7737 = vmor %vm7735, %vm7736
    %v7738 = vsel %vm7737, %v7730, %v7734
    %v7739 = vand.u32 2147483647, %v7667
    %vm7740 = vcmp.eq.f32.partialorder %v7739, 8.507059e+37
    %v7741 = vand.u32 %v7667, 2147483648
    %v7742 = vor.u32 1.1754944e-38, %v7741
    %v7743 = vsel %vm7740, %v7742, %v7738
    %v7744 = vmul.f32 1.0, %v7743
    %v7745 = vrcp.pop %v7668
    %v7746 = vmul.f32 %v7668, %v7745
    %v7747 = vsub.f32 1.0, %v7746
    %v7748 = vmul.f32 %v7745, %v7747
    %v7749 = vadd.f32 %v7745, %v7748
    %vm7750 = vweird.f32 %v7668
    %vm7751 = vweird.f32 %v7745
    %vm7752 = vmor %vm7750, %vm7751
    %v7753 = vsel %vm7752, %v7745, %v7749
    %v7754 = vand.u32 2147483647, %v7668
    %vm7755 = vcmp.eq.f32.partialorder %v7754, 8.507059e+37
    %v7756 = vand.u32 %v7668, 2147483648
    %v7757 = vor.u32 1.1754944e-38, %v7756
    %v7758 = vsel %vm7755, %v7757, %v7753
    %v7759 = vmul.f32 1.0, %v7758
    %v7760 = vrcp.pop %v7669
    %v7761 = vmul.f32 %v7669, %v7760
    %v7762 = vsub.f32 1.0, %v7761
    %v7763 = vmul.f32 %v7760, %v7762
    %v7764 = vadd.f32 %v7760, %v7763
    %vm7765 = vweird.f32 %v7669
    %vm7766 = vweird.f32 %v7760
    %vm7767 = vmor %vm7765, %vm7766
    %v7768 = vsel %vm7767, %v7760, %v7764
    %v7769 = vand.u32 2147483647, %v7669
    %vm7770 = vcmp.eq.f32.partialorder %v7769, 8.507059e+37
    %v7771 = vand.u32 %v7669, 2147483648
    %v7772 = vor.u32 1.1754944e-38, %v7771
    %v7773 = vsel %vm7770, %v7772, %v7768
    %v7774 = vmul.f32 1.0, %v7773
    %7775 = vst [vmem:[#allocation2] sm:$0xff] %v7684
    %7776 = vst [vmem:[#allocation2 + $0x8] sm:$0xff] %v7699
    %7777 = vst [vmem:[#allocation2 + $0x10] sm:$0xff] %v7714
    %7778 = vst [vmem:[#allocation2 + $0x18] sm:$0xff] %v7729
    %7779 = vst [vmem:[#allocation2 + $0x20] sm:$0xff] %v7744
    %7780 = vst [vmem:[#allocation2 + $0x28] sm:$0xff] %v7759
    %vm7781 = vcmask 130048
    %7782 = vst.msk [vmem:[#allocation2 + $0x30] sm:$0xff] %vm7781, %v7774
    // Predicated region
    $region30: #{tpu_custom_call.1} parent=1 // pred_check
      _
    $region31: #{tpu_custom_call.1} parent=1 // pred_check_branch
      %7784 = sbr.rel (0) target = $region33
    $region32: #{tpu_custom_call.1} parent=1 // pred_region
      %7786 = vsyncadd [#allocation3], 0
      %s7788 = sshll.u32 [#allocation2], 4
      %s7789 = int_to_ptr.vmem [resolvable:$true] %s7788
      %s7790 = sshll.u32 %s7, 4
      %s7791 = int_to_ptr.hbm [resolvable:$true] %s7790
      %7793 = dma.vmem_to_hbm [thread:$0]  %s7789, 896, %s7791, [#allocation3]
    $region33: #{tpu_custom_call.1} parent=1 // pred_fallthru
      _
    // Predicated region
    $region34: #{tpu_custom_call.1} parent=1 // pred_check
      _
    $region35: #{tpu_custom_call.1} parent=1 // pred_check_branch
      %7795 = sbr.rel (0) target = $region37
    $region36: #{tpu_custom_call.1} parent=1 // pred_region
      %7797 = dma.done [#allocation3], 896
    $region37: #{tpu_custom_call.1} parent=1 // pred_fallthru
      _
    %7798 = vsyncpa [#allocation3], 1

</llo_original>
